<compile_context>
chip_gen: v5e
topology: v5e:2x2
jax: 0.10.0
libtpu: 0.0.40
codegen_flags: <defaults>
</compile_context>

<pallas_src>
import functools
import math

import jax
import jax.numpy as jnp
from jax.experimental import pallas as pl
from jax.experimental.pallas import tpu as pltpu

LN_EPS = 1e-6


# ----------------------------------------------------------------------------
# small in-kernel helpers (pure jnp, traced inside the Pallas kernel)
# ----------------------------------------------------------------------------
def _layernorm(h, gamma, beta):
    mu = jnp.mean(h, axis=-1, keepdims=True)
    var = jnp.mean((h - mu) ** 2, axis=-1, keepdims=True)
    return (h - mu) * jax.lax.rsqrt(var + LN_EPS) * gamma + beta


def _gelu(x):
    # TODO(synk): PyTorch nn.GELU() default is the exact erf formulation;
    # tanh approximation used here for Mosaic-safe lowering (max abs err ~1e-3).
    return 0.5 * x * (1.0 + jnp.tanh(0.7978845608028654 * (x + 0.044715 * x * x * x)))


# ----------------------------------------------------------------------------
# fused Pallas kernel: one grid step == one batch element, full ViT forward
# ----------------------------------------------------------------------------
def fused_vit_kernel(num_layers, num_heads,
                     patches_ref,                       # (1, P, C*p*p)
                     conv_wT_ref, conv_b_ref,           # (C*p*p, D), (1, D)
                     cls_ref, pos_ref,                  # (1, D), (S, D)
                     ln1_g_ref, ln1_b_ref,              # (L, 1, D)
                     wq_ref, bq_ref,                    # (L, H, D, dh), (L, H, 1, dh)
                     wk_ref, bk_ref,
                     wv_ref, bv_ref,
                     wo_ref, bo_ref,                    # (L, H, dh, D), (L, 1, D)
                     ao_g_ref, ao_b_ref,                # (L, 1, D)
                     ln2_g_ref, ln2_b_ref,              # (L, 1, D)
                     w1_ref, b1_ref,                    # (L, D, M), (L, 1, M)
                     w2_ref, b2_ref,                    # (L, M, D), (L, 1, D)
                     enc_g_ref, enc_b_ref,              # (1, D)
                     head_wT_ref, head_b_ref,           # (D, C), (1, C)
                     o_ref,                             # (1, 1, C)
                     xbuf_ref):                         # VMEM scratch (S, D)
    S, D = xbuf_ref.shape
    H = num_heads
    dh = D // H
    scale = 1.0 / math.sqrt(dh)

    # --- patchify conv (kernel == stride) expressed as a matmul -------------
    tok = (jnp.dot(patches_ref[0], conv_wT_ref[...],
                   preferred_element_type=jnp.float32) + conv_b_ref[...])    # (P, D)

    # --- assemble [class_token; patch tokens] + positional embedding --------
    # (direct sliced stores into the VMEM scratch, no concatenate)
    xbuf_ref[0:1, :] = cls_ref[...] + pos_ref[0:1, :]
    xbuf_ref[1:S, :] = tok + pos_ref[1:S, :]
    x = xbuf_ref[...]                                                        # (S, D)

    # --- encoder layers, statically unrolled --------------------------------
    for l in range(num_layers):
        # ln_1
        h = _layernorm(x, ln1_g_ref[l], ln1_b_ref[l])                        # (S, D)
        hb = jnp.broadcast_to(h, (H, S, D))                                  # (H, S, D)

        # Q/K/V projections; head split comes from the pre-split weights,
        # so a single batched contraction per projection, no per-head loop.
        q = jnp.einsum('hsd,hde->hse', hb, wq_ref[l],
                       preferred_element_type=jnp.float32) + bq_ref[l]       # (H, S, dh)
        k = jnp.einsum('hsd,hde->hse', hb, wk_ref[l],
                       preferred_element_type=jnp.float32) + bk_ref[l]
        v = jnp.einsum('hsd,hde->hse', hb, wv_ref[l],
                       preferred_element_type=jnp.float32) + bv_ref[l]

        # scaled dot-product attention, all heads in one batched einsum
        s = jnp.einsum('hqe,hke->hqk', q, k,
                       preferred_element_type=jnp.float32) * scale           # (H, S, S)
        s = s - jnp.max(s, axis=-1, keepdims=True)
        e = jnp.exp(s)
        probs = e * pl.reciprocal(jnp.sum(e, axis=-1, keepdims=True), approx=True)
        ctx = jnp.einsum('hqk,hke->hqe', probs, v,
                         preferred_element_type=jnp.float32)                 # (H, S, dh)

        # output projection: per-head partials summed back over heads
        att = jnp.sum(jnp.einsum('hse,hed->hsd', ctx, wo_ref[l],
                                 preferred_element_type=jnp.float32), axis=0)
        att = att + bo_ref[l]                                                # (S, D)

        # attention_output: dense -> dropout(identity) -> LN(h + residual)
        x = _layernorm(att + x, ao_g_ref[l], ao_b_ref[l])

        # ln_2 + MLP
        y = _layernorm(x, ln2_g_ref[l], ln2_b_ref[l])
        y = _gelu(jnp.dot(y, w1_ref[l], preferred_element_type=jnp.float32)
                  + b1_ref[l])
        y = jnp.dot(y, w2_ref[l], preferred_element_type=jnp.float32) + b2_ref[l]
        x = x + y

    # --- final encoder LayerNorm (class token only) + classifier head -------
    cls_tok = _layernorm(x[0:1, :], enc_g_ref[...], enc_b_ref[...])          # (1, D)
    o_ref[0] = (jnp.dot(cls_tok, head_wT_ref[...],
                        preferred_element_type=jnp.float32) + head_b_ref[...])


# ----------------------------------------------------------------------------
# wrapper
# ----------------------------------------------------------------------------
class SuperViTPallas:
    def __init__(self, image_size=16, patch_size=8, num_layers=2, num_heads=4,
                 hidden_dim=32, mlp_dim=64, num_classes=16,
                 key=jax.random.PRNGKey(0)):
        assert image_size % patch_size == 0
        assert hidden_dim % num_heads == 0
        self.image_size = image_size
        self.patch_size = patch_size
        self.num_layers = num_layers
        self.num_heads = num_heads
        self.hidden_dim = hidden_dim
        self.mlp_dim = mlp_dim
        self.num_classes = num_classes
        self.seq_length = (image_size // patch_size) ** 2 + 1
        self.params = self._init_params(key)          # PyTorch-layout params (reference)
        self.kparams = self._prepare_kernel_params()  # kernel-facing layout (once)

    # deterministic synthetic init (shapes follow the PyTorch module)
    def _init_params(self, key):
        D, M, C, S = self.hidden_dim, self.mlp_dim, self.num_classes, self.seq_length
        p = self.patch_size
        keys = iter(jax.random.split(key, 256))
        std = 0.02

        def rnd(shape, s=std):
            return jax.random.normal(next(keys), shape, dtype=jnp.float32) * s

        params = dict(
            conv_w=rnd((D, 3, p, p)),
            conv_b=jnp.zeros((D,), jnp.float32),
            class_token=rnd((1, 1, D)),
            pos_emb=rnd((S, D)),
            enc_ln_g=jnp.ones((D,), jnp.float32),
            enc_ln_b=jnp.zeros((D,), jnp.float32),
            head_w=rnd((C, D)),
            head_b=jnp.zeros((C,), jnp.float32),
            layers=[],
        )
        for _ in range(self.num_layers):
            params["layers"].append(dict(
                ln1_g=jnp.ones((D,), jnp.float32), ln1_b=jnp.zeros((D,), jnp.float32),
                wq=rnd((D, D)), bq=rnd((D,), 1e-3),
                wk=rnd((D, D)), bk=rnd((D,), 1e-3),
                wv=rnd((D, D)), bv=rnd((D,), 1e-3),
                wo=rnd((D, D)), bo=rnd((D,), 1e-3),
                ao_g=jnp.ones((D,), jnp.float32), ao_b=jnp.zeros((D,), jnp.float32),
                ln2_g=jnp.ones((D,), jnp.float32), ln2_b=jnp.zeros((D,), jnp.float32),
                w1=rnd((M, D)), b1=rnd((M,), 1e-3),
                w2=rnd((D, M)), b2=rnd((D,), 1e-3),
            ))
        return params

    # precompute all transposed / head-split / layer-stacked weights ONCE
    def _prepare_kernel_params(self):
        D, M, C = self.hidden_dim, self.mlp_dim, self.num_classes
        H, p = self.num_heads, self.patch_size
        dh = D // H
        prm = self.params
        ls = prm["layers"]

        def split_in(w):   # nn.Linear weight (D_out, D_in) -> (H, D_in, dh)
            return jnp.stack([w[h * dh:(h + 1) * dh, :].T for h in range(H)], axis=0)

        def split_out(w):  # output-proj weight (D_out, D_in) -> (H, dh, D_out)
            return jnp.stack([w[:, h * dh:(h + 1) * dh].T for h in range(H)], axis=0)

        kp = dict(
            conv_wT=prm["conv_w"].reshape(D, 3 * p * p).T,
            conv_b=prm["conv_b"].reshape(1, D),
            cls=prm["class_token"].reshape(1, D),
            pos=prm["pos_emb"],
            enc_g=prm["enc_ln_g"].reshape(1, D),
            enc_b=prm["enc_ln_b"].reshape(1, D),
            head_wT=prm["head_w"].T,
            head_b=prm["head_b"].reshape(1, C),
            ln1_g=jnp.stack([lp["ln1_g"].reshape(1, D) for lp in ls]),
            ln1_b=jnp.stack([lp["ln1_b"].reshape(1, D) for lp in ls]),
            wq=jnp.stack([split_in(lp["wq"]) for lp in ls]),
            bq=jnp.stack([lp["bq"].reshape(H, 1, dh) for lp in ls]),
            wk=jnp.stack([split_in(lp["wk"]) for lp in ls]),
            bk=jnp.stack([lp["bk"].reshape(H, 1, dh) for lp in ls]),
            wv=jnp.stack([split_in(lp["wv"]) for lp in ls]),
            bv=jnp.stack([lp["bv"].reshape(H, 1, dh) for lp in ls]),
            wo=jnp.stack([split_out(lp["wo"]) for lp in ls]),
            bo=jnp.stack([lp["bo"].reshape(1, D) for lp in ls]),
            ao_g=jnp.stack([lp["ao_g"].reshape(1, D) for lp in ls]),
            ao_b=jnp.stack([lp["ao_b"].reshape(1, D) for lp in ls]),
            ln2_g=jnp.stack([lp["ln2_g"].reshape(1, D) for lp in ls]),
            ln2_b=jnp.stack([lp["ln2_b"].reshape(1, D) for lp in ls]),
            w1=jnp.stack([lp["w1"].T for lp in ls]),
            b1=jnp.stack([lp["b1"].reshape(1, M) for lp in ls]),
            w2=jnp.stack([lp["w2"].T for lp in ls]),
            b2=jnp.stack([lp["b2"].reshape(1, D) for lp in ls]),
        )
        return {k: jnp.asarray(v) for k, v in kp.items()}

    # ---- fused Pallas forward -------------------------------------------
    def __call__(self, x):
        N, Cin, Himg, Wimg = x.shape
        assert Himg == self.image_size and Wimg == self.image_size and Cin == 3
        p = self.patch_size
        nh, nw = Himg // p, Wimg // p
        P = nh * nw
        CPP = Cin * p * p
        D, S, C = self.hidden_dim, self.seq_length, self.num_classes
        kp = self.kparams

        # glue: patch extraction with (c, ph, pw) minor order == Conv2d weight order
        patches = (x.reshape(N, Cin, nh, p, nw, p)
                     .transpose(0, 2, 4, 1, 3, 5)
                     .reshape(N, P, CPP))

        weights = [kp["conv_wT"], kp["conv_b"], kp["cls"], kp["pos"],
                   kp["ln1_g"], kp["ln1_b"],
                   kp["wq"], kp["bq"], kp["wk"], kp["bk"], kp["wv"], kp["bv"],
                   kp["wo"], kp["bo"], kp["ao_g"], kp["ao_b"],
                   kp["ln2_g"], kp["ln2_b"],
                   kp["w1"], kp["b1"], kp["w2"], kp["b2"],
                   kp["enc_g"], kp["enc_b"], kp["head_wT"], kp["head_b"]]

        const_maps = {
            2: lambda b: (0, 0),
            3: lambda b: (0, 0, 0),
            4: lambda b: (0, 0, 0, 0),
        }
        in_specs = [pl.BlockSpec((1, P, CPP), lambda b: (b, 0, 0))]
        in_specs += [pl.BlockSpec(w.shape, const_maps[w.ndim]) for w in weights]

        kernel = functools.partial(fused_vit_kernel, self.num_layers, self.num_heads)
        logits = pl.pallas_call(
            kernel,
            grid=(N,),
            in_specs=in_specs,
            out_specs=pl.BlockSpec((1, 1, C), lambda b: (b, 0, 0)),
            out_shape=jax.ShapeDtypeStruct((N, 1, C), jnp.float32),
            scratch_shapes=[pltpu.VMEM((S, D), jnp.float32)],
            compiler_params=pltpu.CompilerParams(
                dimension_semantics=("parallel",)),
        )(patches, *weights)
        return logits.reshape(N, C)

    # ---- pure-JAX reference (same math) for verification ------------------
    def reference(self, x):
        prm = self.params
        N, Cin, H, W = x.shape
        p = self.patch_size
        nh, nw = H // p, W // p
        P = nh * nw
        D = self.hidden_dim
        Hn = self.num_heads
        dh = D // Hn

        patches = (x.reshape(N, Cin, nh, p, nw, p)
                     .transpose(0, 2, 4, 1, 3, 5)
                     .reshape(N, P, Cin * p * p))
        tok = patches @ prm["conv_w"].reshape(D, -1).T + prm["conv_b"]
        cls = jnp.broadcast_to(prm["class_token"], (N, 1, D))
        xs = jnp.concatenate([cls, tok], axis=1) + prm["pos_emb"][None]

        for lp in prm["layers"]:
            h = _layernorm(xs, lp["ln1_g"], lp["ln1_b"])
            q = h @ lp["wq"].T + lp["bq"]
            k = h @ lp["wk"].T + lp["bk"]
            v = h @ lp["wv"].T + lp["bv"]
            qh = q.reshape(N, -1, Hn, dh).transpose(0, 2, 1, 3)
            kh = k.reshape(N, -1, Hn, dh).transpose(0, 2, 1, 3)
            vh = v.reshape(N, -1, Hn, dh).transpose(0, 2, 1, 3)
            s = (qh @ kh.transpose(0, 1, 3, 2)) / math.sqrt(dh)
            pr = jax.nn.softmax(s, axis=-1)
            ctx = (pr @ vh).transpose(0, 2, 1, 3).reshape(N, -1, D)
            att = ctx @ lp["wo"].T + lp["bo"]
            x1 = _layernorm(att + xs, lp["ao_g"], lp["ao_b"])
            y = _layernorm(x1, lp["ln2_g"], lp["ln2_b"])
            y = _gelu(y @ lp["w1"].T + lp["b1"])
            y = y @ lp["w2"].T + lp["b2"]
            xs = x1 + y

        cls0 = _layernorm(xs[:, 0, :], prm["enc_ln_g"], prm["enc_ln_b"])
        return cls0 @ prm["head_w"].T + prm["head_b"]


if __name__ == "__main__":
    key = jax.random.PRNGKey(0)
    x = jax.random.normal(key, (2, 3, 16, 16), dtype=jnp.float32)

    model = SuperViTPallas(image_size=16, patch_size=8, num_layers=2,
                           num_heads=4, hidden_dim=32, mlp_dim=64,
                           num_classes=16, key=jax.random.PRNGKey(1))

    out = model(x)
    out = jax.block_until_ready(out)

    ref = model.reference(x)
    assert out.shape == (2, 16)
    assert bool(jnp.all(jnp.isfinite(out)))
    assert bool(jnp.allclose(out, ref, atol=1e-2, rtol=1e-2)), (out, ref)
    print("KERNEL_OK")
</pallas_src>

<mosaic_0001>
module attributes {stable_mosaic.version = 11 : i64} {
  func.func @fused_vit_kernel(%arg0: i32, %arg1: memref<1x4x192xf32, #tpu.memory_space<vmem>>, %arg2: memref<192x32xf32, #tpu.memory_space<vmem>>, %arg3: memref<1x32xf32, #tpu.memory_space<vmem>>, %arg4: memref<1x32xf32, #tpu.memory_space<vmem>>, %arg5: memref<5x32xf32, #tpu.memory_space<vmem>>, %arg6: memref<2x1x32xf32, #tpu.memory_space<vmem>>, %arg7: memref<2x1x32xf32, #tpu.memory_space<vmem>>, %arg8: memref<2x4x32x8xf32, #tpu.memory_space<vmem>>, %arg9: memref<2x4x1x8xf32, #tpu.memory_space<vmem>>, %arg10: memref<2x4x32x8xf32, #tpu.memory_space<vmem>>, %arg11: memref<2x4x1x8xf32, #tpu.memory_space<vmem>>, %arg12: memref<2x4x32x8xf32, #tpu.memory_space<vmem>>, %arg13: memref<2x4x1x8xf32, #tpu.memory_space<vmem>>, %arg14: memref<2x4x8x32xf32, #tpu.memory_space<vmem>>, %arg15: memref<2x1x32xf32, #tpu.memory_space<vmem>>, %arg16: memref<2x1x32xf32, #tpu.memory_space<vmem>>, %arg17: memref<2x1x32xf32, #tpu.memory_space<vmem>>, %arg18: memref<2x1x32xf32, #tpu.memory_space<vmem>>, %arg19: memref<2x1x32xf32, #tpu.memory_space<vmem>>, %arg20: memref<2x32x64xf32, #tpu.memory_space<vmem>>, %arg21: memref<2x1x64xf32, #tpu.memory_space<vmem>>, %arg22: memref<2x64x32xf32, #tpu.memory_space<vmem>>, %arg23: memref<2x1x32xf32, #tpu.memory_space<vmem>>, %arg24: memref<1x32xf32, #tpu.memory_space<vmem>>, %arg25: memref<1x32xf32, #tpu.memory_space<vmem>>, %arg26: memref<32x16xf32, #tpu.memory_space<vmem>>, %arg27: memref<1x16xf32, #tpu.memory_space<vmem>>, %arg28: memref<1x1x16xf32, #tpu.memory_space<vmem>>, %arg29: memref<5x32xf32, #tpu.memory_space<vmem>>) attributes {dimension_semantics = [#tpu.dimension_semantics<parallel>], iteration_bounds = array<i64: 2>, scalar_prefetch = 0 : i64, scratch_operands = 1 : i64, tpu.core_type = #tpu.core_type<tc>, window_params = [{transform_indices = @transform_0, window_bounds = array<i64: 1, 4, 192>}, {pipeline_mode = #tpu.pipeline_mode<synchronous>, transform_indices = @transform_1, window_bounds = array<i64: 192, 32>}, {pipeline_mode = #tpu.pipeline_mode<synchronous>, transform_indices = @transform_2, window_bounds = array<i64: 1, 32>}, {pipeline_mode = #tpu.pipeline_mode<synchronous>, transform_indices = @transform_3, window_bounds = array<i64: 1, 32>}, {pipeline_mode = #tpu.pipeline_mode<synchronous>, transform_indices = @transform_4, window_bounds = array<i64: 5, 32>}, {pipeline_mode = #tpu.pipeline_mode<synchronous>, transform_indices = @transform_5, window_bounds = array<i64: 2, 1, 32>}, {pipeline_mode = #tpu.pipeline_mode<synchronous>, transform_indices = @transform_6, window_bounds = array<i64: 2, 1, 32>}, {pipeline_mode = #tpu.pipeline_mode<synchronous>, transform_indices = @transform_7, window_bounds = array<i64: 2, 4, 32, 8>}, {pipeline_mode = #tpu.pipeline_mode<synchronous>, transform_indices = @transform_8, window_bounds = array<i64: 2, 4, 1, 8>}, {pipeline_mode = #tpu.pipeline_mode<synchronous>, transform_indices = @transform_9, window_bounds = array<i64: 2, 4, 32, 8>}, {pipeline_mode = #tpu.pipeline_mode<synchronous>, transform_indices = @transform_10, window_bounds = array<i64: 2, 4, 1, 8>}, {pipeline_mode = #tpu.pipeline_mode<synchronous>, transform_indices = @transform_11, window_bounds = array<i64: 2, 4, 32, 8>}, {pipeline_mode = #tpu.pipeline_mode<synchronous>, transform_indices = @transform_12, window_bounds = array<i64: 2, 4, 1, 8>}, {pipeline_mode = #tpu.pipeline_mode<synchronous>, transform_indices = @transform_13, window_bounds = array<i64: 2, 4, 8, 32>}, {pipeline_mode = #tpu.pipeline_mode<synchronous>, transform_indices = @transform_14, window_bounds = array<i64: 2, 1, 32>}, {pipeline_mode = #tpu.pipeline_mode<synchronous>, transform_indices = @transform_15, window_bounds = array<i64: 2, 1, 32>}, {pipeline_mode = #tpu.pipeline_mode<synchronous>, transform_indices = @transform_16, window_bounds = array<i64: 2, 1, 32>}, {pipeline_mode = #tpu.pipeline_mode<synchronous>, transform_indices = @transform_17, window_bounds = array<i64: 2, 1, 32>}, {pipeline_mode = #tpu.pipeline_mode<synchronous>, transform_indices = @transform_18, window_bounds = array<i64: 2, 1, 32>}, {pipeline_mode = #tpu.pipeline_mode<synchronous>, transform_indices = @transform_19, window_bounds = array<i64: 2, 32, 64>}, {pipeline_mode = #tpu.pipeline_mode<synchronous>, transform_indices = @transform_20, window_bounds = array<i64: 2, 1, 64>}, {pipeline_mode = #tpu.pipeline_mode<synchronous>, transform_indices = @transform_21, window_bounds = array<i64: 2, 64, 32>}, {pipeline_mode = #tpu.pipeline_mode<synchronous>, transform_indices = @transform_22, window_bounds = array<i64: 2, 1, 32>}, {pipeline_mode = #tpu.pipeline_mode<synchronous>, transform_indices = @transform_23, window_bounds = array<i64: 1, 32>}, {pipeline_mode = #tpu.pipeline_mode<synchronous>, transform_indices = @transform_24, window_bounds = array<i64: 1, 32>}, {pipeline_mode = #tpu.pipeline_mode<synchronous>, transform_indices = @transform_25, window_bounds = array<i64: 32, 16>}, {pipeline_mode = #tpu.pipeline_mode<synchronous>, transform_indices = @transform_26, window_bounds = array<i64: 1, 16>}, {transform_indices = @transform_27, window_bounds = array<i64: 1, 1, 16>}]} {
    %c0 = arith.constant 0 : index
    %c0_0 = arith.constant 0 : index
    %c0_1 = arith.constant 0 : index
    %0 = vector.load %arg1[%c0, %c0_0, %c0_1] : memref<1x4x192xf32, #tpu.memory_space<vmem>>, vector<1x4x192xf32>
    %1 = vector.shape_cast %0 : vector<1x4x192xf32> to vector<4x192xf32>
    %c0_2 = arith.constant 0 : index
    %c0_3 = arith.constant 0 : index
    %2 = vector.load %arg2[%c0_2, %c0_3] : memref<192x32xf32, #tpu.memory_space<vmem>>, vector<192x32xf32>
    %cst = arith.constant dense<0.000000e+00> : vector<4x32xf32>
    %3 = tpu.matmul %1, %2, %cst {dimension_numbers = #tpu.dot_dimension_numbers<[1], [0], [0], [1], [0, 0, 1, 1], [], []>} : vector<4x192xf32>, vector<192x32xf32>, vector<4x32xf32> -> vector<4x32xf32>
    %c0_4 = arith.constant 0 : index
    %c0_5 = arith.constant 0 : index
    %4 = vector.load %arg3[%c0_4, %c0_5] : memref<1x32xf32, #tpu.memory_space<vmem>>, vector<1x32xf32>
    %5 = vector.broadcast %4 : vector<1x32xf32> to vector<4x32xf32>
    %6 = arith.addf %3, %5 : vector<4x32xf32>
    %c0_6 = arith.constant 0 : index
    %c0_7 = arith.constant 0 : index
    %7 = vector.load %arg4[%c0_6, %c0_7] : memref<1x32xf32, #tpu.memory_space<vmem>>, vector<1x32xf32>
    %c0_8 = arith.constant 0 : index
    %c0_9 = arith.constant 0 : index
    %8 = vector.load %arg5[%c0_8, %c0_9] : memref<5x32xf32, #tpu.memory_space<vmem>>, vector<1x32xf32>
    %9 = arith.addf %7, %8 : vector<1x32xf32>
    %c0_10 = arith.constant 0 : index
    %c0_11 = arith.constant 0 : index
    %10 = vector.load %arg29[%c0_10, %c0_11] : memref<5x32xf32, #tpu.memory_space<vmem>>, vector<1x32xf32>
    tpu.vector_store %arg29[%c0_10, %c0_11], %9 {strides = array<i32>} : memref<5x32xf32, #tpu.memory_space<vmem>>, vector<1x32xf32>,
    %c1 = arith.constant 1 : index
    %c0_12 = arith.constant 0 : index
    %11 = vector.load %arg5[%c1, %c0_12] : memref<5x32xf32, #tpu.memory_space<vmem>>, vector<4x32xf32>
    %12 = arith.addf %6, %11 : vector<4x32xf32>
    %c1_13 = arith.constant 1 : index
    %c0_14 = arith.constant 0 : index
    %13 = vector.load %arg29[%c1_13, %c0_14] : memref<5x32xf32, #tpu.memory_space<vmem>>, vector<4x32xf32>
    tpu.vector_store %arg29[%c1_13, %c0_14], %12 {strides = array<i32>} : memref<5x32xf32, #tpu.memory_space<vmem>>, vector<4x32xf32>,
    %c0_15 = arith.constant 0 : index
    %c0_16 = arith.constant 0 : index
    %14 = vector.load %arg29[%c0_15, %c0_16] : memref<5x32xf32, #tpu.memory_space<vmem>>, vector<5x32xf32>
    %c0_17 = arith.constant 0 : index
    %c0_18 = arith.constant 0 : index
    %c0_19 = arith.constant 0 : index
    %15 = vector.load %arg6[%c0_17, %c0_18, %c0_19] : memref<2x1x32xf32, #tpu.memory_space<vmem>>, vector<1x1x32xf32>
    %16 = vector.shape_cast %15 : vector<1x1x32xf32> to vector<1x32xf32>
    %c0_20 = arith.constant 0 : index
    %c0_21 = arith.constant 0 : index
    %c0_22 = arith.constant 0 : index
    %17 = vector.load %arg7[%c0_20, %c0_21, %c0_22] : memref<2x1x32xf32, #tpu.memory_space<vmem>>, vector<1x1x32xf32>
    %18 = vector.shape_cast %17 : vector<1x1x32xf32> to vector<1x32xf32>
    %cst_23 = arith.constant dense<0.000000e+00> : vector<5xf32>
    %19 = vector.multi_reduction <add>, %14, %cst_23 [1] : vector<5x32xf32> to vector<5xf32>
    %20 = vector.shape_cast %19 : vector<5xf32> to vector<5x1xf32>
    %cst_24 = arith.constant 3.200000e+01 : f32
    %21 = vector.broadcast %cst_24 : f32 to vector<5x1xf32>
    %22 = arith.divf %20, %21 : vector<5x1xf32>
    %23 = vector.broadcast %22 : vector<5x1xf32> to vector<5x32xf32>
    %24 = arith.subf %14, %23 : vector<5x32xf32>
    %25 = arith.mulf %24, %24 : vector<5x32xf32>
    %cst_25 = arith.constant dense<0.000000e+00> : vector<5xf32>
    %26 = vector.multi_reduction <add>, %25, %cst_25 [1] : vector<5x32xf32> to vector<5xf32>
    %27 = vector.shape_cast %26 : vector<5xf32> to vector<5x1xf32>
    %cst_26 = arith.constant 3.200000e+01 : f32
    %28 = vector.broadcast %cst_26 : f32 to vector<5x1xf32>
    %29 = arith.divf %27, %28 : vector<5x1xf32>
    %30 = vector.broadcast %22 : vector<5x1xf32> to vector<5x32xf32>
    %31 = arith.subf %14, %30 : vector<5x32xf32>
    %cst_27 = arith.constant 9.99999997E-7 : f32
    %32 = vector.broadcast %cst_27 : f32 to vector<5x1xf32>
    %33 = arith.addf %29, %32 : vector<5x1xf32>
    %34 = math.rsqrt %33 : vector<5x1xf32>
    %35 = vector.broadcast %34 : vector<5x1xf32> to vector<5x32xf32>
    %36 = arith.mulf %31, %35 : vector<5x32xf32>
    %37 = vector.broadcast %16 : vector<1x32xf32> to vector<5x32xf32>
    %38 = arith.mulf %36, %37 : vector<5x32xf32>
    %39 = vector.broadcast %18 : vector<1x32xf32> to vector<5x32xf32>
    %40 = arith.addf %38, %39 : vector<5x32xf32>
    %41 = vector.shape_cast %40 : vector<5x32xf32> to vector<1x5x32xf32>
    %42 = vector.broadcast %41 : vector<1x5x32xf32> to vector<4x5x32xf32>
    %c0_28 = arith.constant 0 : index
    %c0_29 = arith.constant 0 : index
    %c0_30 = arith.constant 0 : index
    %c0_31 = arith.constant 0 : index
    %43 = vector.load %arg8[%c0_28, %c0_29, %c0_30, %c0_31] : memref<2x4x32x8xf32, #tpu.memory_space<vmem>>, vector<1x4x32x8xf32>
    %44 = vector.shape_cast %43 : vector<1x4x32x8xf32> to vector<4x32x8xf32>
    "tpu.trace_start"() <{level = 10 : i32, message = "hsd,hde->hse"}> : () -> ()
    %cst_32 = arith.constant dense<0.000000e+00> : vector<4x5x8xf32>
    %45 = tpu.matmul %42, %44, %cst_32 {dimension_numbers = #tpu.dot_dimension_numbers<[2], [1], [1], [2], [0, 0, 0, 1, 1, 2], [0], [0]>} : vector<4x5x32xf32>, vector<4x32x8xf32>, vector<4x5x8xf32> -> vector<4x5x8xf32>
    "tpu.trace_stop"() : () -> ()
    %c0_33 = arith.constant 0 : index
    %c0_34 = arith.constant 0 : index
    %c0_35 = arith.constant 0 : index
    %c0_36 = arith.constant 0 : index
    %46 = vector.load %arg9[%c0_33, %c0_34, %c0_35, %c0_36] : memref<2x4x1x8xf32, #tpu.memory_space<vmem>>, vector<1x4x1x8xf32>
    %47 = vector.shape_cast %46 : vector<1x4x1x8xf32> to vector<4x1x8xf32>
    %48 = vector.broadcast %47 : vector<4x1x8xf32> to vector<4x5x8xf32>
    %49 = arith.addf %45, %48 : vector<4x5x8xf32>
    %c0_37 = arith.constant 0 : index
    %c0_38 = arith.constant 0 : index
    %c0_39 = arith.constant 0 : index
    %c0_40 = arith.constant 0 : index
    %50 = vector.load %arg10[%c0_37, %c0_38, %c0_39, %c0_40] : memref<2x4x32x8xf32, #tpu.memory_space<vmem>>, vector<1x4x32x8xf32>
    %51 = vector.shape_cast %50 : vector<1x4x32x8xf32> to vector<4x32x8xf32>
    "tpu.trace_start"() <{level = 10 : i32, message = "hsd,hde->hse"}> : () -> ()
    %cst_41 = arith.constant dense<0.000000e+00> : vector<4x5x8xf32>
    %52 = tpu.matmul %42, %51, %cst_41 {dimension_numbers = #tpu.dot_dimension_numbers<[2], [1], [1], [2], [0, 0, 0, 1, 1, 2], [0], [0]>} : vector<4x5x32xf32>, vector<4x32x8xf32>, vector<4x5x8xf32> -> vector<4x5x8xf32>
    "tpu.trace_stop"() : () -> ()
    %c0_42 = arith.constant 0 : index
    %c0_43 = arith.constant 0 : index
    %c0_44 = arith.constant 0 : index
    %c0_45 = arith.constant 0 : index
    %53 = vector.load %arg11[%c0_42, %c0_43, %c0_44, %c0_45] : memref<2x4x1x8xf32, #tpu.memory_space<vmem>>, vector<1x4x1x8xf32>
    %54 = vector.shape_cast %53 : vector<1x4x1x8xf32> to vector<4x1x8xf32>
    %55 = vector.broadcast %54 : vector<4x1x8xf32> to vector<4x5x8xf32>
    %56 = arith.addf %52, %55 : vector<4x5x8xf32>
    %c0_46 = arith.constant 0 : index
    %c0_47 = arith.constant 0 : index
    %c0_48 = arith.constant 0 : index
    %c0_49 = arith.constant 0 : index
    %57 = vector.load %arg12[%c0_46, %c0_47, %c0_48, %c0_49] : memref<2x4x32x8xf32, #tpu.memory_space<vmem>>, vector<1x4x32x8xf32>
    %58 = vector.shape_cast %57 : vector<1x4x32x8xf32> to vector<4x32x8xf32>
    "tpu.trace_start"() <{level = 10 : i32, message = "hsd,hde->hse"}> : () -> ()
    %cst_50 = arith.constant dense<0.000000e+00> : vector<4x5x8xf32>
    %59 = tpu.matmul %42, %58, %cst_50 {dimension_numbers = #tpu.dot_dimension_numbers<[2], [1], [1], [2], [0, 0, 0, 1, 1, 2], [0], [0]>} : vector<4x5x32xf32>, vector<4x32x8xf32>, vector<4x5x8xf32> -> vector<4x5x8xf32>
    "tpu.trace_stop"() : () -> ()
    %c0_51 = arith.constant 0 : index
    %c0_52 = arith.constant 0 : index
    %c0_53 = arith.constant 0 : index
    %c0_54 = arith.constant 0 : index
    %60 = vector.load %arg13[%c0_51, %c0_52, %c0_53, %c0_54] : memref<2x4x1x8xf32, #tpu.memory_space<vmem>>, vector<1x4x1x8xf32>
    %61 = vector.shape_cast %60 : vector<1x4x1x8xf32> to vector<4x1x8xf32>
    %62 = vector.broadcast %61 : vector<4x1x8xf32> to vector<4x5x8xf32>
    %63 = arith.addf %59, %62 : vector<4x5x8xf32>
    "tpu.trace_start"() <{level = 10 : i32, message = "hqe,hke->hqk"}> : () -> ()
    %cst_55 = arith.constant dense<0.000000e+00> : vector<4x5x5xf32>
    %64 = tpu.matmul %49, %56, %cst_55 {dimension_numbers = #tpu.dot_dimension_numbers<[2], [2], [1], [1], [0, 0, 0, 1, 1, 1], [0], [0]>} : vector<4x5x8xf32>, vector<4x5x8xf32>, vector<4x5x5xf32> -> vector<4x5x5xf32>
    "tpu.trace_stop"() : () -> ()
    %cst_56 = arith.constant 0.353553385 : f32
    %65 = vector.broadcast %cst_56 : f32 to vector<4x5x5xf32>
    %66 = arith.mulf %64, %65 : vector<4x5x5xf32>
    %cst_57 = arith.constant dense<0xFF800000> : vector<4x5xf32>
    %67 = vector.multi_reduction <maximumf>, %66, %cst_57 [2] : vector<4x5x5xf32> to vector<4x5xf32>
    %68 = vector.shape_cast %67 : vector<4x5xf32> to vector<4x5x1xf32>
    %69 = vector.broadcast %68 : vector<4x5x1xf32> to vector<4x5x5xf32>
    %70 = arith.subf %66, %69 : vector<4x5x5xf32>
    %71 = math.exp %70 : vector<4x5x5xf32>
    %cst_58 = arith.constant dense<0.000000e+00> : vector<4x5xf32>
    %72 = vector.multi_reduction <add>, %71, %cst_58 [2] : vector<4x5x5xf32> to vector<4x5xf32>
    %73 = vector.shape_cast %72 : vector<4x5xf32> to vector<4x5x1xf32>
    %74 = tpu.reciprocal %73 {approx = true} : vector<4x5x1xf32> -> vector<4x5x1xf32>
    %75 = vector.broadcast %74 : vector<4x5x1xf32> to vector<4x5x5xf32>
    %76 = arith.mulf %71, %75 : vector<4x5x5xf32>
    "tpu.trace_start"() <{level = 10 : i32, message = "hqk,hke->hqe"}> : () -> ()
    %cst_59 = arith.constant dense<0.000000e+00> : vector<4x5x8xf32>
    %77 = tpu.matmul %76, %63, %cst_59 {dimension_numbers = #tpu.dot_dimension_numbers<[2], [1], [1], [2], [0, 0, 0, 1, 1, 2], [0], [0]>} : vector<4x5x5xf32>, vector<4x5x8xf32>, vector<4x5x8xf32> -> vector<4x5x8xf32>
    "tpu.trace_stop"() : () -> ()
    %c0_60 = arith.constant 0 : index
    %c0_61 = arith.constant 0 : index
    %c0_62 = arith.constant 0 : index
    %c0_63 = arith.constant 0 : index
    %78 = vector.load %arg14[%c0_60, %c0_61, %c0_62, %c0_63] : memref<2x4x8x32xf32, #tpu.memory_space<vmem>>, vector<1x4x8x32xf32>
    %79 = vector.shape_cast %78 : vector<1x4x8x32xf32> to vector<4x8x32xf32>
    "tpu.trace_start"() <{level = 10 : i32, message = "hse,hed->hsd"}> : () -> ()
    %cst_64 = arith.constant dense<0.000000e+00> : vector<4x5x32xf32>
    %80 = tpu.matmul %77, %79, %cst_64 {dimension_numbers = #tpu.dot_dimension_numbers<[2], [1], [1], [2], [0, 0, 0, 1, 1, 2], [0], [0]>} : vector<4x5x8xf32>, vector<4x8x32xf32>, vector<4x5x32xf32> -> vector<4x5x32xf32>
    "tpu.trace_stop"() : () -> ()
    %cst_65 = arith.constant dense<0.000000e+00> : vector<5x32xf32>
    %81 = vector.multi_reduction <add>, %80, %cst_65 [0] : vector<4x5x32xf32> to vector<5x32xf32>
    %c0_66 = arith.constant 0 : index
    %c0_67 = arith.constant 0 : index
    %c0_68 = arith.constant 0 : index
    %82 = vector.load %arg15[%c0_66, %c0_67, %c0_68] : memref<2x1x32xf32, #tpu.memory_space<vmem>>, vector<1x1x32xf32>
    %83 = vector.shape_cast %82 : vector<1x1x32xf32> to vector<1x32xf32>
    %84 = vector.broadcast %83 : vector<1x32xf32> to vector<5x32xf32>
    %85 = arith.addf %81, %84 : vector<5x32xf32>
    %86 = arith.addf %85, %14 : vector<5x32xf32>
    %c0_69 = arith.constant 0 : index
    %c0_70 = arith.constant 0 : index
    %c0_71 = arith.constant 0 : index
    %87 = vector.load %arg16[%c0_69, %c0_70, %c0_71] : memref<2x1x32xf32, #tpu.memory_space<vmem>>, vector<1x1x32xf32>
    %88 = vector.shape_cast %87 : vector<1x1x32xf32> to vector<1x32xf32>
    %c0_72 = arith.constant 0 : index
    %c0_73 = arith.constant 0 : index
    %c0_74 = arith.constant 0 : index
    %89 = vector.load %arg17[%c0_72, %c0_73, %c0_74] : memref<2x1x32xf32, #tpu.memory_space<vmem>>, vector<1x1x32xf32>
    %90 = vector.shape_cast %89 : vector<1x1x32xf32> to vector<1x32xf32>
    %cst_75 = arith.constant dense<0.000000e+00> : vector<5xf32>
    %91 = vector.multi_reduction <add>, %86, %cst_75 [1] : vector<5x32xf32> to vector<5xf32>
    %92 = vector.shape_cast %91 : vector<5xf32> to vector<5x1xf32>
    %cst_76 = arith.constant 3.200000e+01 : f32
    %93 = vector.broadcast %cst_76 : f32 to vector<5x1xf32>
    %94 = arith.divf %92, %93 : vector<5x1xf32>
    %95 = vector.broadcast %94 : vector<5x1xf32> to vector<5x32xf32>
    %96 = arith.subf %86, %95 : vector<5x32xf32>
    %97 = arith.mulf %96, %96 : vector<5x32xf32>
    %cst_77 = arith.constant dense<0.000000e+00> : vector<5xf32>
    %98 = vector.multi_reduction <add>, %97, %cst_77 [1] : vector<5x32xf32> to vector<5xf32>
    %99 = vector.shape_cast %98 : vector<5xf32> to vector<5x1xf32>
    %cst_78 = arith.constant 3.200000e+01 : f32
    %100 = vector.broadcast %cst_78 : f32 to vector<5x1xf32>
    %101 = arith.divf %99, %100 : vector<5x1xf32>
    %102 = vector.broadcast %94 : vector<5x1xf32> to vector<5x32xf32>
    %103 = arith.subf %86, %102 : vector<5x32xf32>
    %cst_79 = arith.constant 9.99999997E-7 : f32
    %104 = vector.broadcast %cst_79 : f32 to vector<5x1xf32>
    %105 = arith.addf %101, %104 : vector<5x1xf32>
    %106 = math.rsqrt %105 : vector<5x1xf32>
    %107 = vector.broadcast %106 : vector<5x1xf32> to vector<5x32xf32>
    %108 = arith.mulf %103, %107 : vector<5x32xf32>
    %109 = vector.broadcast %88 : vector<1x32xf32> to vector<5x32xf32>
    %110 = arith.mulf %108, %109 : vector<5x32xf32>
    %111 = vector.broadcast %90 : vector<1x32xf32> to vector<5x32xf32>
    %112 = arith.addf %110, %111 : vector<5x32xf32>
    %c0_80 = arith.constant 0 : index
    %c0_81 = arith.constant 0 : index
    %c0_82 = arith.constant 0 : index
    %113 = vector.load %arg18[%c0_80, %c0_81, %c0_82] : memref<2x1x32xf32, #tpu.memory_space<vmem>>, vector<1x1x32xf32>
    %114 = vector.shape_cast %113 : vector<1x1x32xf32> to vector<1x32xf32>
    %c0_83 = arith.constant 0 : index
    %c0_84 = arith.constant 0 : index
    %c0_85 = arith.constant 0 : index
    %115 = vector.load %arg19[%c0_83, %c0_84, %c0_85] : memref<2x1x32xf32, #tpu.memory_space<vmem>>, vector<1x1x32xf32>
    %116 = vector.shape_cast %115 : vector<1x1x32xf32> to vector<1x32xf32>
    %cst_86 = arith.constant dense<0.000000e+00> : vector<5xf32>
    %117 = vector.multi_reduction <add>, %112, %cst_86 [1] : vector<5x32xf32> to vector<5xf32>
    %118 = vector.shape_cast %117 : vector<5xf32> to vector<5x1xf32>
    %cst_87 = arith.constant 3.200000e+01 : f32
    %119 = vector.broadcast %cst_87 : f32 to vector<5x1xf32>
    %120 = arith.divf %118, %119 : vector<5x1xf32>
    %121 = vector.broadcast %120 : vector<5x1xf32> to vector<5x32xf32>
    %122 = arith.subf %112, %121 : vector<5x32xf32>
    %123 = arith.mulf %122, %122 : vector<5x32xf32>
    %cst_88 = arith.constant dense<0.000000e+00> : vector<5xf32>
    %124 = vector.multi_reduction <add>, %123, %cst_88 [1] : vector<5x32xf32> to vector<5xf32>
    %125 = vector.shape_cast %124 : vector<5xf32> to vector<5x1xf32>
    %cst_89 = arith.constant 3.200000e+01 : f32
    %126 = vector.broadcast %cst_89 : f32 to vector<5x1xf32>
    %127 = arith.divf %125, %126 : vector<5x1xf32>
    %128 = vector.broadcast %120 : vector<5x1xf32> to vector<5x32xf32>
    %129 = arith.subf %112, %128 : vector<5x32xf32>
    %cst_90 = arith.constant 9.99999997E-7 : f32
    %130 = vector.broadcast %cst_90 : f32 to vector<5x1xf32>
    %131 = arith.addf %127, %130 : vector<5x1xf32>
    %132 = math.rsqrt %131 : vector<5x1xf32>
    %133 = vector.broadcast %132 : vector<5x1xf32> to vector<5x32xf32>
    %134 = arith.mulf %129, %133 : vector<5x32xf32>
    %135 = vector.broadcast %114 : vector<1x32xf32> to vector<5x32xf32>
    %136 = arith.mulf %134, %135 : vector<5x32xf32>
    %137 = vector.broadcast %116 : vector<1x32xf32> to vector<5x32xf32>
    %138 = arith.addf %136, %137 : vector<5x32xf32>
    %c0_91 = arith.constant 0 : index
    %c0_92 = arith.constant 0 : index
    %c0_93 = arith.constant 0 : index
    %139 = vector.load %arg20[%c0_91, %c0_92, %c0_93] : memref<2x32x64xf32, #tpu.memory_space<vmem>>, vector<1x32x64xf32>
    %140 = vector.shape_cast %139 : vector<1x32x64xf32> to vector<32x64xf32>
    %cst_94 = arith.constant dense<0.000000e+00> : vector<5x64xf32>
    %141 = tpu.matmul %138, %140, %cst_94 {dimension_numbers = #tpu.dot_dimension_numbers<[1], [0], [0], [1], [0, 0, 1, 1], [], []>} : vector<5x32xf32>, vector<32x64xf32>, vector<5x64xf32> -> vector<5x64xf32>
    %c0_95 = arith.constant 0 : index
    %c0_96 = arith.constant 0 : index
    %c0_97 = arith.constant 0 : index
    %142 = vector.load %arg21[%c0_95, %c0_96, %c0_97] : memref<2x1x64xf32, #tpu.memory_space<vmem>>, vector<1x1x64xf32>
    %143 = vector.shape_cast %142 : vector<1x1x64xf32> to vector<1x64xf32>
    %144 = vector.broadcast %143 : vector<1x64xf32> to vector<5x64xf32>
    %145 = arith.addf %141, %144 : vector<5x64xf32>
    %cst_98 = arith.constant 5.000000e-01 : f32
    %146 = vector.broadcast %cst_98 : f32 to vector<5x64xf32>
    %147 = arith.mulf %146, %145 : vector<5x64xf32>
    %cst_99 = arith.constant 4.471500e-02 : f32
    %148 = vector.broadcast %cst_99 : f32 to vector<5x64xf32>
    %149 = arith.mulf %148, %145 : vector<5x64xf32>
    %150 = arith.mulf %149, %145 : vector<5x64xf32>
    %151 = arith.mulf %150, %145 : vector<5x64xf32>
    %152 = arith.addf %145, %151 : vector<5x64xf32>
    %cst_100 = arith.constant 0.797884583 : f32
    %153 = vector.broadcast %cst_100 : f32 to vector<5x64xf32>
    %154 = arith.mulf %153, %152 : vector<5x64xf32>
    %155 = math.tanh %154 : vector<5x64xf32>
    %cst_101 = arith.constant 1.000000e+00 : f32
    %156 = vector.broadcast %cst_101 : f32 to vector<5x64xf32>
    %157 = arith.addf %156, %155 : vector<5x64xf32>
    %158 = arith.mulf %147, %157 : vector<5x64xf32>
    %c0_102 = arith.constant 0 : index
    %c0_103 = arith.constant 0 : index
    %c0_104 = arith.constant 0 : index
    %159 = vector.load %arg22[%c0_102, %c0_103, %c0_104] : memref<2x64x32xf32, #tpu.memory_space<vmem>>, vector<1x64x32xf32>
    %160 = vector.shape_cast %159 : vector<1x64x32xf32> to vector<64x32xf32>
    %cst_105 = arith.constant dense<0.000000e+00> : vector<5x32xf32>
    %161 = tpu.matmul %158, %160, %cst_105 {dimension_numbers = #tpu.dot_dimension_numbers<[1], [0], [0], [1], [0, 0, 1, 1], [], []>} : vector<5x64xf32>, vector<64x32xf32>, vector<5x32xf32> -> vector<5x32xf32>
    %c0_106 = arith.constant 0 : index
    %c0_107 = arith.constant 0 : index
    %c0_108 = arith.constant 0 : index
    %162 = vector.load %arg23[%c0_106, %c0_107, %c0_108] : memref<2x1x32xf32, #tpu.memory_space<vmem>>, vector<1x1x32xf32>
    %163 = vector.shape_cast %162 : vector<1x1x32xf32> to vector<1x32xf32>
    %164 = vector.broadcast %163 : vector<1x32xf32> to vector<5x32xf32>
    %165 = arith.addf %161, %164 : vector<5x32xf32>
    %166 = arith.addf %112, %165 : vector<5x32xf32>
    %c1_109 = arith.constant 1 : index
    %c0_110 = arith.constant 0 : index
    %c0_111 = arith.constant 0 : index
    %167 = vector.load %arg6[%c1_109, %c0_110, %c0_111] : memref<2x1x32xf32, #tpu.memory_space<vmem>>, vector<1x1x32xf32>
    %168 = vector.shape_cast %167 : vector<1x1x32xf32> to vector<1x32xf32>
    %c1_112 = arith.constant 1 : index
    %c0_113 = arith.constant 0 : index
    %c0_114 = arith.constant 0 : index
    %169 = vector.load %arg7[%c1_112, %c0_113, %c0_114] : memref<2x1x32xf32, #tpu.memory_space<vmem>>, vector<1x1x32xf32>
    %170 = vector.shape_cast %169 : vector<1x1x32xf32> to vector<1x32xf32>
    %cst_115 = arith.constant dense<0.000000e+00> : vector<5xf32>
    %171 = vector.multi_reduction <add>, %166, %cst_115 [1] : vector<5x32xf32> to vector<5xf32>
    %172 = vector.shape_cast %171 : vector<5xf32> to vector<5x1xf32>
    %cst_116 = arith.constant 3.200000e+01 : f32
    %173 = vector.broadcast %cst_116 : f32 to vector<5x1xf32>
    %174 = arith.divf %172, %173 : vector<5x1xf32>
    %175 = vector.broadcast %174 : vector<5x1xf32> to vector<5x32xf32>
    %176 = arith.subf %166, %175 : vector<5x32xf32>
    %177 = arith.mulf %176, %176 : vector<5x32xf32>
    %cst_117 = arith.constant dense<0.000000e+00> : vector<5xf32>
    %178 = vector.multi_reduction <add>, %177, %cst_117 [1] : vector<5x32xf32> to vector<5xf32>
    %179 = vector.shape_cast %178 : vector<5xf32> to vector<5x1xf32>
    %cst_118 = arith.constant 3.200000e+01 : f32
    %180 = vector.broadcast %cst_118 : f32 to vector<5x1xf32>
    %181 = arith.divf %179, %180 : vector<5x1xf32>
    %182 = vector.broadcast %174 : vector<5x1xf32> to vector<5x32xf32>
    %183 = arith.subf %166, %182 : vector<5x32xf32>
    %cst_119 = arith.constant 9.99999997E-7 : f32
    %184 = vector.broadcast %cst_119 : f32 to vector<5x1xf32>
    %185 = arith.addf %181, %184 : vector<5x1xf32>
    %186 = math.rsqrt %185 : vector<5x1xf32>
    %187 = vector.broadcast %186 : vector<5x1xf32> to vector<5x32xf32>
    %188 = arith.mulf %183, %187 : vector<5x32xf32>
    %189 = vector.broadcast %168 : vector<1x32xf32> to vector<5x32xf32>
    %190 = arith.mulf %188, %189 : vector<5x32xf32>
    %191 = vector.broadcast %170 : vector<1x32xf32> to vector<5x32xf32>
    %192 = arith.addf %190, %191 : vector<5x32xf32>
    %193 = vector.shape_cast %192 : vector<5x32xf32> to vector<1x5x32xf32>
    %194 = vector.broadcast %193 : vector<1x5x32xf32> to vector<4x5x32xf32>
    %c1_120 = arith.constant 1 : index
    %c0_121 = arith.constant 0 : index
    %c0_122 = arith.constant 0 : index
    %c0_123 = arith.constant 0 : index
    %195 = vector.load %arg8[%c1_120, %c0_121, %c0_122, %c0_123] : memref<2x4x32x8xf32, #tpu.memory_space<vmem>>, vector<1x4x32x8xf32>
    %196 = vector.shape_cast %195 : vector<1x4x32x8xf32> to vector<4x32x8xf32>
    "tpu.trace_start"() <{level = 10 : i32, message = "hsd,hde->hse"}> : () -> ()
    %cst_124 = arith.constant dense<0.000000e+00> : vector<4x5x8xf32>
    %197 = tpu.matmul %194, %196, %cst_124 {dimension_numbers = #tpu.dot_dimension_numbers<[2], [1], [1], [2], [0, 0, 0, 1, 1, 2], [0], [0]>} : vector<4x5x32xf32>, vector<4x32x8xf32>, vector<4x5x8xf32> -> vector<4x5x8xf32>
    "tpu.trace_stop"() : () -> ()
    %c1_125 = arith.constant 1 : index
    %c0_126 = arith.constant 0 : index
    %c0_127 = arith.constant 0 : index
    %c0_128 = arith.constant 0 : index
    %198 = vector.load %arg9[%c1_125, %c0_126, %c0_127, %c0_128] : memref<2x4x1x8xf32, #tpu.memory_space<vmem>>, vector<1x4x1x8xf32>
    %199 = vector.shape_cast %198 : vector<1x4x1x8xf32> to vector<4x1x8xf32>
    %200 = vector.broadcast %199 : vector<4x1x8xf32> to vector<4x5x8xf32>
    %201 = arith.addf %197, %200 : vector<4x5x8xf32>
    %c1_129 = arith.constant 1 : index
    %c0_130 = arith.constant 0 : index
    %c0_131 = arith.constant 0 : index
    %c0_132 = arith.constant 0 : index
    %202 = vector.load %arg10[%c1_129, %c0_130, %c0_131, %c0_132] : memref<2x4x32x8xf32, #tpu.memory_space<vmem>>, vector<1x4x32x8xf32>
    %203 = vector.shape_cast %202 : vector<1x4x32x8xf32> to vector<4x32x8xf32>
    "tpu.trace_start"() <{level = 10 : i32, message = "hsd,hde->hse"}> : () -> ()
    %cst_133 = arith.constant dense<0.000000e+00> : vector<4x5x8xf32>
    %204 = tpu.matmul %194, %203, %cst_133 {dimension_numbers = #tpu.dot_dimension_numbers<[2], [1], [1], [2], [0, 0, 0, 1, 1, 2], [0], [0]>} : vector<4x5x32xf32>, vector<4x32x8xf32>, vector<4x5x8xf32> -> vector<4x5x8xf32>
    "tpu.trace_stop"() : () -> ()
    %c1_134 = arith.constant 1 : index
    %c0_135 = arith.constant 0 : index
    %c0_136 = arith.constant 0 : index
    %c0_137 = arith.constant 0 : index
    %205 = vector.load %arg11[%c1_134, %c0_135, %c0_136, %c0_137] : memref<2x4x1x8xf32, #tpu.memory_space<vmem>>, vector<1x4x1x8xf32>
    %206 = vector.shape_cast %205 : vector<1x4x1x8xf32> to vector<4x1x8xf32>
    %207 = vector.broadcast %206 : vector<4x1x8xf32> to vector<4x5x8xf32>
    %208 = arith.addf %204, %207 : vector<4x5x8xf32>
    %c1_138 = arith.constant 1 : index
    %c0_139 = arith.constant 0 : index
    %c0_140 = arith.constant 0 : index
    %c0_141 = arith.constant 0 : index
    %209 = vector.load %arg12[%c1_138, %c0_139, %c0_140, %c0_141] : memref<2x4x32x8xf32, #tpu.memory_space<vmem>>, vector<1x4x32x8xf32>
    %210 = vector.shape_cast %209 : vector<1x4x32x8xf32> to vector<4x32x8xf32>
    "tpu.trace_start"() <{level = 10 : i32, message = "hsd,hde->hse"}> : () -> ()
    %cst_142 = arith.constant dense<0.000000e+00> : vector<4x5x8xf32>
    %211 = tpu.matmul %194, %210, %cst_142 {dimension_numbers = #tpu.dot_dimension_numbers<[2], [1], [1], [2], [0, 0, 0, 1, 1, 2], [0], [0]>} : vector<4x5x32xf32>, vector<4x32x8xf32>, vector<4x5x8xf32> -> vector<4x5x8xf32>
    "tpu.trace_stop"() : () -> ()
    %c1_143 = arith.constant 1 : index
    %c0_144 = arith.constant 0 : index
    %c0_145 = arith.constant 0 : index
    %c0_146 = arith.constant 0 : index
    %212 = vector.load %arg13[%c1_143, %c0_144, %c0_145, %c0_146] : memref<2x4x1x8xf32, #tpu.memory_space<vmem>>, vector<1x4x1x8xf32>
    %213 = vector.shape_cast %212 : vector<1x4x1x8xf32> to vector<4x1x8xf32>
    %214 = vector.broadcast %213 : vector<4x1x8xf32> to vector<4x5x8xf32>
    %215 = arith.addf %211, %214 : vector<4x5x8xf32>
    "tpu.trace_start"() <{level = 10 : i32, message = "hqe,hke->hqk"}> : () -> ()
    %cst_147 = arith.constant dense<0.000000e+00> : vector<4x5x5xf32>
    %216 = tpu.matmul %201, %208, %cst_147 {dimension_numbers = #tpu.dot_dimension_numbers<[2], [2], [1], [1], [0, 0, 0, 1, 1, 1], [0], [0]>} : vector<4x5x8xf32>, vector<4x5x8xf32>, vector<4x5x5xf32> -> vector<4x5x5xf32>
    "tpu.trace_stop"() : () -> ()
    %cst_148 = arith.constant 0.353553385 : f32
    %217 = vector.broadcast %cst_148 : f32 to vector<4x5x5xf32>
    %218 = arith.mulf %216, %217 : vector<4x5x5xf32>
    %cst_149 = arith.constant dense<0xFF800000> : vector<4x5xf32>
    %219 = vector.multi_reduction <maximumf>, %218, %cst_149 [2] : vector<4x5x5xf32> to vector<4x5xf32>
    %220 = vector.shape_cast %219 : vector<4x5xf32> to vector<4x5x1xf32>
    %221 = vector.broadcast %220 : vector<4x5x1xf32> to vector<4x5x5xf32>
    %222 = arith.subf %218, %221 : vector<4x5x5xf32>
    %223 = math.exp %222 : vector<4x5x5xf32>
    %cst_150 = arith.constant dense<0.000000e+00> : vector<4x5xf32>
    %224 = vector.multi_reduction <add>, %223, %cst_150 [2] : vector<4x5x5xf32> to vector<4x5xf32>
    %225 = vector.shape_cast %224 : vector<4x5xf32> to vector<4x5x1xf32>
    %226 = tpu.reciprocal %225 {approx = true} : vector<4x5x1xf32> -> vector<4x5x1xf32>
    %227 = vector.broadcast %226 : vector<4x5x1xf32> to vector<4x5x5xf32>
    %228 = arith.mulf %223, %227 : vector<4x5x5xf32>
    "tpu.trace_start"() <{level = 10 : i32, message = "hqk,hke->hqe"}> : () -> ()
    %cst_151 = arith.constant dense<0.000000e+00> : vector<4x5x8xf32>
    %229 = tpu.matmul %228, %215, %cst_151 {dimension_numbers = #tpu.dot_dimension_numbers<[2], [1], [1], [2], [0, 0, 0, 1, 1, 2], [0], [0]>} : vector<4x5x5xf32>, vector<4x5x8xf32>, vector<4x5x8xf32> -> vector<4x5x8xf32>
    "tpu.trace_stop"() : () -> ()
    %c1_152 = arith.constant 1 : index
    %c0_153 = arith.constant 0 : index
    %c0_154 = arith.constant 0 : index
    %c0_155 = arith.constant 0 : index
    %230 = vector.load %arg14[%c1_152, %c0_153, %c0_154, %c0_155] : memref<2x4x8x32xf32, #tpu.memory_space<vmem>>, vector<1x4x8x32xf32>
    %231 = vector.shape_cast %230 : vector<1x4x8x32xf32> to vector<4x8x32xf32>
    "tpu.trace_start"() <{level = 10 : i32, message = "hse,hed->hsd"}> : () -> ()
    %cst_156 = arith.constant dense<0.000000e+00> : vector<4x5x32xf32>
    %232 = tpu.matmul %229, %231, %cst_156 {dimension_numbers = #tpu.dot_dimension_numbers<[2], [1], [1], [2], [0, 0, 0, 1, 1, 2], [0], [0]>} : vector<4x5x8xf32>, vector<4x8x32xf32>, vector<4x5x32xf32> -> vector<4x5x32xf32>
    "tpu.trace_stop"() : () -> ()
    %cst_157 = arith.constant dense<0.000000e+00> : vector<5x32xf32>
    %233 = vector.multi_reduction <add>, %232, %cst_157 [0] : vector<4x5x32xf32> to vector<5x32xf32>
    %c1_158 = arith.constant 1 : index
    %c0_159 = arith.constant 0 : index
    %c0_160 = arith.constant 0 : index
    %234 = vector.load %arg15[%c1_158, %c0_159, %c0_160] : memref<2x1x32xf32, #tpu.memory_space<vmem>>, vector<1x1x32xf32>
    %235 = vector.shape_cast %234 : vector<1x1x32xf32> to vector<1x32xf32>
    %236 = vector.broadcast %235 : vector<1x32xf32> to vector<5x32xf32>
    %237 = arith.addf %233, %236 : vector<5x32xf32>
    %238 = arith.addf %237, %166 : vector<5x32xf32>
    %c1_161 = arith.constant 1 : index
    %c0_162 = arith.constant 0 : index
    %c0_163 = arith.constant 0 : index
    %239 = vector.load %arg16[%c1_161, %c0_162, %c0_163] : memref<2x1x32xf32, #tpu.memory_space<vmem>>, vector<1x1x32xf32>
    %240 = vector.shape_cast %239 : vector<1x1x32xf32> to vector<1x32xf32>
    %c1_164 = arith.constant 1 : index
    %c0_165 = arith.constant 0 : index
    %c0_166 = arith.constant 0 : index
    %241 = vector.load %arg17[%c1_164, %c0_165, %c0_166] : memref<2x1x32xf32, #tpu.memory_space<vmem>>, vector<1x1x32xf32>
    %242 = vector.shape_cast %241 : vector<1x1x32xf32> to vector<1x32xf32>
    %cst_167 = arith.constant dense<0.000000e+00> : vector<5xf32>
    %243 = vector.multi_reduction <add>, %238, %cst_167 [1] : vector<5x32xf32> to vector<5xf32>
    %244 = vector.shape_cast %243 : vector<5xf32> to vector<5x1xf32>
    %cst_168 = arith.constant 3.200000e+01 : f32
    %245 = vector.broadcast %cst_168 : f32 to vector<5x1xf32>
    %246 = arith.divf %244, %245 : vector<5x1xf32>
    %247 = vector.broadcast %246 : vector<5x1xf32> to vector<5x32xf32>
    %248 = arith.subf %238, %247 : vector<5x32xf32>
    %249 = arith.mulf %248, %248 : vector<5x32xf32>
    %cst_169 = arith.constant dense<0.000000e+00> : vector<5xf32>
    %250 = vector.multi_reduction <add>, %249, %cst_169 [1] : vector<5x32xf32> to vector<5xf32>
    %251 = vector.shape_cast %250 : vector<5xf32> to vector<5x1xf32>
    %cst_170 = arith.constant 3.200000e+01 : f32
    %252 = vector.broadcast %cst_170 : f32 to vector<5x1xf32>
    %253 = arith.divf %251, %252 : vector<5x1xf32>
    %254 = vector.broadcast %246 : vector<5x1xf32> to vector<5x32xf32>
    %255 = arith.subf %238, %254 : vector<5x32xf32>
    %cst_171 = arith.constant 9.99999997E-7 : f32
    %256 = vector.broadcast %cst_171 : f32 to vector<5x1xf32>
    %257 = arith.addf %253, %256 : vector<5x1xf32>
    %258 = math.rsqrt %257 : vector<5x1xf32>
    %259 = vector.broadcast %258 : vector<5x1xf32> to vector<5x32xf32>
    %260 = arith.mulf %255, %259 : vector<5x32xf32>
    %261 = vector.broadcast %240 : vector<1x32xf32> to vector<5x32xf32>
    %262 = arith.mulf %260, %261 : vector<5x32xf32>
    %263 = vector.broadcast %242 : vector<1x32xf32> to vector<5x32xf32>
    %264 = arith.addf %262, %263 : vector<5x32xf32>
    %c1_172 = arith.constant 1 : index
    %c0_173 = arith.constant 0 : index
    %c0_174 = arith.constant 0 : index
    %265 = vector.load %arg18[%c1_172, %c0_173, %c0_174] : memref<2x1x32xf32, #tpu.memory_space<vmem>>, vector<1x1x32xf32>
    %266 = vector.shape_cast %265 : vector<1x1x32xf32> to vector<1x32xf32>
    %c1_175 = arith.constant 1 : index
    %c0_176 = arith.constant 0 : index
    %c0_177 = arith.constant 0 : index
    %267 = vector.load %arg19[%c1_175, %c0_176, %c0_177] : memref<2x1x32xf32, #tpu.memory_space<vmem>>, vector<1x1x32xf32>
    %268 = vector.shape_cast %267 : vector<1x1x32xf32> to vector<1x32xf32>
    %cst_178 = arith.constant dense<0.000000e+00> : vector<5xf32>
    %269 = vector.multi_reduction <add>, %264, %cst_178 [1] : vector<5x32xf32> to vector<5xf32>
    %270 = vector.shape_cast %269 : vector<5xf32> to vector<5x1xf32>
    %cst_179 = arith.constant 3.200000e+01 : f32
    %271 = vector.broadcast %cst_179 : f32 to vector<5x1xf32>
    %272 = arith.divf %270, %271 : vector<5x1xf32>
    %273 = vector.broadcast %272 : vector<5x1xf32> to vector<5x32xf32>
    %274 = arith.subf %264, %273 : vector<5x32xf32>
    %275 = arith.mulf %274, %274 : vector<5x32xf32>
    %cst_180 = arith.constant dense<0.000000e+00> : vector<5xf32>
    %276 = vector.multi_reduction <add>, %275, %cst_180 [1] : vector<5x32xf32> to vector<5xf32>
    %277 = vector.shape_cast %276 : vector<5xf32> to vector<5x1xf32>
    %cst_181 = arith.constant 3.200000e+01 : f32
    %278 = vector.broadcast %cst_181 : f32 to vector<5x1xf32>
    %279 = arith.divf %277, %278 : vector<5x1xf32>
    %280 = vector.broadcast %272 : vector<5x1xf32> to vector<5x32xf32>
    %281 = arith.subf %264, %280 : vector<5x32xf32>
    %cst_182 = arith.constant 9.99999997E-7 : f32
    %282 = vector.broadcast %cst_182 : f32 to vector<5x1xf32>
    %283 = arith.addf %279, %282 : vector<5x1xf32>
    %284 = math.rsqrt %283 : vector<5x1xf32>
    %285 = vector.broadcast %284 : vector<5x1xf32> to vector<5x32xf32>
    %286 = arith.mulf %281, %285 : vector<5x32xf32>
    %287 = vector.broadcast %266 : vector<1x32xf32> to vector<5x32xf32>
    %288 = arith.mulf %286, %287 : vector<5x32xf32>
    %289 = vector.broadcast %268 : vector<1x32xf32> to vector<5x32xf32>
    %290 = arith.addf %288, %289 : vector<5x32xf32>
    %c1_183 = arith.constant 1 : index
    %c0_184 = arith.constant 0 : index
    %c0_185 = arith.constant 0 : index
    %291 = vector.load %arg20[%c1_183, %c0_184, %c0_185] : memref<2x32x64xf32, #tpu.memory_space<vmem>>, vector<1x32x64xf32>
    %292 = vector.shape_cast %291 : vector<1x32x64xf32> to vector<32x64xf32>
    %cst_186 = arith.constant dense<0.000000e+00> : vector<5x64xf32>
    %293 = tpu.matmul %290, %292, %cst_186 {dimension_numbers = #tpu.dot_dimension_numbers<[1], [0], [0], [1], [0, 0, 1, 1], [], []>} : vector<5x32xf32>, vector<32x64xf32>, vector<5x64xf32> -> vector<5x64xf32>
    %c1_187 = arith.constant 1 : index
    %c0_188 = arith.constant 0 : index
    %c0_189 = arith.constant 0 : index
    %294 = vector.load %arg21[%c1_187, %c0_188, %c0_189] : memref<2x1x64xf32, #tpu.memory_space<vmem>>, vector<1x1x64xf32>
    %295 = vector.shape_cast %294 : vector<1x1x64xf32> to vector<1x64xf32>
    %296 = vector.broadcast %295 : vector<1x64xf32> to vector<5x64xf32>
    %297 = arith.addf %293, %296 : vector<5x64xf32>
    %cst_190 = arith.constant 5.000000e-01 : f32
    %298 = vector.broadcast %cst_190 : f32 to vector<5x64xf32>
    %299 = arith.mulf %298, %297 : vector<5x64xf32>
    %cst_191 = arith.constant 4.471500e-02 : f32
    %300 = vector.broadcast %cst_191 : f32 to vector<5x64xf32>
    %301 = arith.mulf %300, %297 : vector<5x64xf32>
    %302 = arith.mulf %301, %297 : vector<5x64xf32>
    %303 = arith.mulf %302, %297 : vector<5x64xf32>
    %304 = arith.addf %297, %303 : vector<5x64xf32>
    %cst_192 = arith.constant 0.797884583 : f32
    %305 = vector.broadcast %cst_192 : f32 to vector<5x64xf32>
    %306 = arith.mulf %305, %304 : vector<5x64xf32>
    %307 = math.tanh %306 : vector<5x64xf32>
    %cst_193 = arith.constant 1.000000e+00 : f32
    %308 = vector.broadcast %cst_193 : f32 to vector<5x64xf32>
    %309 = arith.addf %308, %307 : vector<5x64xf32>
    %310 = arith.mulf %299, %309 : vector<5x64xf32>
    %c1_194 = arith.constant 1 : index
    %c0_195 = arith.constant 0 : index
    %c0_196 = arith.constant 0 : index
    %311 = vector.load %arg22[%c1_194, %c0_195, %c0_196] : memref<2x64x32xf32, #tpu.memory_space<vmem>>, vector<1x64x32xf32>
    %312 = vector.shape_cast %311 : vector<1x64x32xf32> to vector<64x32xf32>
    %cst_197 = arith.constant dense<0.000000e+00> : vector<5x32xf32>
    %313 = tpu.matmul %310, %312, %cst_197 {dimension_numbers = #tpu.dot_dimension_numbers<[1], [0], [0], [1], [0, 0, 1, 1], [], []>} : vector<5x64xf32>, vector<64x32xf32>, vector<5x32xf32> -> vector<5x32xf32>
    %c1_198 = arith.constant 1 : index
    %c0_199 = arith.constant 0 : index
    %c0_200 = arith.constant 0 : index
    %314 = vector.load %arg23[%c1_198, %c0_199, %c0_200] : memref<2x1x32xf32, #tpu.memory_space<vmem>>, vector<1x1x32xf32>
    %315 = vector.shape_cast %314 : vector<1x1x32xf32> to vector<1x32xf32>
    %316 = vector.broadcast %315 : vector<1x32xf32> to vector<5x32xf32>
    %317 = arith.addf %313, %316 : vector<5x32xf32>
    %318 = arith.addf %264, %317 : vector<5x32xf32>
    %319 = vector.extract_strided_slice %318 {offsets = [0, 0], sizes = [1, 32], strides = [1, 1]} : vector<5x32xf32> to vector<1x32xf32>
    %c0_201 = arith.constant 0 : index
    %c0_202 = arith.constant 0 : index
    %320 = vector.load %arg24[%c0_201, %c0_202] : memref<1x32xf32, #tpu.memory_space<vmem>>, vector<1x32xf32>
    %c0_203 = arith.constant 0 : index
    %c0_204 = arith.constant 0 : index
    %321 = vector.load %arg25[%c0_203, %c0_204] : memref<1x32xf32, #tpu.memory_space<vmem>>, vector<1x32xf32>
    %cst_205 = arith.constant dense<0.000000e+00> : vector<1xf32>
    %322 = vector.multi_reduction <add>, %319, %cst_205 [1] : vector<1x32xf32> to vector<1xf32>
    %323 = vector.shape_cast %322 : vector<1xf32> to vector<1x1xf32>
    %cst_206 = arith.constant 3.200000e+01 : f32
    %324 = vector.broadcast %cst_206 : f32 to vector<1x1xf32>
    %325 = arith.divf %323, %324 : vector<1x1xf32>
    %326 = vector.broadcast %325 : vector<1x1xf32> to vector<1x32xf32>
    %327 = arith.subf %319, %326 : vector<1x32xf32>
    %328 = arith.mulf %327, %327 : vector<1x32xf32>
    %cst_207 = arith.constant dense<0.000000e+00> : vector<1xf32>
    %329 = vector.multi_reduction <add>, %328, %cst_207 [1] : vector<1x32xf32> to vector<1xf32>
    %330 = vector.shape_cast %329 : vector<1xf32> to vector<1x1xf32>
    %cst_208 = arith.constant 3.200000e+01 : f32
    %331 = vector.broadcast %cst_208 : f32 to vector<1x1xf32>
    %332 = arith.divf %330, %331 : vector<1x1xf32>
    %333 = vector.broadcast %325 : vector<1x1xf32> to vector<1x32xf32>
    %334 = arith.subf %319, %333 : vector<1x32xf32>
    %cst_209 = arith.constant 9.99999997E-7 : f32
    %335 = vector.broadcast %cst_209 : f32 to vector<1x1xf32>
    %336 = arith.addf %332, %335 : vector<1x1xf32>
    %337 = math.rsqrt %336 : vector<1x1xf32>
    %338 = vector.broadcast %337 : vector<1x1xf32> to vector<1x32xf32>
    %339 = arith.mulf %334, %338 : vector<1x32xf32>
    %340 = arith.mulf %339, %320 : vector<1x32xf32>
    %341 = arith.addf %340, %321 : vector<1x32xf32>
    %c0_210 = arith.constant 0 : index
    %c0_211 = arith.constant 0 : index
    %342 = vector.load %arg26[%c0_210, %c0_211] : memref<32x16xf32, #tpu.memory_space<vmem>>, vector<32x16xf32>
    %cst_212 = arith.constant dense<0.000000e+00> : vector<1x16xf32>
    %343 = tpu.matmul %341, %342, %cst_212 {dimension_numbers = #tpu.dot_dimension_numbers<[1], [0], [0], [1], [0, 0, 1, 1], [], []>} : vector<1x32xf32>, vector<32x16xf32>, vector<1x16xf32> -> vector<1x16xf32>
    %c0_213 = arith.constant 0 : index
    %c0_214 = arith.constant 0 : index
    %344 = vector.load %arg27[%c0_213, %c0_214] : memref<1x16xf32, #tpu.memory_space<vmem>>, vector<1x16xf32>
    %345 = arith.addf %343, %344 : vector<1x16xf32>
    %c0_215 = arith.constant 0 : index
    %c0_216 = arith.constant 0 : index
    %c0_217 = arith.constant 0 : index
    %346 = vector.load %arg28[%c0_215, %c0_216, %c0_217] : memref<1x1x16xf32, #tpu.memory_space<vmem>>, vector<1x1x16xf32>
    %347 = vector.shape_cast %346 : vector<1x1x16xf32> to vector<1x16xf32>
    %348 = vector.shape_cast %345 : vector<1x16xf32> to vector<1x1x16xf32>
    tpu.vector_store %arg28[%c0_215, %c0_216, %c0_217], %348 {strides = array<i32>} : memref<1x1x16xf32, #tpu.memory_space<vmem>>, vector<1x1x16xf32>,
    return
  }
  func.func @transform_0(%arg0: i32) -> (i32, i32, i32) {
    %c0_i32 = arith.constant 0 : i32
    %c0_i32_0 = arith.constant 0 : i32
    %c0_i32_1 = arith.constant 0 : i32
    return %arg0, %c0_i32, %c0_i32_0 : i32, i32, i32
  }
  func.func @transform_1(%arg0: i32) -> (i32, i32) {
    %c0_i32 = arith.constant 0 : i32
    %c0_i32_0 = arith.constant 0 : i32
    %c0_i32_1 = arith.constant 0 : i32
    return %c0_i32, %c0_i32_0 : i32, i32
  }
  func.func @transform_2(%arg0: i32) -> (i32, i32) {
    %c0_i32 = arith.constant 0 : i32
    %c0_i32_0 = arith.constant 0 : i32
    %c0_i32_1 = arith.constant 0 : i32
    return %c0_i32, %c0_i32_0 : i32, i32
  }
  func.func @transform_3(%arg0: i32) -> (i32, i32) {
    %c0_i32 = arith.constant 0 : i32
    %c0_i32_0 = arith.constant 0 : i32
    %c0_i32_1 = arith.constant 0 : i32
    return %c0_i32, %c0_i32_0 : i32, i32
  }
  func.func @transform_4(%arg0: i32) -> (i32, i32) {
    %c0_i32 = arith.constant 0 : i32
    %c0_i32_0 = arith.constant 0 : i32
    %c0_i32_1 = arith.constant 0 : i32
    return %c0_i32, %c0_i32_0 : i32, i32
  }
  func.func @transform_5(%arg0: i32) -> (i32, i32, i32) {
    %c0_i32 = arith.constant 0 : i32
    %c0_i32_0 = arith.constant 0 : i32
    %c0_i32_1 = arith.constant 0 : i32
    %c0_i32_2 = arith.constant 0 : i32
    return %c0_i32, %c0_i32_0, %c0_i32_1 : i32, i32, i32
  }
  func.func @transform_6(%arg0: i32) -> (i32, i32, i32) {
    %c0_i32 = arith.constant 0 : i32
    %c0_i32_0 = arith.constant 0 : i32
    %c0_i32_1 = arith.constant 0 : i32
    %c0_i32_2 = arith.constant 0 : i32
    return %c0_i32, %c0_i32_0, %c0_i32_1 : i32, i32, i32
  }
  func.func @transform_7(%arg0: i32) -> (i32, i32, i32, i32) {
    %c0_i32 = arith.constant 0 : i32
    %c0_i32_0 = arith.constant 0 : i32
    %c0_i32_1 = arith.constant 0 : i32
    %c0_i32_2 = arith.constant 0 : i32
    %c0_i32_3 = arith.constant 0 : i32
    return %c0_i32, %c0_i32_0, %c0_i32_1, %c0_i32_2 : i32, i32, i32, i32
  }
  func.func @transform_8(%arg0: i32) -> (i32, i32, i32, i32) {
    %c0_i32 = arith.constant 0 : i32
    %c0_i32_0 = arith.constant 0 : i32
    %c0_i32_1 = arith.constant 0 : i32
    %c0_i32_2 = arith.constant 0 : i32
    %c0_i32_3 = arith.constant 0 : i32
    return %c0_i32, %c0_i32_0, %c0_i32_1, %c0_i32_2 : i32, i32, i32, i32
  }
  func.func @transform_9(%arg0: i32) -> (i32, i32, i32, i32) {
    %c0_i32 = arith.constant 0 : i32
    %c0_i32_0 = arith.constant 0 : i32
    %c0_i32_1 = arith.constant 0 : i32
    %c0_i32_2 = arith.constant 0 : i32
    %c0_i32_3 = arith.constant 0 : i32
    return %c0_i32, %c0_i32_0, %c0_i32_1, %c0_i32_2 : i32, i32, i32, i32
  }
  func.func @transform_10(%arg0: i32) -> (i32, i32, i32, i32) {
    %c0_i32 = arith.constant 0 : i32
    %c0_i32_0 = arith.constant 0 : i32
    %c0_i32_1 = arith.constant 0 : i32
    %c0_i32_2 = arith.constant 0 : i32
    %c0_i32_3 = arith.constant 0 : i32
    return %c0_i32, %c0_i32_0, %c0_i32_1, %c0_i32_2 : i32, i32, i32, i32
  }
  func.func @transform_11(%arg0: i32) -> (i32, i32, i32, i32) {
    %c0_i32 = arith.constant 0 : i32
    %c0_i32_0 = arith.constant 0 : i32
    %c0_i32_1 = arith.constant 0 : i32
    %c0_i32_2 = arith.constant 0 : i32
    %c0_i32_3 = arith.constant 0 : i32
    return %c0_i32, %c0_i32_0, %c0_i32_1, %c0_i32_2 : i32, i32, i32, i32
  }
  func.func @transform_12(%arg0: i32) -> (i32, i32, i32, i32) {
    %c0_i32 = arith.constant 0 : i32
    %c0_i32_0 = arith.constant 0 : i32
    %c0_i32_1 = arith.constant 0 : i32
    %c0_i32_2 = arith.constant 0 : i32
    %c0_i32_3 = arith.constant 0 : i32
    return %c0_i32, %c0_i32_0, %c0_i32_1, %c0_i32_2 : i32, i32, i32, i32
  }
  func.func @transform_13(%arg0: i32) -> (i32, i32, i32, i32) {
    %c0_i32 = arith.constant 0 : i32
    %c0_i32_0 = arith.constant 0 : i32
    %c0_i32_1 = arith.constant 0 : i32
    %c0_i32_2 = arith.constant 0 : i32
    %c0_i32_3 = arith.constant 0 : i32
    return %c0_i32, %c0_i32_0, %c0_i32_1, %c0_i32_2 : i32, i32, i32, i32
  }
  func.func @transform_14(%arg0: i32) -> (i32, i32, i32) {
    %c0_i32 = arith.constant 0 : i32
    %c0_i32_0 = arith.constant 0 : i32
    %c0_i32_1 = arith.constant 0 : i32
    %c0_i32_2 = arith.constant 0 : i32
    return %c0_i32, %c0_i32_0, %c0_i32_1 : i32, i32, i32
  }
  func.func @transform_15(%arg0: i32) -> (i32, i32, i32) {
    %c0_i32 = arith.constant 0 : i32
    %c0_i32_0 = arith.constant 0 : i32
    %c0_i32_1 = arith.constant 0 : i32
    %c0_i32_2 = arith.constant 0 : i32
    return %c0_i32, %c0_i32_0, %c0_i32_1 : i32, i32, i32
  }
  func.func @transform_16(%arg0: i32) -> (i32, i32, i32) {
    %c0_i32 = arith.constant 0 : i32
    %c0_i32_0 = arith.constant 0 : i32
    %c0_i32_1 = arith.constant 0 : i32
    %c0_i32_2 = arith.constant 0 : i32
    return %c0_i32, %c0_i32_0, %c0_i32_1 : i32, i32, i32
  }
  func.func @transform_17(%arg0: i32) -> (i32, i32, i32) {
    %c0_i32 = arith.constant 0 : i32
    %c0_i32_0 = arith.constant 0 : i32
    %c0_i32_1 = arith.constant 0 : i32
    %c0_i32_2 = arith.constant 0 : i32
    return %c0_i32, %c0_i32_0, %c0_i32_1 : i32, i32, i32
  }
  func.func @transform_18(%arg0: i32) -> (i32, i32, i32) {
    %c0_i32 = arith.constant 0 : i32
    %c0_i32_0 = arith.constant 0 : i32
    %c0_i32_1 = arith.constant 0 : i32
    %c0_i32_2 = arith.constant 0 : i32
    return %c0_i32, %c0_i32_0, %c0_i32_1 : i32, i32, i32
  }
  func.func @transform_19(%arg0: i32) -> (i32, i32, i32) {
    %c0_i32 = arith.constant 0 : i32
    %c0_i32_0 = arith.constant 0 : i32
    %c0_i32_1 = arith.constant 0 : i32
    %c0_i32_2 = arith.constant 0 : i32
    return %c0_i32, %c0_i32_0, %c0_i32_1 : i32, i32, i32
  }
  func.func @transform_20(%arg0: i32) -> (i32, i32, i32) {
    %c0_i32 = arith.constant 0 : i32
    %c0_i32_0 = arith.constant 0 : i32
    %c0_i32_1 = arith.constant 0 : i32
    %c0_i32_2 = arith.constant 0 : i32
    return %c0_i32, %c0_i32_0, %c0_i32_1 : i32, i32, i32
  }
  func.func @transform_21(%arg0: i32) -> (i32, i32, i32) {
    %c0_i32 = arith.constant 0 : i32
    %c0_i32_0 = arith.constant 0 : i32
    %c0_i32_1 = arith.constant 0 : i32
    %c0_i32_2 = arith.constant 0 : i32
    return %c0_i32, %c0_i32_0, %c0_i32_1 : i32, i32, i32
  }
  func.func @transform_22(%arg0: i32) -> (i32, i32, i32) {
    %c0_i32 = arith.constant 0 : i32
    %c0_i32_0 = arith.constant 0 : i32
    %c0_i32_1 = arith.constant 0 : i32
    %c0_i32_2 = arith.constant 0 : i32
    return %c0_i32, %c0_i32_0, %c0_i32_1 : i32, i32, i32
  }
  func.func @transform_23(%arg0: i32) -> (i32, i32) {
    %c0_i32 = arith.constant 0 : i32
    %c0_i32_0 = arith.constant 0 : i32
    %c0_i32_1 = arith.constant 0 : i32
    return %c0_i32, %c0_i32_0 : i32, i32
  }
  func.func @transform_24(%arg0: i32) -> (i32, i32) {
    %c0_i32 = arith.constant 0 : i32
    %c0_i32_0 = arith.constant 0 : i32
    %c0_i32_1 = arith.constant 0 : i32
    return %c0_i32, %c0_i32_0 : i32, i32
  }
  func.func @transform_25(%arg0: i32) -> (i32, i32) {
    %c0_i32 = arith.constant 0 : i32
    %c0_i32_0 = arith.constant 0 : i32
    %c0_i32_1 = arith.constant 0 : i32
    return %c0_i32, %c0_i32_0 : i32, i32
  }
  func.func @transform_26(%arg0: i32) -> (i32, i32) {
    %c0_i32 = arith.constant 0 : i32
    %c0_i32_0 = arith.constant 0 : i32
    %c0_i32_1 = arith.constant 0 : i32
    return %c0_i32, %c0_i32_0 : i32, i32
  }
  func.func @transform_27(%arg0: i32) -> (i32, i32, i32) {
    %c0_i32 = arith.constant 0 : i32
    %c0_i32_0 = arith.constant 0 : i32
    %c0_i32_1 = arith.constant 0 : i32
    return %arg0, %c0_i32, %c0_i32_0 : i32, i32, i32
  }
}

</mosaic_0001>

<llo_original>
// kernel: tpu_custom_call.1
$region0: #{tpu_custom_call.1}
  #allocation0 [shape = 'u32[]', space=smem, size = 0x4, offset = 0x4, fixed_abs, tag = 'smem constant byte address 0x4 - core index']
  #allocation1 [shape = 'u32[72,128]{1,0:T(1,128)}', space=vmem, size = 0x9000, scoped, tag = 'internal scratch']
  #allocation2 [shape = 'f32[5,32]{1,0:T(8,128)}', space=vmem, size = 0x1000, scoped, tag = 'scratch operand']
  %s0 = inlined_call_operand.vmem [shape: f32[2,4,192], index: 0, kind: input, shape index: {}]
  %s1 = inlined_call_operand.vmem [shape: f32[192,32], index: 1, kind: input, shape index: {}]
  %s2 = inlined_call_operand.vmem [shape: f32[1,32], index: 2, kind: input, shape index: {}]
  %s3 = inlined_call_operand.vmem [shape: f32[1,32], index: 3, kind: input, shape index: {}]
  %s4 = inlined_call_operand.vmem [shape: f32[5,32], index: 4, kind: input, shape index: {}]
  %s5 = inlined_call_operand.vmem [shape: f32[2,1,32], index: 5, kind: input, shape index: {}]
  %s6 = inlined_call_operand.vmem [shape: f32[2,1,32], index: 6, kind: input, shape index: {}]
  %s7 = inlined_call_operand.vmem [shape: f32[2,4,32,8], index: 7, kind: input, shape index: {}]
  %s8 = inlined_call_operand.vmem [shape: f32[2,4,1,8], index: 8, kind: input, shape index: {}]
  %s9 = inlined_call_operand.vmem [shape: f32[2,4,32,8], index: 9, kind: input, shape index: {}]
  %s10 = inlined_call_operand.vmem [shape: f32[2,4,1,8], index: 10, kind: input, shape index: {}]
  %s11 = inlined_call_operand.vmem [shape: f32[2,4,32,8], index: 11, kind: input, shape index: {}]
  %s12 = inlined_call_operand.vmem [shape: f32[2,4,1,8], index: 12, kind: input, shape index: {}]
  %s13 = inlined_call_operand.vmem [shape: f32[2,4,8,32], index: 13, kind: input, shape index: {}]
  %s14 = inlined_call_operand.vmem [shape: f32[2,1,32], index: 14, kind: input, shape index: {}]
  %s15 = inlined_call_operand.vmem [shape: f32[2,1,32], index: 15, kind: input, shape index: {}]
  %s16 = inlined_call_operand.vmem [shape: f32[2,1,32], index: 16, kind: input, shape index: {}]
  %s17 = inlined_call_operand.vmem [shape: f32[2,1,32], index: 17, kind: input, shape index: {}]
  %s18 = inlined_call_operand.vmem [shape: f32[2,1,32], index: 18, kind: input, shape index: {}]
  %s19 = inlined_call_operand.vmem [shape: f32[2,32,64], index: 19, kind: input, shape index: {}]
  %s20 = inlined_call_operand.vmem [shape: f32[2,1,64], index: 20, kind: input, shape index: {}]
  %s21 = inlined_call_operand.vmem [shape: f32[2,64,32], index: 21, kind: input, shape index: {}]
  %s22 = inlined_call_operand.vmem [shape: f32[2,1,32], index: 22, kind: input, shape index: {}]
  %s23 = inlined_call_operand.vmem [shape: f32[1,32], index: 23, kind: input, shape index: {}]
  %s24 = inlined_call_operand.vmem [shape: f32[1,32], index: 24, kind: input, shape index: {}]
  %s25 = inlined_call_operand.vmem [shape: f32[32,16], index: 25, kind: input, shape index: {}]
  %s26 = inlined_call_operand.vmem [shape: f32[1,16], index: 26, kind: input, shape index: {}]
  %s27 = inlined_call_operand.hbm [shape: f32[2,1,16], index: 27, kind: output, shape index: {}]
  %s28 = sld [smem:[#allocation0]]
  $region141: #{tpu_custom_call.1} parent=0
    _
  %s30 = ssub.s32 1, %s28
  %s31 = scalar_select 0, %s30, %s28
  $region1: #{tpu_custom_call.1} parent=0
    #allocation3 [shape = 'u8[1024]{0}', space=vmem, size = 0x400, scoped, tag = 'output window, operand 0']
    #allocation4 [shape = 's32[2]{0}', space=sflag, size = 0x8, scoped, tag = 'scoped memory for tpu_custom_call.1']
    %32 = vsyncpa [#allocation4], 0
    %s33 = scalar_lea.sflag [#allocation4], 1
    %34 = vsyncpa %s33, 0
    loop: start=0, step=1, limit=4
    $region2: #{tpu_custom_call.1} parent=1 // loop_pre_header
      _
    $region3: #{tpu_custom_call.1} parent=1 // loop_header
      %s36 = sphi 0, %s40
      %p37 = scmp.ge.s32.totalorder %s36, 4
      %s46 = sphi 0, %s48
      %s49 = sphi 0, %s46
      %s50 = sphi 0, %s49
      %s66 = sphi 0, %s50
      %s70 = sphi 0, %s70
      %s72 = sphi 0, %s70
      %s73 = sphi 0, %s72
      %s87 = sphi 0, %s73
      %s91 = sphi 0, %s91
      %s93 = sphi 0, %s91
      %s94 = sphi 0, %s93
      %s108 = sphi 0, %s94
      %s112 = sphi 0, %s112
      %s114 = sphi 0, %s112
      %s115 = sphi 0, %s114
      %s129 = sphi 0, %s115
      %s133 = sphi 0, %s133
      %s135 = sphi 0, %s133
      %s136 = sphi 0, %s135
      %s150 = sphi 0, %s136
      %s154 = sphi 0, %s154
      %s156 = sphi 0, %s154
      %s157 = sphi 0, %s156
      %s171 = sphi 0, %s157
      %s175 = sphi 0, %s175
      %s177 = sphi 0, %s175
      %s178 = sphi 0, %s177
      %s192 = sphi 0, %s178
      %s196 = sphi 0, %s196
      %s198 = sphi 0, %s196
      %s199 = sphi 0, %s198
      %s213 = sphi 0, %s199
      %s217 = sphi 0, %s217
      %s219 = sphi 0, %s217
      %s220 = sphi 0, %s219
      %s234 = sphi 0, %s220
      %s238 = sphi 0, %s238
      %s240 = sphi 0, %s238
      %s241 = sphi 0, %s240
      %s255 = sphi 0, %s241
      %s259 = sphi 0, %s259
      %s261 = sphi 0, %s259
      %s262 = sphi 0, %s261
      %s276 = sphi 0, %s262
      %s280 = sphi 0, %s280
      %s282 = sphi 0, %s280
      %s283 = sphi 0, %s282
      %s297 = sphi 0, %s283
      %s301 = sphi 0, %s301
      %s303 = sphi 0, %s301
      %s304 = sphi 0, %s303
      %s318 = sphi 0, %s304
      %s322 = sphi 0, %s322
      %s324 = sphi 0, %s322
      %s325 = sphi 0, %s324
      %s339 = sphi 0, %s325
      %s343 = sphi 0, %s343
      %s345 = sphi 0, %s343
      %s346 = sphi 0, %s345
      %s360 = sphi 0, %s346
      %s364 = sphi 0, %s364
      %s366 = sphi 0, %s364
      %s367 = sphi 0, %s366
      %s381 = sphi 0, %s367
      %s385 = sphi 0, %s385
      %s387 = sphi 0, %s385
      %s388 = sphi 0, %s387
      %s402 = sphi 0, %s388
      %s406 = sphi 0, %s406
      %s408 = sphi 0, %s406
      %s409 = sphi 0, %s408
      %s423 = sphi 0, %s409
      %s427 = sphi 0, %s427
      %s429 = sphi 0, %s427
      %s430 = sphi 0, %s429
      %s444 = sphi 0, %s430
      %s448 = sphi 0, %s448
      %s450 = sphi 0, %s448
      %s451 = sphi 0, %s450
      %s465 = sphi 0, %s451
      %s469 = sphi 0, %s469
      %s471 = sphi 0, %s469
      %s472 = sphi 0, %s471
      %s486 = sphi 0, %s472
      %s490 = sphi 0, %s490
      %s492 = sphi 0, %s490
      %s493 = sphi 0, %s492
      %s507 = sphi 0, %s493
      %s511 = sphi 0, %s511
      %s513 = sphi 0, %s511
      %s514 = sphi 0, %s513
      %s528 = sphi 0, %s514
      %s532 = sphi 0, %s532
      %s534 = sphi 0, %s532
      %s535 = sphi 0, %s534
      %s549 = sphi 0, %s535
      %s553 = sphi 0, %s553
      %s555 = sphi 0, %s553
      %s556 = sphi 0, %s555
      %s570 = sphi 0, %s556
      %s574 = sphi 0, %s574
      %s576 = sphi 0, %s574
      %s577 = sphi 0, %s576
      %s591 = sphi 0, %s577
      %s595 = sphi 0, %s595
      %s597 = sphi 0, %s595
      %s598 = sphi 0, %s597
      %s612 = sphi 0, %s598
      %s618 = sphi 0, %s620
      %s621 = sphi 0, %s618
      %s622 = sphi 0, %s621
      %s638 = sphi 0, %s622
    $region4: #{tpu_custom_call.1} parent=1 // loop_header_branch
      %39 = sbr.rel (%p37) target = $region8
    $region5: #{tpu_custom_call.1} parent=1 // loop_body
      %s41 = ssub.s32 %s36, 1
      %s42 = ssub.s32 %s36, 2
      %s43 = sadd.s32 %s36, 1
      %s44 = ssub.s32 %s36, %s43
      %p45 = scmp.eq.s32.totalorder %s44, 0
      %s47 = sadd.s32 %s46, 1
      %s48 = scalar_select %p45, %s46, %s47
      %p51 = pneg %p45
      %p52 = scmp.eq.s32.totalorder %s36, 1
      %p53 = por %p51, %p52
      %p54 = scmp.ne.s32.totalorder %s46, %s49
      %p55 = scmp.eq.s32.totalorder %s36, 0
      %p56 = por %p54, %p55
      %p57 = scmp.ne.s32.totalorder %s46, %s49
      %p58 = scmp.eq.s32.totalorder %s41, 1
      %p59 = por %p57, %p58
      %p60 = scmp.ne.s32.totalorder %s49, %s50
      %p61 = scmp.eq.s32.totalorder %s41, 0
      %p62 = por %p60, %p61
      %p63 = scmp.ne.s32.totalorder %s49, %s50
      %p64 = scmp.eq.s32.totalorder %s42, 1
      %p65 = por %p63, %p64
      %p67 = scmp.ne.s32.totalorder %s50, %s66
      %p68 = scmp.eq.s32.totalorder %s42, 0
      %p69 = por %p67, %p68
      %s71 = sadd.s32 %s70, 1
      %p74 = scmp.eq.s32.totalorder %s36, 1
      %p75 = scmp.ne.s32.totalorder %s70, %s72
      %p76 = scmp.eq.s32.totalorder %s36, 0
      %p77 = por %p75, %p76
      %p78 = scmp.ne.s32.totalorder %s70, %s72
      %p79 = scmp.eq.s32.totalorder %s41, 1
      %p80 = por %p78, %p79
      %p81 = scmp.ne.s32.totalorder %s72, %s73
      %p82 = scmp.eq.s32.totalorder %s41, 0
      %p83 = por %p81, %p82
      %p84 = scmp.ne.s32.totalorder %s72, %s73
      %p85 = scmp.eq.s32.totalorder %s42, 1
      %p86 = por %p84, %p85
      %p88 = scmp.ne.s32.totalorder %s73, %s87
      %p89 = scmp.eq.s32.totalorder %s42, 0
      %p90 = por %p88, %p89
      %s92 = sadd.s32 %s91, 1
      %p95 = scmp.eq.s32.totalorder %s36, 1
      %p96 = scmp.ne.s32.totalorder %s91, %s93
      %p97 = scmp.eq.s32.totalorder %s36, 0
      %p98 = por %p96, %p97
      %p99 = scmp.ne.s32.totalorder %s91, %s93
      %p100 = scmp.eq.s32.totalorder %s41, 1
      %p101 = por %p99, %p100
      %p102 = scmp.ne.s32.totalorder %s93, %s94
      %p103 = scmp.eq.s32.totalorder %s41, 0
      %p104 = por %p102, %p103
      %p105 = scmp.ne.s32.totalorder %s93, %s94
      %p106 = scmp.eq.s32.totalorder %s42, 1
      %p107 = por %p105, %p106
      %p109 = scmp.ne.s32.totalorder %s94, %s108
      %p110 = scmp.eq.s32.totalorder %s42, 0
      %p111 = por %p109, %p110
      %s113 = sadd.s32 %s112, 1
      %p116 = scmp.eq.s32.totalorder %s36, 1
      %p117 = scmp.ne.s32.totalorder %s112, %s114
      %p118 = scmp.eq.s32.totalorder %s36, 0
      %p119 = por %p117, %p118
      %p120 = scmp.ne.s32.totalorder %s112, %s114
      %p121 = scmp.eq.s32.totalorder %s41, 1
      %p122 = por %p120, %p121
      %p123 = scmp.ne.s32.totalorder %s114, %s115
      %p124 = scmp.eq.s32.totalorder %s41, 0
      %p125 = por %p123, %p124
      %p126 = scmp.ne.s32.totalorder %s114, %s115
      %p127 = scmp.eq.s32.totalorder %s42, 1
      %p128 = por %p126, %p127
      %p130 = scmp.ne.s32.totalorder %s115, %s129
      %p131 = scmp.eq.s32.totalorder %s42, 0
      %p132 = por %p130, %p131
      %s134 = sadd.s32 %s133, 1
      %p137 = scmp.eq.s32.totalorder %s36, 1
      %p138 = scmp.ne.s32.totalorder %s133, %s135
      %p139 = scmp.eq.s32.totalorder %s36, 0
      %p140 = por %p138, %p139
      %p141 = scmp.ne.s32.totalorder %s133, %s135
      %p142 = scmp.eq.s32.totalorder %s41, 1
      %p143 = por %p141, %p142
      %p144 = scmp.ne.s32.totalorder %s135, %s136
      %p145 = scmp.eq.s32.totalorder %s41, 0
      %p146 = por %p144, %p145
      %p147 = scmp.ne.s32.totalorder %s135, %s136
      %p148 = scmp.eq.s32.totalorder %s42, 1
      %p149 = por %p147, %p148
      %p151 = scmp.ne.s32.totalorder %s136, %s150
      %p152 = scmp.eq.s32.totalorder %s42, 0
      %p153 = por %p151, %p152
      %s155 = sadd.s32 %s154, 1
      %p158 = scmp.eq.s32.totalorder %s36, 1
      %p159 = scmp.ne.s32.totalorder %s154, %s156
      %p160 = scmp.eq.s32.totalorder %s36, 0
      %p161 = por %p159, %p160
      %p162 = scmp.ne.s32.totalorder %s154, %s156
      %p163 = scmp.eq.s32.totalorder %s41, 1
      %p164 = por %p162, %p163
      %p165 = scmp.ne.s32.totalorder %s156, %s157
      %p166 = scmp.eq.s32.totalorder %s41, 0
      %p167 = por %p165, %p166
      %p168 = scmp.ne.s32.totalorder %s156, %s157
      %p169 = scmp.eq.s32.totalorder %s42, 1
      %p170 = por %p168, %p169
      %p172 = scmp.ne.s32.totalorder %s157, %s171
      %p173 = scmp.eq.s32.totalorder %s42, 0
      %p174 = por %p172, %p173
      %s176 = sadd.s32 %s175, 1
      %p179 = scmp.eq.s32.totalorder %s36, 1
      %p180 = scmp.ne.s32.totalorder %s175, %s177
      %p181 = scmp.eq.s32.totalorder %s36, 0
      %p182 = por %p180, %p181
      %p183 = scmp.ne.s32.totalorder %s175, %s177
      %p184 = scmp.eq.s32.totalorder %s41, 1
      %p185 = por %p183, %p184
      %p186 = scmp.ne.s32.totalorder %s177, %s178
      %p187 = scmp.eq.s32.totalorder %s41, 0
      %p188 = por %p186, %p187
      %p189 = scmp.ne.s32.totalorder %s177, %s178
      %p190 = scmp.eq.s32.totalorder %s42, 1
      %p191 = por %p189, %p190
      %p193 = scmp.ne.s32.totalorder %s178, %s192
      %p194 = scmp.eq.s32.totalorder %s42, 0
      %p195 = por %p193, %p194
      %s197 = sadd.s32 %s196, 1
      %p200 = scmp.eq.s32.totalorder %s36, 1
      %p201 = scmp.ne.s32.totalorder %s196, %s198
      %p202 = scmp.eq.s32.totalorder %s36, 0
      %p203 = por %p201, %p202
      %p204 = scmp.ne.s32.totalorder %s196, %s198
      %p205 = scmp.eq.s32.totalorder %s41, 1
      %p206 = por %p204, %p205
      %p207 = scmp.ne.s32.totalorder %s198, %s199
      %p208 = scmp.eq.s32.totalorder %s41, 0
      %p209 = por %p207, %p208
      %p210 = scmp.ne.s32.totalorder %s198, %s199
      %p211 = scmp.eq.s32.totalorder %s42, 1
      %p212 = por %p210, %p211
      %p214 = scmp.ne.s32.totalorder %s199, %s213
      %p215 = scmp.eq.s32.totalorder %s42, 0
      %p216 = por %p214, %p215
      %s218 = sadd.s32 %s217, 1
      %p221 = scmp.eq.s32.totalorder %s36, 1
      %p222 = scmp.ne.s32.totalorder %s217, %s219
      %p223 = scmp.eq.s32.totalorder %s36, 0
      %p224 = por %p222, %p223
      %p225 = scmp.ne.s32.totalorder %s217, %s219
      %p226 = scmp.eq.s32.totalorder %s41, 1
      %p227 = por %p225, %p226
      %p228 = scmp.ne.s32.totalorder %s219, %s220
      %p229 = scmp.eq.s32.totalorder %s41, 0
      %p230 = por %p228, %p229
      %p231 = scmp.ne.s32.totalorder %s219, %s220
      %p232 = scmp.eq.s32.totalorder %s42, 1
      %p233 = por %p231, %p232
      %p235 = scmp.ne.s32.totalorder %s220, %s234
      %p236 = scmp.eq.s32.totalorder %s42, 0
      %p237 = por %p235, %p236
      %s239 = sadd.s32 %s238, 1
      %p242 = scmp.eq.s32.totalorder %s36, 1
      %p243 = scmp.ne.s32.totalorder %s238, %s240
      %p244 = scmp.eq.s32.totalorder %s36, 0
      %p245 = por %p243, %p244
      %p246 = scmp.ne.s32.totalorder %s238, %s240
      %p247 = scmp.eq.s32.totalorder %s41, 1
      %p248 = por %p246, %p247
      %p249 = scmp.ne.s32.totalorder %s240, %s241
      %p250 = scmp.eq.s32.totalorder %s41, 0
      %p251 = por %p249, %p250
      %p252 = scmp.ne.s32.totalorder %s240, %s241
      %p253 = scmp.eq.s32.totalorder %s42, 1
      %p254 = por %p252, %p253
      %p256 = scmp.ne.s32.totalorder %s241, %s255
      %p257 = scmp.eq.s32.totalorder %s42, 0
      %p258 = por %p256, %p257
      %s260 = sadd.s32 %s259, 1
      %p263 = scmp.eq.s32.totalorder %s36, 1
      %p264 = scmp.ne.s32.totalorder %s259, %s261
      %p265 = scmp.eq.s32.totalorder %s36, 0
      %p266 = por %p264, %p265
      %p267 = scmp.ne.s32.totalorder %s259, %s261
      %p268 = scmp.eq.s32.totalorder %s41, 1
      %p269 = por %p267, %p268
      %p270 = scmp.ne.s32.totalorder %s261, %s262
      %p271 = scmp.eq.s32.totalorder %s41, 0
      %p272 = por %p270, %p271
      %p273 = scmp.ne.s32.totalorder %s261, %s262
      %p274 = scmp.eq.s32.totalorder %s42, 1
      %p275 = por %p273, %p274
      %p277 = scmp.ne.s32.totalorder %s262, %s276
      %p278 = scmp.eq.s32.totalorder %s42, 0
      %p279 = por %p277, %p278
      %s281 = sadd.s32 %s280, 1
      %p284 = scmp.eq.s32.totalorder %s36, 1
      %p285 = scmp.ne.s32.totalorder %s280, %s282
      %p286 = scmp.eq.s32.totalorder %s36, 0
      %p287 = por %p285, %p286
      %p288 = scmp.ne.s32.totalorder %s280, %s282
      %p289 = scmp.eq.s32.totalorder %s41, 1
      %p290 = por %p288, %p289
      %p291 = scmp.ne.s32.totalorder %s282, %s283
      %p292 = scmp.eq.s32.totalorder %s41, 0
      %p293 = por %p291, %p292
      %p294 = scmp.ne.s32.totalorder %s282, %s283
      %p295 = scmp.eq.s32.totalorder %s42, 1
      %p296 = por %p294, %p295
      %p298 = scmp.ne.s32.totalorder %s283, %s297
      %p299 = scmp.eq.s32.totalorder %s42, 0
      %p300 = por %p298, %p299
      %s302 = sadd.s32 %s301, 1
      %p305 = scmp.eq.s32.totalorder %s36, 1
      %p306 = scmp.ne.s32.totalorder %s301, %s303
      %p307 = scmp.eq.s32.totalorder %s36, 0
      %p308 = por %p306, %p307
      %p309 = scmp.ne.s32.totalorder %s301, %s303
      %p310 = scmp.eq.s32.totalorder %s41, 1
      %p311 = por %p309, %p310
      %p312 = scmp.ne.s32.totalorder %s303, %s304
      %p313 = scmp.eq.s32.totalorder %s41, 0
      %p314 = por %p312, %p313
      %p315 = scmp.ne.s32.totalorder %s303, %s304
      %p316 = scmp.eq.s32.totalorder %s42, 1
      %p317 = por %p315, %p316
      %p319 = scmp.ne.s32.totalorder %s304, %s318
      %p320 = scmp.eq.s32.totalorder %s42, 0
      %p321 = por %p319, %p320
      %s323 = sadd.s32 %s322, 1
      %p326 = scmp.eq.s32.totalorder %s36, 1
      %p327 = scmp.ne.s32.totalorder %s322, %s324
      %p328 = scmp.eq.s32.totalorder %s36, 0
      %p329 = por %p327, %p328
      %p330 = scmp.ne.s32.totalorder %s322, %s324
      %p331 = scmp.eq.s32.totalorder %s41, 1
      %p332 = por %p330, %p331
      %p333 = scmp.ne.s32.totalorder %s324, %s325
      %p334 = scmp.eq.s32.totalorder %s41, 0
      %p335 = por %p333, %p334
      %p336 = scmp.ne.s32.totalorder %s324, %s325
      %p337 = scmp.eq.s32.totalorder %s42, 1
      %p338 = por %p336, %p337
      %p340 = scmp.ne.s32.totalorder %s325, %s339
      %p341 = scmp.eq.s32.totalorder %s42, 0
      %p342 = por %p340, %p341
      %s344 = sadd.s32 %s343, 1
      %p347 = scmp.eq.s32.totalorder %s36, 1
      %p348 = scmp.ne.s32.totalorder %s343, %s345
      %p349 = scmp.eq.s32.totalorder %s36, 0
      %p350 = por %p348, %p349
      %p351 = scmp.ne.s32.totalorder %s343, %s345
      %p352 = scmp.eq.s32.totalorder %s41, 1
      %p353 = por %p351, %p352
      %p354 = scmp.ne.s32.totalorder %s345, %s346
      %p355 = scmp.eq.s32.totalorder %s41, 0
      %p356 = por %p354, %p355
      %p357 = scmp.ne.s32.totalorder %s345, %s346
      %p358 = scmp.eq.s32.totalorder %s42, 1
      %p359 = por %p357, %p358
      %p361 = scmp.ne.s32.totalorder %s346, %s360
      %p362 = scmp.eq.s32.totalorder %s42, 0
      %p363 = por %p361, %p362
      %s365 = sadd.s32 %s364, 1
      %p368 = scmp.eq.s32.totalorder %s36, 1
      %p369 = scmp.ne.s32.totalorder %s364, %s366
      %p370 = scmp.eq.s32.totalorder %s36, 0
      %p371 = por %p369, %p370
      %p372 = scmp.ne.s32.totalorder %s364, %s366
      %p373 = scmp.eq.s32.totalorder %s41, 1
      %p374 = por %p372, %p373
      %p375 = scmp.ne.s32.totalorder %s366, %s367
      %p376 = scmp.eq.s32.totalorder %s41, 0
      %p377 = por %p375, %p376
      %p378 = scmp.ne.s32.totalorder %s366, %s367
      %p379 = scmp.eq.s32.totalorder %s42, 1
      %p380 = por %p378, %p379
      %p382 = scmp.ne.s32.totalorder %s367, %s381
      %p383 = scmp.eq.s32.totalorder %s42, 0
      %p384 = por %p382, %p383
      %s386 = sadd.s32 %s385, 1
      %p389 = scmp.eq.s32.totalorder %s36, 1
      %p390 = scmp.ne.s32.totalorder %s385, %s387
      %p391 = scmp.eq.s32.totalorder %s36, 0
      %p392 = por %p390, %p391
      %p393 = scmp.ne.s32.totalorder %s385, %s387
      %p394 = scmp.eq.s32.totalorder %s41, 1
      %p395 = por %p393, %p394
      %p396 = scmp.ne.s32.totalorder %s387, %s388
      %p397 = scmp.eq.s32.totalorder %s41, 0
      %p398 = por %p396, %p397
      %p399 = scmp.ne.s32.totalorder %s387, %s388
      %p400 = scmp.eq.s32.totalorder %s42, 1
      %p401 = por %p399, %p400
      %p403 = scmp.ne.s32.totalorder %s388, %s402
      %p404 = scmp.eq.s32.totalorder %s42, 0
      %p405 = por %p403, %p404
      %s407 = sadd.s32 %s406, 1
      %p410 = scmp.eq.s32.totalorder %s36, 1
      %p411 = scmp.ne.s32.totalorder %s406, %s408
      %p412 = scmp.eq.s32.totalorder %s36, 0
      %p413 = por %p411, %p412
      %p414 = scmp.ne.s32.totalorder %s406, %s408
      %p415 = scmp.eq.s32.totalorder %s41, 1
      %p416 = por %p414, %p415
      %p417 = scmp.ne.s32.totalorder %s408, %s409
      %p418 = scmp.eq.s32.totalorder %s41, 0
      %p419 = por %p417, %p418
      %p420 = scmp.ne.s32.totalorder %s408, %s409
      %p421 = scmp.eq.s32.totalorder %s42, 1
      %p422 = por %p420, %p421
      %p424 = scmp.ne.s32.totalorder %s409, %s423
      %p425 = scmp.eq.s32.totalorder %s42, 0
      %p426 = por %p424, %p425
      %s428 = sadd.s32 %s427, 1
      %p431 = scmp.eq.s32.totalorder %s36, 1
      %p432 = scmp.ne.s32.totalorder %s427, %s429
      %p433 = scmp.eq.s32.totalorder %s36, 0
      %p434 = por %p432, %p433
      %p435 = scmp.ne.s32.totalorder %s427, %s429
      %p436 = scmp.eq.s32.totalorder %s41, 1
      %p437 = por %p435, %p436
      %p438 = scmp.ne.s32.totalorder %s429, %s430
      %p439 = scmp.eq.s32.totalorder %s41, 0
      %p440 = por %p438, %p439
      %p441 = scmp.ne.s32.totalorder %s429, %s430
      %p442 = scmp.eq.s32.totalorder %s42, 1
      %p443 = por %p441, %p442
      %p445 = scmp.ne.s32.totalorder %s430, %s444
      %p446 = scmp.eq.s32.totalorder %s42, 0
      %p447 = por %p445, %p446
      %s449 = sadd.s32 %s448, 1
      %p452 = scmp.eq.s32.totalorder %s36, 1
      %p453 = scmp.ne.s32.totalorder %s448, %s450
      %p454 = scmp.eq.s32.totalorder %s36, 0
      %p455 = por %p453, %p454
      %p456 = scmp.ne.s32.totalorder %s448, %s450
      %p457 = scmp.eq.s32.totalorder %s41, 1
      %p458 = por %p456, %p457
      %p459 = scmp.ne.s32.totalorder %s450, %s451
      %p460 = scmp.eq.s32.totalorder %s41, 0
      %p461 = por %p459, %p460
      %p462 = scmp.ne.s32.totalorder %s450, %s451
      %p463 = scmp.eq.s32.totalorder %s42, 1
      %p464 = por %p462, %p463
      %p466 = scmp.ne.s32.totalorder %s451, %s465
      %p467 = scmp.eq.s32.totalorder %s42, 0
      %p468 = por %p466, %p467
      %s470 = sadd.s32 %s469, 1
      %p473 = scmp.eq.s32.totalorder %s36, 1
      %p474 = scmp.ne.s32.totalorder %s469, %s471
      %p475 = scmp.eq.s32.totalorder %s36, 0
      %p476 = por %p474, %p475
      %p477 = scmp.ne.s32.totalorder %s469, %s471
      %p478 = scmp.eq.s32.totalorder %s41, 1
      %p479 = por %p477, %p478
      %p480 = scmp.ne.s32.totalorder %s471, %s472
      %p481 = scmp.eq.s32.totalorder %s41, 0
      %p482 = por %p480, %p481
      %p483 = scmp.ne.s32.totalorder %s471, %s472
      %p484 = scmp.eq.s32.totalorder %s42, 1
      %p485 = por %p483, %p484
      %p487 = scmp.ne.s32.totalorder %s472, %s486
      %p488 = scmp.eq.s32.totalorder %s42, 0
      %p489 = por %p487, %p488
      %s491 = sadd.s32 %s490, 1
      %p494 = scmp.eq.s32.totalorder %s36, 1
      %p495 = scmp.ne.s32.totalorder %s490, %s492
      %p496 = scmp.eq.s32.totalorder %s36, 0
      %p497 = por %p495, %p496
      %p498 = scmp.ne.s32.totalorder %s490, %s492
      %p499 = scmp.eq.s32.totalorder %s41, 1
      %p500 = por %p498, %p499
      %p501 = scmp.ne.s32.totalorder %s492, %s493
      %p502 = scmp.eq.s32.totalorder %s41, 0
      %p503 = por %p501, %p502
      %p504 = scmp.ne.s32.totalorder %s492, %s493
      %p505 = scmp.eq.s32.totalorder %s42, 1
      %p506 = por %p504, %p505
      %p508 = scmp.ne.s32.totalorder %s493, %s507
      %p509 = scmp.eq.s32.totalorder %s42, 0
      %p510 = por %p508, %p509
      %s512 = sadd.s32 %s511, 1
      %p515 = scmp.eq.s32.totalorder %s36, 1
      %p516 = scmp.ne.s32.totalorder %s511, %s513
      %p517 = scmp.eq.s32.totalorder %s36, 0
      %p518 = por %p516, %p517
      %p519 = scmp.ne.s32.totalorder %s511, %s513
      %p520 = scmp.eq.s32.totalorder %s41, 1
      %p521 = por %p519, %p520
      %p522 = scmp.ne.s32.totalorder %s513, %s514
      %p523 = scmp.eq.s32.totalorder %s41, 0
      %p524 = por %p522, %p523
      %p525 = scmp.ne.s32.totalorder %s513, %s514
      %p526 = scmp.eq.s32.totalorder %s42, 1
      %p527 = por %p525, %p526
      %p529 = scmp.ne.s32.totalorder %s514, %s528
      %p530 = scmp.eq.s32.totalorder %s42, 0
      %p531 = por %p529, %p530
      %s533 = sadd.s32 %s532, 1
      %p536 = scmp.eq.s32.totalorder %s36, 1
      %p537 = scmp.ne.s32.totalorder %s532, %s534
      %p538 = scmp.eq.s32.totalorder %s36, 0
      %p539 = por %p537, %p538
      %p540 = scmp.ne.s32.totalorder %s532, %s534
      %p541 = scmp.eq.s32.totalorder %s41, 1
      %p542 = por %p540, %p541
      %p543 = scmp.ne.s32.totalorder %s534, %s535
      %p544 = scmp.eq.s32.totalorder %s41, 0
      %p545 = por %p543, %p544
      %p546 = scmp.ne.s32.totalorder %s534, %s535
      %p547 = scmp.eq.s32.totalorder %s42, 1
      %p548 = por %p546, %p547
      %p550 = scmp.ne.s32.totalorder %s535, %s549
      %p551 = scmp.eq.s32.totalorder %s42, 0
      %p552 = por %p550, %p551
      %s554 = sadd.s32 %s553, 1
      %p557 = scmp.eq.s32.totalorder %s36, 1
      %p558 = scmp.ne.s32.totalorder %s553, %s555
      %p559 = scmp.eq.s32.totalorder %s36, 0
      %p560 = por %p558, %p559
      %p561 = scmp.ne.s32.totalorder %s553, %s555
      %p562 = scmp.eq.s32.totalorder %s41, 1
      %p563 = por %p561, %p562
      %p564 = scmp.ne.s32.totalorder %s555, %s556
      %p565 = scmp.eq.s32.totalorder %s41, 0
      %p566 = por %p564, %p565
      %p567 = scmp.ne.s32.totalorder %s555, %s556
      %p568 = scmp.eq.s32.totalorder %s42, 1
      %p569 = por %p567, %p568
      %p571 = scmp.ne.s32.totalorder %s556, %s570
      %p572 = scmp.eq.s32.totalorder %s42, 0
      %p573 = por %p571, %p572
      %s575 = sadd.s32 %s574, 1
      %p578 = scmp.eq.s32.totalorder %s36, 1
      %p579 = scmp.ne.s32.totalorder %s574, %s576
      %p580 = scmp.eq.s32.totalorder %s36, 0
      %p581 = por %p579, %p580
      %p582 = scmp.ne.s32.totalorder %s574, %s576
      %p583 = scmp.eq.s32.totalorder %s41, 1
      %p584 = por %p582, %p583
      %p585 = scmp.ne.s32.totalorder %s576, %s577
      %p586 = scmp.eq.s32.totalorder %s41, 0
      %p587 = por %p585, %p586
      %p588 = scmp.ne.s32.totalorder %s576, %s577
      %p589 = scmp.eq.s32.totalorder %s42, 1
      %p590 = por %p588, %p589
      %p592 = scmp.ne.s32.totalorder %s577, %s591
      %p593 = scmp.eq.s32.totalorder %s42, 0
      %p594 = por %p592, %p593
      %s596 = sadd.s32 %s595, 1
      %p599 = scmp.eq.s32.totalorder %s36, 1
      %p600 = scmp.ne.s32.totalorder %s595, %s597
      %p601 = scmp.eq.s32.totalorder %s36, 0
      %p602 = por %p600, %p601
      %p603 = scmp.ne.s32.totalorder %s595, %s597
      %p604 = scmp.eq.s32.totalorder %s41, 1
      %p605 = por %p603, %p604
      %p606 = scmp.ne.s32.totalorder %s597, %s598
      %p607 = scmp.eq.s32.totalorder %s41, 0
      %p608 = por %p606, %p607
      %p609 = scmp.ne.s32.totalorder %s597, %s598
      %p610 = scmp.eq.s32.totalorder %s42, 1
      %p611 = por %p609, %p610
      %p613 = scmp.ne.s32.totalorder %s598, %s612
      %p614 = scmp.eq.s32.totalorder %s42, 0
      %p615 = por %p613, %p614
      %s616 = ssub.s32 %s36, %s43
      %p617 = scmp.eq.s32.totalorder %s616, 0
      %s619 = sadd.s32 %s618, 1
      %s620 = scalar_select %p617, %s618, %s619
      %p623 = pneg %p617
      %p624 = scmp.eq.s32.totalorder %s36, 1
      %p625 = por %p623, %p624
      %p626 = scmp.ne.s32.totalorder %s618, %s621
      %p627 = scmp.eq.s32.totalorder %s36, 0
      %p628 = por %p626, %p627
      %p629 = scmp.ne.s32.totalorder %s618, %s621
      %p630 = scmp.eq.s32.totalorder %s41, 1
      %p631 = por %p629, %p630
      %p632 = scmp.ne.s32.totalorder %s621, %s622
      %p633 = scmp.eq.s32.totalorder %s41, 0
      %p634 = por %p632, %p633
      %p635 = scmp.ne.s32.totalorder %s621, %s622
      %p636 = scmp.eq.s32.totalorder %s42, 1
      %p637 = por %p635, %p636
      %p639 = scmp.ne.s32.totalorder %s622, %s638
      %p640 = scmp.eq.s32.totalorder %s42, 0
      %p641 = por %p639, %p640
      %p642 = scmp.le.s32.totalorder 1, %s36
      %p643 = scmp.lt.s32.totalorder %s36, 3
      %p644 = pnand %p642, %p643
      %p645 = pneg %p644
      // Predicated region
      $region9: #{tpu_custom_call.1} parent=5 // pred_check
        _
      $region10: #{tpu_custom_call.1} parent=5 // pred_check_branch
        %647 = sbr.rel (%p644) target = $region12
      $region11: #{tpu_custom_call.1} parent=5 // pred_region
        %s648 = ssub.s32 %s36, 1
        // Predicated region
        $region13: #{tpu_custom_call.1} parent=11 // pred_check
          %p649 = pneg %p83
        $region14: #{tpu_custom_call.1} parent=11 // pred_check_branch
          %651 = sbr.rel (%p649) target = $region16
        $region15: #{tpu_custom_call.1} parent=11 // pred_region
          _
        $region16: #{tpu_custom_call.1} parent=11 // pred_fallthru
          _
        // Predicated region
        $region17: #{tpu_custom_call.1} parent=11 // pred_check
          %p652 = pneg %p104
        $region18: #{tpu_custom_call.1} parent=11 // pred_check_branch
          %654 = sbr.rel (%p652) target = $region20
        $region19: #{tpu_custom_call.1} parent=11 // pred_region
          _
        $region20: #{tpu_custom_call.1} parent=11 // pred_fallthru
          _
        // Predicated region
        $region21: #{tpu_custom_call.1} parent=11 // pred_check
          %p655 = pneg %p125
        $region22: #{tpu_custom_call.1} parent=11 // pred_check_branch
          %657 = sbr.rel (%p655) target = $region24
        $region23: #{tpu_custom_call.1} parent=11 // pred_region
          _
        $region24: #{tpu_custom_call.1} parent=11 // pred_fallthru
          _
        // Predicated region
        $region25: #{tpu_custom_call.1} parent=11 // pred_check
          %p658 = pneg %p146
        $region26: #{tpu_custom_call.1} parent=11 // pred_check_branch
          %660 = sbr.rel (%p658) target = $region28
        $region27: #{tpu_custom_call.1} parent=11 // pred_region
          _
        $region28: #{tpu_custom_call.1} parent=11 // pred_fallthru
          _
        // Predicated region
        $region29: #{tpu_custom_call.1} parent=11 // pred_check
          %p661 = pneg %p167
        $region30: #{tpu_custom_call.1} parent=11 // pred_check_branch
          %663 = sbr.rel (%p661) target = $region32
        $region31: #{tpu_custom_call.1} parent=11 // pred_region
          _
        $region32: #{tpu_custom_call.1} parent=11 // pred_fallthru
          _
        // Predicated region
        $region33: #{tpu_custom_call.1} parent=11 // pred_check
          %p664 = pneg %p188
        $region34: #{tpu_custom_call.1} parent=11 // pred_check_branch
          %666 = sbr.rel (%p664) target = $region36
        $region35: #{tpu_custom_call.1} parent=11 // pred_region
          _
        $region36: #{tpu_custom_call.1} parent=11 // pred_fallthru
          _
        // Predicated region
        $region37: #{tpu_custom_call.1} parent=11 // pred_check
          %p667 = pneg %p209
        $region38: #{tpu_custom_call.1} parent=11 // pred_check_branch
          %669 = sbr.rel (%p667) target = $region40
        $region39: #{tpu_custom_call.1} parent=11 // pred_region
          _
        $region40: #{tpu_custom_call.1} parent=11 // pred_fallthru
          _
        // Predicated region
        $region41: #{tpu_custom_call.1} parent=11 // pred_check
          %p670 = pneg %p230
        $region42: #{tpu_custom_call.1} parent=11 // pred_check_branch
          %672 = sbr.rel (%p670) target = $region44
        $region43: #{tpu_custom_call.1} parent=11 // pred_region
          _
        $region44: #{tpu_custom_call.1} parent=11 // pred_fallthru
          _
        // Predicated region
        $region45: #{tpu_custom_call.1} parent=11 // pred_check
          %p673 = pneg %p251
        $region46: #{tpu_custom_call.1} parent=11 // pred_check_branch
          %675 = sbr.rel (%p673) target = $region48
        $region47: #{tpu_custom_call.1} parent=11 // pred_region
          _
        $region48: #{tpu_custom_call.1} parent=11 // pred_fallthru
          _
        // Predicated region
        $region49: #{tpu_custom_call.1} parent=11 // pred_check
          %p676 = pneg %p272
        $region50: #{tpu_custom_call.1} parent=11 // pred_check_branch
          %678 = sbr.rel (%p676) target = $region52
        $region51: #{tpu_custom_call.1} parent=11 // pred_region
          _
        $region52: #{tpu_custom_call.1} parent=11 // pred_fallthru
          _
        // Predicated region
        $region53: #{tpu_custom_call.1} parent=11 // pred_check
          %p679 = pneg %p293
        $region54: #{tpu_custom_call.1} parent=11 // pred_check_branch
          %681 = sbr.rel (%p679) target = $region56
        $region55: #{tpu_custom_call.1} parent=11 // pred_region
          _
        $region56: #{tpu_custom_call.1} parent=11 // pred_fallthru
          _
        // Predicated region
        $region57: #{tpu_custom_call.1} parent=11 // pred_check
          %p682 = pneg %p314
        $region58: #{tpu_custom_call.1} parent=11 // pred_check_branch
          %684 = sbr.rel (%p682) target = $region60
        $region59: #{tpu_custom_call.1} parent=11 // pred_region
          _
        $region60: #{tpu_custom_call.1} parent=11 // pred_fallthru
          _
        // Predicated region
        $region61: #{tpu_custom_call.1} parent=11 // pred_check
          %p685 = pneg %p335
        $region62: #{tpu_custom_call.1} parent=11 // pred_check_branch
          %687 = sbr.rel (%p685) target = $region64
        $region63: #{tpu_custom_call.1} parent=11 // pred_region
          _
        $region64: #{tpu_custom_call.1} parent=11 // pred_fallthru
          _
        // Predicated region
        $region65: #{tpu_custom_call.1} parent=11 // pred_check
          %p688 = pneg %p356
        $region66: #{tpu_custom_call.1} parent=11 // pred_check_branch
          %690 = sbr.rel (%p688) target = $region68
        $region67: #{tpu_custom_call.1} parent=11 // pred_region
          _
        $region68: #{tpu_custom_call.1} parent=11 // pred_fallthru
          _
        // Predicated region
        $region69: #{tpu_custom_call.1} parent=11 // pred_check
          %p691 = pneg %p377
        $region70: #{tpu_custom_call.1} parent=11 // pred_check_branch
          %693 = sbr.rel (%p691) target = $region72
        $region71: #{tpu_custom_call.1} parent=11 // pred_region
          _
        $region72: #{tpu_custom_call.1} parent=11 // pred_fallthru
          _
        // Predicated region
        $region73: #{tpu_custom_call.1} parent=11 // pred_check
          %p694 = pneg %p398
        $region74: #{tpu_custom_call.1} parent=11 // pred_check_branch
          %696 = sbr.rel (%p694) target = $region76
        $region75: #{tpu_custom_call.1} parent=11 // pred_region
          _
        $region76: #{tpu_custom_call.1} parent=11 // pred_fallthru
          _
        // Predicated region
        $region77: #{tpu_custom_call.1} parent=11 // pred_check
          %p697 = pneg %p419
        $region78: #{tpu_custom_call.1} parent=11 // pred_check_branch
          %699 = sbr.rel (%p697) target = $region80
        $region79: #{tpu_custom_call.1} parent=11 // pred_region
          _
        $region80: #{tpu_custom_call.1} parent=11 // pred_fallthru
          _
        // Predicated region
        $region81: #{tpu_custom_call.1} parent=11 // pred_check
          %p700 = pneg %p440
        $region82: #{tpu_custom_call.1} parent=11 // pred_check_branch
          %702 = sbr.rel (%p700) target = $region84
        $region83: #{tpu_custom_call.1} parent=11 // pred_region
          _
        $region84: #{tpu_custom_call.1} parent=11 // pred_fallthru
          _
        // Predicated region
        $region85: #{tpu_custom_call.1} parent=11 // pred_check
          %p703 = pneg %p461
        $region86: #{tpu_custom_call.1} parent=11 // pred_check_branch
          %705 = sbr.rel (%p703) target = $region88
        $region87: #{tpu_custom_call.1} parent=11 // pred_region
          _
        $region88: #{tpu_custom_call.1} parent=11 // pred_fallthru
          _
        // Predicated region
        $region89: #{tpu_custom_call.1} parent=11 // pred_check
          %p706 = pneg %p482
        $region90: #{tpu_custom_call.1} parent=11 // pred_check_branch
          %708 = sbr.rel (%p706) target = $region92
        $region91: #{tpu_custom_call.1} parent=11 // pred_region
          _
        $region92: #{tpu_custom_call.1} parent=11 // pred_fallthru
          _
        // Predicated region
        $region93: #{tpu_custom_call.1} parent=11 // pred_check
          %p709 = pneg %p503
        $region94: #{tpu_custom_call.1} parent=11 // pred_check_branch
          %711 = sbr.rel (%p709) target = $region96
        $region95: #{tpu_custom_call.1} parent=11 // pred_region
          _
        $region96: #{tpu_custom_call.1} parent=11 // pred_fallthru
          _
        // Predicated region
        $region97: #{tpu_custom_call.1} parent=11 // pred_check
          %p712 = pneg %p524
        $region98: #{tpu_custom_call.1} parent=11 // pred_check_branch
          %714 = sbr.rel (%p712) target = $region100
        $region99: #{tpu_custom_call.1} parent=11 // pred_region
          _
        $region100: #{tpu_custom_call.1} parent=11 // pred_fallthru
          _
        // Predicated region
        $region101: #{tpu_custom_call.1} parent=11 // pred_check
          %p715 = pneg %p545
        $region102: #{tpu_custom_call.1} parent=11 // pred_check_branch
          %717 = sbr.rel (%p715) target = $region104
        $region103: #{tpu_custom_call.1} parent=11 // pred_region
          _
        $region104: #{tpu_custom_call.1} parent=11 // pred_fallthru
          _
        // Predicated region
        $region105: #{tpu_custom_call.1} parent=11 // pred_check
          %p718 = pneg %p566
        $region106: #{tpu_custom_call.1} parent=11 // pred_check_branch
          %720 = sbr.rel (%p718) target = $region108
        $region107: #{tpu_custom_call.1} parent=11 // pred_region
          _
        $region108: #{tpu_custom_call.1} parent=11 // pred_fallthru
          _
        // Predicated region
        $region109: #{tpu_custom_call.1} parent=11 // pred_check
          %p721 = pneg %p587
        $region110: #{tpu_custom_call.1} parent=11 // pred_check_branch
          %723 = sbr.rel (%p721) target = $region112
        $region111: #{tpu_custom_call.1} parent=11 // pred_region
          _
        $region112: #{tpu_custom_call.1} parent=11 // pred_fallthru
          _
        // Predicated region
        $region113: #{tpu_custom_call.1} parent=11 // pred_check
          %p724 = pneg %p608
        $region114: #{tpu_custom_call.1} parent=11 // pred_check_branch
          %726 = sbr.rel (%p724) target = $region116
        $region115: #{tpu_custom_call.1} parent=11 // pred_region
          _
        $region116: #{tpu_custom_call.1} parent=11 // pred_fallthru
          _
      $region12: #{tpu_custom_call.1} parent=5 // pred_fallthru
        _
      %p727 = scmp.lt.s32.totalorder %s36, 2
      // Predicated region
      $region117: #{tpu_custom_call.1} parent=5 // pred_check
        %p728 = pneg %p727
      $region118: #{tpu_custom_call.1} parent=5 // pred_check_branch
        %730 = sbr.rel (%p728) target = $region120
      $region119: #{tpu_custom_call.1} parent=5 // pred_region
        // Predicated region
        $region121: #{tpu_custom_call.1} parent=119 // pred_check
          %p731 = pneg %p56
        $region122: #{tpu_custom_call.1} parent=119 // pred_check_branch
          %733 = sbr.rel (%p731) target = $region124
        $region123: #{tpu_custom_call.1} parent=119 // pred_region
          %p734 = scmp.lt.s32.totalorder %s36, 1
          %s735 = scalar_select %p734, %s36, 1
          %s736 = smul.addr %s735, 2
          %s737 = smul.addr %s736, 4
          %s738 = scalar_lea.vmem %s0, %s737
        $region124: #{tpu_custom_call.1} parent=119 // pred_fallthru
          _
      $region120: #{tpu_custom_call.1} parent=5 // pred_fallthru
        _
      %p739 = scmp.le.s32.totalorder 1, %s36
      %p740 = scmp.lt.s32.totalorder %s36, 3
      %p741 = pnand %p739, %p740
      %p742 = pneg %p741
      // Predicated region
      $region125: #{tpu_custom_call.1} parent=5 // pred_check
        _
      $region126: #{tpu_custom_call.1} parent=5 // pred_check_branch
        %744 = sbr.rel (%p741) target = $region128
      $region127: #{tpu_custom_call.1} parent=5 // pred_region
        %s745 = ssub.s32 %s36, 1
        %p746 = scmp.lt.s32.totalorder %s41, 1
        %s747 = scalar_select %p746, %s41, 1
        %s748 = smul.addr %s747, 2
        %s749 = smul.addr %s748, 4
        %s750 = scalar_lea.vmem %s0, %s749
        %p751 = pneg %p62
        %p752 = pneg %p59
        %p753 = pneg %p83
        %p754 = pneg %p80
        %p755 = pneg %p104
        %p756 = pneg %p101
        %p757 = pneg %p125
        %p758 = pneg %p122
        %p759 = pneg %p146
        %p760 = pneg %p143
        %p761 = pneg %p167
        %p762 = pneg %p164
        %p763 = pneg %p188
        %p764 = pneg %p185
        %p765 = pneg %p209
        %p766 = pneg %p206
        %p767 = pneg %p230
        %p768 = pneg %p227
        %p769 = pneg %p251
        %p770 = pneg %p248
        %p771 = pneg %p272
        %p772 = pneg %p269
        %p773 = pneg %p293
        %p774 = pneg %p290
        %p775 = pneg %p314
        %p776 = pneg %p311
        %p777 = pneg %p335
        %p778 = pneg %p332
        %p779 = pneg %p356
        %p780 = pneg %p353
        %p781 = pneg %p377
        %p782 = pneg %p374
        %p783 = pneg %p398
        %p784 = pneg %p395
        %p785 = pneg %p419
        %p786 = pneg %p416
        %p787 = pneg %p440
        %p788 = pneg %p437
        %p789 = pneg %p461
        %p790 = pneg %p458
        %p791 = pneg %p482
        %p792 = pneg %p479
        %p793 = pneg %p503
        %p794 = pneg %p500
        %p795 = pneg %p524
        %p796 = pneg %p521
        %p797 = pneg %p545
        %p798 = pneg %p542
        %p799 = pneg %p566
        %p800 = pneg %p563
        %p801 = pneg %p587
        %p802 = pneg %p584
        %p803 = pneg %p608
        %p804 = pneg %p605
        %p805 = pneg %p634
        %p806 = pneg %p631
        %s807 = sand.u32 %s621, 1
        %s808 = scalar_lea.sflag [#allocation4], %s807
        %s809 = sand.u32 %s621, 1
        %s810 = scalar_lea.vmem [#allocation3], %s809
        %p811 = scmp.lt.s32.totalorder %s41, 1
        %s812 = scalar_select %p811, %s41, 1
        %s813 = smul.addr %s812, 2
        %s814 = smul.addr %s813, 4
        %s815 = scalar_lea.vmem %s0, %s814
        %v816 = vld [vmem:[%s815] sm:$0xff]
        %v817 = vld [vmem:[%s1] sm:$0xff]
        %v818 = vld [vmem:[%s1 + $0x8] sm:$0xff]
        %v819 = vld [vmem:[%s1 + $0x10] sm:$0xff]
        %v820 = vld [vmem:[%s1 + $0x18] sm:$0xff]
        %v821 = vld [vmem:[%s1 + $0x20] sm:$0xff]
        %v822 = vld [vmem:[%s1 + $0x28] sm:$0xff]
        %v823 = vld [vmem:[%s1 + $0x30] sm:$0xff]
        %v824 = vld [vmem:[%s1 + $0x38] sm:$0xff]
        %v825 = vld [vmem:[%s1 + $0x40] sm:$0xff]
        %v826 = vld [vmem:[%s1 + $0x48] sm:$0xff]
        %v827 = vld [vmem:[%s1 + $0x50] sm:$0xff]
        %v828 = vld [vmem:[%s1 + $0x58] sm:$0xff]
        %v829 = vld [vmem:[%s1 + $0x60] sm:$0xff]
        %v830 = vld [vmem:[%s1 + $0x68] sm:$0xff]
        %v831 = vld [vmem:[%s1 + $0x70] sm:$0xff]
        %v832 = vld [vmem:[%s1 + $0x78] sm:$0xff]
        %v833 = vld [vmem:[%s1 + $0x80] sm:$0xff]
        %v834 = vld [vmem:[%s1 + $0x88] sm:$0xff]
        %v835 = vld [vmem:[%s1 + $0x90] sm:$0xff]
        %v836 = vld [vmem:[%s1 + $0x98] sm:$0xff]
        %v837 = vld [vmem:[%s1 + $0xa0] sm:$0xff]
        %v838 = vld [vmem:[%s1 + $0xa8] sm:$0xff]
        %v839 = vld [vmem:[%s1 + $0xb0] sm:$0xff]
        %v840 = vld [vmem:[%s1 + $0xb8] sm:$0xff]
        %v841 = vld [vmem:[%s2] sm:$0x1]
        %v843 = vperm.slane %v841, 0
        %846 = vst [vmem:[#allocation1] ss:$2 sm:$0xff] %v816
        %v847 = vld.sshfl [vmem:[#allocation1] sm:$0xff pattern:$0x75316420]
        %v848 = vld.sshfl [vmem:[#allocation1 + $0x8] sm:$0xff pattern:$0x75316420]
        %vm850 = vcmask 523264
        %v851 = vsel %vm850, %v848, 0
        %853 = vmatpush.msra.mxu0 %v832
        %854 = vmatpush.msra.mxu0 %v831
        %855 = vmatpush.msra.mxu0 %v830
        %856 = vmatpush.msra.mxu0 %v829
        %857 = vmatpush.msra.mxu0 %v828
        %858 = vmatpush.msra.mxu0 %v827
        %859 = vmatpush.msra.mxu0 %v826
        %860 = vmatpush.msra.mxu0 %v825
        %861 = vmatpush.msra.mxu0 %v824
        %862 = vmatpush.msra.mxu0 %v823
        %863 = vmatpush.msra.mxu0 %v822
        %864 = vmatpush.msra.mxu0 %v821
        %865 = vmatpush.msra.mxu0 %v820
        %866 = vmatpush.msra.mxu0 %v819
        %867 = vmatpush.msra.mxu0 %v818
        %868 = vmatpush.msra.mxu0 %v817
        %869 = vmatmul.f32.gmra.mxu0 %v847
        %v870 = vpop.f32.mrf.mxu0
        %v871 = vadd.f32 %v843, %v870
        %872 = vdwg.mxu0
        %873 = vmatpush.msra.mxu0 0.0
        %874 = vmatpush.msra.mxu0 0.0
        %875 = vmatpush.msra.mxu0 0.0
        %876 = vmatpush.msra.mxu0 0.0
        %877 = vmatpush.msra.mxu0 0.0
        %878 = vmatpush.msra.mxu0 0.0
        %879 = vmatpush.msra.mxu0 0.0
        %880 = vmatpush.msra.mxu0 0.0
        %881 = vmatpush.msra.mxu0 %v840
        %882 = vmatpush.msra.mxu0 %v839
        %883 = vmatpush.msra.mxu0 %v838
        %884 = vmatpush.msra.mxu0 %v837
        %885 = vmatpush.msra.mxu0 %v836
        %886 = vmatpush.msra.mxu0 %v835
        %887 = vmatpush.msra.mxu0 %v834
        %888 = vmatpush.msra.mxu0 %v833
        %889 = vmatmul.f32.gmra.mxu0 %v851
        %v890 = vpop.f32.mrf.mxu0
        %v891 = vadd.f32 %v871, %v890
        %892 = vdwg.mxu0
        %v893 = vld [vmem:[%s3] sm:$0x1]
        %v894 = vld [vmem:[%s4] sm:$0x1]
        %v895 = vadd.f32 %v893, %v894
        %vm896 = vcmask 253952
        %897 = vst.msk [vmem:[#allocation2] sm:$0x1] %vm896, %v895
        %v898 = vld [vmem:[%s4 + $0x1] sm:$0xf]
        %v899 = vadd.f32 %v891, %v898
        %vm900 = vcmask 257024
        %901 = vst.msk [vmem:[#allocation2 + $0x1] sm:$0xf] %vm900, %v899
        %v902 = vld [vmem:[#allocation2] sm:$0x1f]
        %v903 = vld [vmem:[%s5] sm:$0x1]
        %v904 = vld [vmem:[%s6] sm:$0x1]
        %vm905 = vcmask 258048
        %v906 = vsel %vm905, %v902, 0.0
        %907 = vadd.xlane.f32.xlu0 %v906
        %v908 = vpop.xlane.xlu0 %907
        %v909 = vrcp.pop 32.0
        %v910 = vmul.f32 32.0, %v909
        %v911 = vsub.f32 1.0, %v910
        %v912 = vmul.f32 %v909, %v911
        %v913 = vadd.f32 %v909, %v912
        %vm914 = vweird.f32 %v909
        %v915 = vsel %vm914, %v909, %v913
        %v916 = vmul.f32 %v908, %v915
        %v917 = vsub.f32 %v902, %v916
        %v918 = vmul.f32 %v917, %v917
        %v919 = vsel %vm905, %v918, 0.0
        %920 = vadd.xlane.f32.xlu0 %v919
        %v921 = vpop.xlane.xlu0 %920
        %v922 = vmul.f32 %v921, %v915
        %v923 = vadd.f32 %v922, 1e-06
        %v924 = vrsqrt.pop %v923
        %v925 = vmul.f32 %v924, %v923
        %v926 = vmul.f32 %v925, %v924
        %v927 = vmul.f32 0.5, %v926
        %v928 = vsub.f32 1.5, %v927
        %v929 = vmul.f32 %v924, %v928
        %vm930 = vweird.f32 %v923
        %vm931 = vweird.f32 %v924
        %vm932 = vmor %vm930, %vm931
        %v933 = vsel %vm932, %v924, %v929
        %v934 = vmul.f32 %v917, %v933
        %v936 = vperm.slane %v903, 0
        %v938 = vmul.f32 %v934, %v936
        %v940 = vperm.slane %v904, 0
        %v942 = vadd.f32 %v938, %v940
        %v943 = vld [vmem:[%s7] sm:$0xff]
        %v944 = vld [vmem:[%s7 + $0x8] sm:$0xff]
        %v945 = vld [vmem:[%s7 + $0x10] sm:$0xff]
        %v946 = vld [vmem:[%s7 + $0x18] sm:$0xff]
        %v947 = vld [vmem:[%s7 + $0x20] sm:$0xff]
        %v948 = vld [vmem:[%s7 + $0x28] sm:$0xff]
        %v949 = vld [vmem:[%s7 + $0x30] sm:$0xff]
        %v950 = vld [vmem:[%s7 + $0x38] sm:$0xff]
        %v951 = vld [vmem:[%s7 + $0x40] sm:$0xff]
        %v952 = vld [vmem:[%s7 + $0x48] sm:$0xff]
        %v953 = vld [vmem:[%s7 + $0x50] sm:$0xff]
        %v954 = vld [vmem:[%s7 + $0x58] sm:$0xff]
        %v955 = vld [vmem:[%s7 + $0x60] sm:$0xff]
        %v956 = vld [vmem:[%s7 + $0x68] sm:$0xff]
        %v957 = vld [vmem:[%s7 + $0x70] sm:$0xff]
        %v958 = vld [vmem:[%s7 + $0x78] sm:$0xff]
        %v959 = vld [vmem:[%s8] sm:$0x1]
        %v960 = vld [vmem:[%s8 + $0x1] sm:$0x1]
        %v961 = vld [vmem:[%s8 + $0x2] sm:$0x1]
        %v962 = vld [vmem:[%s8 + $0x3] sm:$0x1]
        %v967 = vperm.slane %v959, 0
        %v968 = vperm.slane %v960, 0
        %v969 = vperm.slane %v961, 0
        %v970 = vperm.slane %v962, 0
        %vm975 = vcmask 261120
        %v977 = vsel %vm975, %v942, 0
        %979 = vmatpush.msra.mxu0 0.0
        %980 = vmatpush.msra.mxu0 0.0
        %981 = vmatpush.msra.mxu0 0.0
        %982 = vmatpush.msra.mxu0 0.0
        %983 = vmatpush.msra.mxu0 0.0
        %984 = vmatpush.msra.mxu0 0.0
        %985 = vmatpush.msra.mxu0 0.0
        %986 = vmatpush.msra.mxu0 0.0
        %987 = vmatpush.msra.mxu0 0.0
        %988 = vmatpush.msra.mxu0 0.0
        %989 = vmatpush.msra.mxu0 0.0
        %990 = vmatpush.msra.mxu0 0.0
        %991 = vmatpush.msra.mxu0 %v946
        %992 = vmatpush.msra.mxu0 %v945
        %993 = vmatpush.msra.mxu0 %v944
        %994 = vmatpush.msra.mxu0 %v943
        %995 = vmatmul.f32.gmra.mxu0 %v977
        %v996 = vpop.f32.mrf.mxu0
        %v997 = vadd.f32 %v967, %v996
        %998 = vdwg.mxu0
        %999 = vmatpush.msra.mxu0 0.0
        %1000 = vmatpush.msra.mxu0 0.0
        %1001 = vmatpush.msra.mxu0 0.0
        %1002 = vmatpush.msra.mxu0 0.0
        %1003 = vmatpush.msra.mxu0 0.0
        %1004 = vmatpush.msra.mxu0 0.0
        %1005 = vmatpush.msra.mxu0 0.0
        %1006 = vmatpush.msra.mxu0 0.0
        %1007 = vmatpush.msra.mxu0 0.0
        %1008 = vmatpush.msra.mxu0 0.0
        %1009 = vmatpush.msra.mxu0 0.0
        %1010 = vmatpush.msra.mxu0 0.0
        %1011 = vmatpush.msra.mxu0 %v950
        %1012 = vmatpush.msra.mxu0 %v949
        %1013 = vmatpush.msra.mxu0 %v948
        %1014 = vmatpush.msra.mxu0 %v947
        %1015 = vmatmul.f32.gmra.mxu0 %v977
        %v1016 = vpop.f32.mrf.mxu0
        %v1017 = vadd.f32 %v968, %v1016
        %1018 = vdwg.mxu0
        %1019 = vmatpush.msra.mxu0 0.0
        %1020 = vmatpush.msra.mxu0 0.0
        %1021 = vmatpush.msra.mxu0 0.0
        %1022 = vmatpush.msra.mxu0 0.0
        %1023 = vmatpush.msra.mxu0 0.0
        %1024 = vmatpush.msra.mxu0 0.0
        %1025 = vmatpush.msra.mxu0 0.0
        %1026 = vmatpush.msra.mxu0 0.0
        %1027 = vmatpush.msra.mxu0 0.0
        %1028 = vmatpush.msra.mxu0 0.0
        %1029 = vmatpush.msra.mxu0 0.0
        %1030 = vmatpush.msra.mxu0 0.0
        %1031 = vmatpush.msra.mxu0 %v954
        %1032 = vmatpush.msra.mxu0 %v953
        %1033 = vmatpush.msra.mxu0 %v952
        %1034 = vmatpush.msra.mxu0 %v951
        %1035 = vmatmul.f32.gmra.mxu0 %v977
        %v1036 = vpop.f32.mrf.mxu0
        %v1037 = vadd.f32 %v969, %v1036
        %1038 = vdwg.mxu0
        %1039 = vmatpush.msra.mxu0 0.0
        %1040 = vmatpush.msra.mxu0 0.0
        %1041 = vmatpush.msra.mxu0 0.0
        %1042 = vmatpush.msra.mxu0 0.0
        %1043 = vmatpush.msra.mxu0 0.0
        %1044 = vmatpush.msra.mxu0 0.0
        %1045 = vmatpush.msra.mxu0 0.0
        %1046 = vmatpush.msra.mxu0 0.0
        %1047 = vmatpush.msra.mxu0 0.0
        %1048 = vmatpush.msra.mxu0 0.0
        %1049 = vmatpush.msra.mxu0 0.0
        %1050 = vmatpush.msra.mxu0 0.0
        %1051 = vmatpush.msra.mxu0 %v958
        %1052 = vmatpush.msra.mxu0 %v957
        %1053 = vmatpush.msra.mxu0 %v956
        %1054 = vmatpush.msra.mxu0 %v955
        %1055 = vmatmul.f32.gmra.mxu0 %v977
        %v1056 = vpop.f32.mrf.mxu0
        %v1057 = vadd.f32 %v970, %v1056
        %1058 = vdwg.mxu0
        %v1059 = vld [vmem:[%s9] sm:$0xff]
        %v1060 = vld [vmem:[%s9 + $0x8] sm:$0xff]
        %v1061 = vld [vmem:[%s9 + $0x10] sm:$0xff]
        %v1062 = vld [vmem:[%s9 + $0x18] sm:$0xff]
        %v1063 = vld [vmem:[%s9 + $0x20] sm:$0xff]
        %v1064 = vld [vmem:[%s9 + $0x28] sm:$0xff]
        %v1065 = vld [vmem:[%s9 + $0x30] sm:$0xff]
        %v1066 = vld [vmem:[%s9 + $0x38] sm:$0xff]
        %v1067 = vld [vmem:[%s9 + $0x40] sm:$0xff]
        %v1068 = vld [vmem:[%s9 + $0x48] sm:$0xff]
        %v1069 = vld [vmem:[%s9 + $0x50] sm:$0xff]
        %v1070 = vld [vmem:[%s9 + $0x58] sm:$0xff]
        %v1071 = vld [vmem:[%s9 + $0x60] sm:$0xff]
        %v1072 = vld [vmem:[%s9 + $0x68] sm:$0xff]
        %v1073 = vld [vmem:[%s9 + $0x70] sm:$0xff]
        %v1074 = vld [vmem:[%s9 + $0x78] sm:$0xff]
        %v1075 = vld [vmem:[%s10] sm:$0x1]
        %v1076 = vld [vmem:[%s10 + $0x1] sm:$0x1]
        %v1077 = vld [vmem:[%s10 + $0x2] sm:$0x1]
        %v1078 = vld [vmem:[%s10 + $0x3] sm:$0x1]
        %v1083 = vperm.slane %v1075, 0
        %v1084 = vperm.slane %v1076, 0
        %v1085 = vperm.slane %v1077, 0
        %v1086 = vperm.slane %v1078, 0
        %1091 = vmatpush.msra.mxu0 0.0
        %1092 = vmatpush.msra.mxu0 0.0
        %1093 = vmatpush.msra.mxu0 0.0
        %1094 = vmatpush.msra.mxu0 0.0
        %1095 = vmatpush.msra.mxu0 0.0
        %1096 = vmatpush.msra.mxu0 0.0
        %1097 = vmatpush.msra.mxu0 0.0
        %1098 = vmatpush.msra.mxu0 0.0
        %1099 = vmatpush.msra.mxu0 0.0
        %1100 = vmatpush.msra.mxu0 0.0
        %1101 = vmatpush.msra.mxu0 0.0
        %1102 = vmatpush.msra.mxu0 0.0
        %1103 = vmatpush.msra.mxu0 %v1062
        %1104 = vmatpush.msra.mxu0 %v1061
        %1105 = vmatpush.msra.mxu0 %v1060
        %1106 = vmatpush.msra.mxu0 %v1059
        %1107 = vmatmul.f32.gmra.mxu0 %v977
        %v1108 = vpop.f32.mrf.mxu0
        %v1109 = vadd.f32 %v1083, %v1108
        %1110 = vdwg.mxu0
        %1111 = vmatpush.msra.mxu0 0.0
        %1112 = vmatpush.msra.mxu0 0.0
        %1113 = vmatpush.msra.mxu0 0.0
        %1114 = vmatpush.msra.mxu0 0.0
        %1115 = vmatpush.msra.mxu0 0.0
        %1116 = vmatpush.msra.mxu0 0.0
        %1117 = vmatpush.msra.mxu0 0.0
        %1118 = vmatpush.msra.mxu0 0.0
        %1119 = vmatpush.msra.mxu0 0.0
        %1120 = vmatpush.msra.mxu0 0.0
        %1121 = vmatpush.msra.mxu0 0.0
        %1122 = vmatpush.msra.mxu0 0.0
        %1123 = vmatpush.msra.mxu0 %v1066
        %1124 = vmatpush.msra.mxu0 %v1065
        %1125 = vmatpush.msra.mxu0 %v1064
        %1126 = vmatpush.msra.mxu0 %v1063
        %1127 = vmatmul.f32.gmra.mxu0 %v977
        %v1128 = vpop.f32.mrf.mxu0
        %v1129 = vadd.f32 %v1084, %v1128
        %1130 = vdwg.mxu0
        %1131 = vmatpush.msra.mxu0 0.0
        %1132 = vmatpush.msra.mxu0 0.0
        %1133 = vmatpush.msra.mxu0 0.0
        %1134 = vmatpush.msra.mxu0 0.0
        %1135 = vmatpush.msra.mxu0 0.0
        %1136 = vmatpush.msra.mxu0 0.0
        %1137 = vmatpush.msra.mxu0 0.0
        %1138 = vmatpush.msra.mxu0 0.0
        %1139 = vmatpush.msra.mxu0 0.0
        %1140 = vmatpush.msra.mxu0 0.0
        %1141 = vmatpush.msra.mxu0 0.0
        %1142 = vmatpush.msra.mxu0 0.0
        %1143 = vmatpush.msra.mxu0 %v1070
        %1144 = vmatpush.msra.mxu0 %v1069
        %1145 = vmatpush.msra.mxu0 %v1068
        %1146 = vmatpush.msra.mxu0 %v1067
        %1147 = vmatmul.f32.gmra.mxu0 %v977
        %v1148 = vpop.f32.mrf.mxu0
        %v1149 = vadd.f32 %v1085, %v1148
        %1150 = vdwg.mxu0
        %1151 = vmatpush.msra.mxu0 0.0
        %1152 = vmatpush.msra.mxu0 0.0
        %1153 = vmatpush.msra.mxu0 0.0
        %1154 = vmatpush.msra.mxu0 0.0
        %1155 = vmatpush.msra.mxu0 0.0
        %1156 = vmatpush.msra.mxu0 0.0
        %1157 = vmatpush.msra.mxu0 0.0
        %1158 = vmatpush.msra.mxu0 0.0
        %1159 = vmatpush.msra.mxu0 0.0
        %1160 = vmatpush.msra.mxu0 0.0
        %1161 = vmatpush.msra.mxu0 0.0
        %1162 = vmatpush.msra.mxu0 0.0
        %1163 = vmatpush.msra.mxu0 %v1074
        %1164 = vmatpush.msra.mxu0 %v1073
        %1165 = vmatpush.msra.mxu0 %v1072
        %1166 = vmatpush.msra.mxu0 %v1071
        %1167 = vmatmul.f32.gmra.mxu0 %v977
        %v1168 = vpop.f32.mrf.mxu0
        %v1169 = vadd.f32 %v1086, %v1168
        %1170 = vdwg.mxu0
        %v1171 = vld [vmem:[%s11] sm:$0xff]
        %v1172 = vld [vmem:[%s11 + $0x8] sm:$0xff]
        %v1173 = vld [vmem:[%s11 + $0x10] sm:$0xff]
        %v1174 = vld [vmem:[%s11 + $0x18] sm:$0xff]
        %v1175 = vld [vmem:[%s11 + $0x20] sm:$0xff]
        %v1176 = vld [vmem:[%s11 + $0x28] sm:$0xff]
        %v1177 = vld [vmem:[%s11 + $0x30] sm:$0xff]
        %v1178 = vld [vmem:[%s11 + $0x38] sm:$0xff]
        %v1179 = vld [vmem:[%s11 + $0x40] sm:$0xff]
        %v1180 = vld [vmem:[%s11 + $0x48] sm:$0xff]
        %v1181 = vld [vmem:[%s11 + $0x50] sm:$0xff]
        %v1182 = vld [vmem:[%s11 + $0x58] sm:$0xff]
        %v1183 = vld [vmem:[%s11 + $0x60] sm:$0xff]
        %v1184 = vld [vmem:[%s11 + $0x68] sm:$0xff]
        %v1185 = vld [vmem:[%s11 + $0x70] sm:$0xff]
        %v1186 = vld [vmem:[%s11 + $0x78] sm:$0xff]
        %v1187 = vld [vmem:[%s12] sm:$0x1]
        %v1188 = vld [vmem:[%s12 + $0x1] sm:$0x1]
        %v1189 = vld [vmem:[%s12 + $0x2] sm:$0x1]
        %v1190 = vld [vmem:[%s12 + $0x3] sm:$0x1]
        %v1195 = vperm.slane %v1187, 0
        %v1196 = vperm.slane %v1188, 0
        %v1197 = vperm.slane %v1189, 0
        %v1198 = vperm.slane %v1190, 0
        %1203 = vmatpush.msra.mxu0 0.0
        %1204 = vmatpush.msra.mxu0 0.0
        %1205 = vmatpush.msra.mxu0 0.0
        %1206 = vmatpush.msra.mxu0 0.0
        %1207 = vmatpush.msra.mxu0 0.0
        %1208 = vmatpush.msra.mxu0 0.0
        %1209 = vmatpush.msra.mxu0 0.0
        %1210 = vmatpush.msra.mxu0 0.0
        %1211 = vmatpush.msra.mxu0 0.0
        %1212 = vmatpush.msra.mxu0 0.0
        %1213 = vmatpush.msra.mxu0 0.0
        %1214 = vmatpush.msra.mxu0 0.0
        %1215 = vmatpush.msra.mxu0 %v1174
        %1216 = vmatpush.msra.mxu0 %v1173
        %1217 = vmatpush.msra.mxu0 %v1172
        %1218 = vmatpush.msra.mxu0 %v1171
        %1219 = vmatmul.f32.gmra.mxu0 %v977
        %v1220 = vpop.f32.mrf.mxu0
        %v1221 = vadd.f32 %v1195, %v1220
        %1222 = vdwg.mxu0
        %1223 = vmatpush.msra.mxu0 0.0
        %1224 = vmatpush.msra.mxu0 0.0
        %1225 = vmatpush.msra.mxu0 0.0
        %1226 = vmatpush.msra.mxu0 0.0
        %1227 = vmatpush.msra.mxu0 0.0
        %1228 = vmatpush.msra.mxu0 0.0
        %1229 = vmatpush.msra.mxu0 0.0
        %1230 = vmatpush.msra.mxu0 0.0
        %1231 = vmatpush.msra.mxu0 0.0
        %1232 = vmatpush.msra.mxu0 0.0
        %1233 = vmatpush.msra.mxu0 0.0
        %1234 = vmatpush.msra.mxu0 0.0
        %1235 = vmatpush.msra.mxu0 %v1178
        %1236 = vmatpush.msra.mxu0 %v1177
        %1237 = vmatpush.msra.mxu0 %v1176
        %1238 = vmatpush.msra.mxu0 %v1175
        %1239 = vmatmul.f32.gmra.mxu0 %v977
        %v1240 = vpop.f32.mrf.mxu0
        %v1241 = vadd.f32 %v1196, %v1240
        %1242 = vdwg.mxu0
        %1243 = vmatpush.msra.mxu0 0.0
        %1244 = vmatpush.msra.mxu0 0.0
        %1245 = vmatpush.msra.mxu0 0.0
        %1246 = vmatpush.msra.mxu0 0.0
        %1247 = vmatpush.msra.mxu0 0.0
        %1248 = vmatpush.msra.mxu0 0.0
        %1249 = vmatpush.msra.mxu0 0.0
        %1250 = vmatpush.msra.mxu0 0.0
        %1251 = vmatpush.msra.mxu0 0.0
        %1252 = vmatpush.msra.mxu0 0.0
        %1253 = vmatpush.msra.mxu0 0.0
        %1254 = vmatpush.msra.mxu0 0.0
        %1255 = vmatpush.msra.mxu0 %v1182
        %1256 = vmatpush.msra.mxu0 %v1181
        %1257 = vmatpush.msra.mxu0 %v1180
        %1258 = vmatpush.msra.mxu0 %v1179
        %1259 = vmatmul.f32.gmra.mxu0 %v977
        %v1260 = vpop.f32.mrf.mxu0
        %v1261 = vadd.f32 %v1197, %v1260
        %1262 = vdwg.mxu0
        %1263 = vmatpush.msra.mxu0 0.0
        %1264 = vmatpush.msra.mxu0 0.0
        %1265 = vmatpush.msra.mxu0 0.0
        %1266 = vmatpush.msra.mxu0 0.0
        %1267 = vmatpush.msra.mxu0 0.0
        %1268 = vmatpush.msra.mxu0 0.0
        %1269 = vmatpush.msra.mxu0 0.0
        %1270 = vmatpush.msra.mxu0 0.0
        %1271 = vmatpush.msra.mxu0 0.0
        %1272 = vmatpush.msra.mxu0 0.0
        %1273 = vmatpush.msra.mxu0 0.0
        %1274 = vmatpush.msra.mxu0 0.0
        %1275 = vmatpush.msra.mxu0 %v1186
        %1276 = vmatpush.msra.mxu0 %v1185
        %1277 = vmatpush.msra.mxu0 %v1184
        %1278 = vmatpush.msra.mxu0 %v1183
        %1279 = vmatmul.f32.gmra.mxu0 %v977
        %v1280 = vpop.f32.mrf.mxu0
        %v1281 = vadd.f32 %v1198, %v1280
        %1282 = vdwg.mxu0
        %vm1283 = vcmask 64512
        %v1285 = vsel %vm1283, %v997, 0
        %v1288 = vsel %vm1283, %v1109, 0
        %1290 = vmatpush.xpose.msra.mxu0 0.0
        %1291 = vmatpush.xpose.msra.mxu0 0.0
        %1292 = vmatpush.xpose.msra.mxu0 0.0
        %1293 = vmatpush.xpose.msra.mxu0 0.0
        %1294 = vmatpush.xpose.msra.mxu0 0.0
        %1295 = vmatpush.xpose.msra.mxu0 0.0
        %1296 = vmatpush.xpose.msra.mxu0 0.0
        %1297 = vmatpush.xpose.msra.mxu0 0.0
        %1298 = vmatpush.xpose.msra.mxu0 0.0
        %1299 = vmatpush.xpose.msra.mxu0 0.0
        %1300 = vmatpush.xpose.msra.mxu0 0.0
        %1301 = vmatpush.xpose.msra.mxu0 0.0
        %1302 = vmatpush.xpose.msra.mxu0 0.0
        %1303 = vmatpush.xpose.msra.mxu0 0.0
        %1304 = vmatpush.xpose.msra.mxu0 0.0
        %1305 = vmatpush.xpose.msra.mxu0 %v1288
        %1306 = vmatmul.f32.gmra.mxu0 %v1285
        %v1307 = vpop.f32.mrf.mxu0
        %v1308 = vadd.f32 0.0, %v1307
        %1309 = vdwg.mxu0
        %v1311 = vsel %vm1283, %v1017, 0
        %v1314 = vsel %vm1283, %v1129, 0
        %1316 = vmatpush.xpose.msra.mxu0 0.0
        %1317 = vmatpush.xpose.msra.mxu0 0.0
        %1318 = vmatpush.xpose.msra.mxu0 0.0
        %1319 = vmatpush.xpose.msra.mxu0 0.0
        %1320 = vmatpush.xpose.msra.mxu0 0.0
        %1321 = vmatpush.xpose.msra.mxu0 0.0
        %1322 = vmatpush.xpose.msra.mxu0 0.0
        %1323 = vmatpush.xpose.msra.mxu0 0.0
        %1324 = vmatpush.xpose.msra.mxu0 0.0
        %1325 = vmatpush.xpose.msra.mxu0 0.0
        %1326 = vmatpush.xpose.msra.mxu0 0.0
        %1327 = vmatpush.xpose.msra.mxu0 0.0
        %1328 = vmatpush.xpose.msra.mxu0 0.0
        %1329 = vmatpush.xpose.msra.mxu0 0.0
        %1330 = vmatpush.xpose.msra.mxu0 0.0
        %1331 = vmatpush.xpose.msra.mxu0 %v1314
        %1332 = vmatmul.f32.gmra.mxu0 %v1311
        %v1333 = vpop.f32.mrf.mxu0
        %v1334 = vadd.f32 0.0, %v1333
        %1335 = vdwg.mxu0
        %v1337 = vsel %vm1283, %v1037, 0
        %v1340 = vsel %vm1283, %v1149, 0
        %1342 = vmatpush.xpose.msra.mxu0 0.0
        %1343 = vmatpush.xpose.msra.mxu0 0.0
        %1344 = vmatpush.xpose.msra.mxu0 0.0
        %1345 = vmatpush.xpose.msra.mxu0 0.0
        %1346 = vmatpush.xpose.msra.mxu0 0.0
        %1347 = vmatpush.xpose.msra.mxu0 0.0
        %1348 = vmatpush.xpose.msra.mxu0 0.0
        %1349 = vmatpush.xpose.msra.mxu0 0.0
        %1350 = vmatpush.xpose.msra.mxu0 0.0
        %1351 = vmatpush.xpose.msra.mxu0 0.0
        %1352 = vmatpush.xpose.msra.mxu0 0.0
        %1353 = vmatpush.xpose.msra.mxu0 0.0
        %1354 = vmatpush.xpose.msra.mxu0 0.0
        %1355 = vmatpush.xpose.msra.mxu0 0.0
        %1356 = vmatpush.xpose.msra.mxu0 0.0
        %1357 = vmatpush.xpose.msra.mxu0 %v1340
        %1358 = vmatmul.f32.gmra.mxu0 %v1337
        %v1359 = vpop.f32.mrf.mxu0
        %v1360 = vadd.f32 0.0, %v1359
        %1361 = vdwg.mxu0
        %v1363 = vsel %vm1283, %v1057, 0
        %v1366 = vsel %vm1283, %v1169, 0
        %1368 = vmatpush.xpose.msra.mxu0 0.0
        %1369 = vmatpush.xpose.msra.mxu0 0.0
        %1370 = vmatpush.xpose.msra.mxu0 0.0
        %1371 = vmatpush.xpose.msra.mxu0 0.0
        %1372 = vmatpush.xpose.msra.mxu0 0.0
        %1373 = vmatpush.xpose.msra.mxu0 0.0
        %1374 = vmatpush.xpose.msra.mxu0 0.0
        %1375 = vmatpush.xpose.msra.mxu0 0.0
        %1376 = vmatpush.xpose.msra.mxu0 0.0
        %1377 = vmatpush.xpose.msra.mxu0 0.0
        %1378 = vmatpush.xpose.msra.mxu0 0.0
        %1379 = vmatpush.xpose.msra.mxu0 0.0
        %1380 = vmatpush.xpose.msra.mxu0 0.0
        %1381 = vmatpush.xpose.msra.mxu0 0.0
        %1382 = vmatpush.xpose.msra.mxu0 0.0
        %1383 = vmatpush.xpose.msra.mxu0 %v1366
        %1384 = vmatmul.f32.gmra.mxu0 %v1363
        %v1385 = vpop.f32.mrf.mxu0
        %v1386 = vadd.f32 0.0, %v1385
        %1387 = vdwg.mxu0
        %v1388 = vmul.f32 %v1308, 0.35355338
        %v1389 = vmul.f32 %v1334, 0.35355338
        %v1390 = vmul.f32 %v1360, 0.35355338
        %v1391 = vmul.f32 %v1386, 0.35355338
        %vm1392 = vcmask 36864
        %v1393 = vsel %vm1392, %v1388, -inf
        %1394 = vmax.xlane.f32.xlu0 %v1393
        %v1395 = vpop.xlane.xlu0 %1394
        %v1396 = vsel %vm1392, %v1389, -inf
        %1397 = vmax.xlane.f32.xlu0 %v1396
        %v1398 = vpop.xlane.xlu0 %1397
        %v1399 = vsel %vm1392, %v1390, -inf
        %1400 = vmax.xlane.f32.xlu0 %v1399
        %v1401 = vpop.xlane.xlu0 %1400
        %v1402 = vsel %vm1392, %v1391, -inf
        %1403 = vmax.xlane.f32.xlu0 %v1402
        %v1404 = vpop.xlane.xlu0 %1403
        %v1405 = vsub.f32 %v1388, %v1395
        %v1406 = vsub.f32 %v1389, %v1398
        %v1407 = vsub.f32 %v1390, %v1401
        %v1408 = vsub.f32 %v1391, %v1404
        %v1409 = vmul.f32 %v1405, 1.442695
        %v1410 = vpow.pop %v1409
        %v1411 = vmul.f32 %v1406, 1.442695
        %v1412 = vpow.pop %v1411
        %v1413 = vmul.f32 %v1407, 1.442695
        %v1414 = vpow.pop %v1413
        %v1415 = vmul.f32 %v1408, 1.442695
        %v1416 = vpow.pop %v1415
        %v1417 = vsel %vm1392, %v1410, 0.0
        %1418 = vadd.xlane.f32.xlu0 %v1417
        %v1419 = vpop.xlane.xlu0 %1418
        %v1420 = vsel %vm1392, %v1412, 0.0
        %1421 = vadd.xlane.f32.xlu0 %v1420
        %v1422 = vpop.xlane.xlu0 %1421
        %v1423 = vsel %vm1392, %v1414, 0.0
        %1424 = vadd.xlane.f32.xlu0 %v1423
        %v1425 = vpop.xlane.xlu0 %1424
        %v1426 = vsel %vm1392, %v1416, 0.0
        %1427 = vadd.xlane.f32.xlu0 %v1426
        %v1428 = vpop.xlane.xlu0 %1427
        %v1429 = vrcp.pop %v1419
        %v1430 = vrcp.pop %v1422
        %v1431 = vrcp.pop %v1425
        %v1432 = vrcp.pop %v1428
        %v1433 = vmul.f32 %v1410, %v1429
        %v1434 = vmul.f32 %v1412, %v1430
        %v1435 = vmul.f32 %v1414, %v1431
        %v1436 = vmul.f32 %v1416, %v1432
        %vm1437 = vcmask 39936
        %v1439 = vsel %vm1437, %v1433, 0
        %vm1441 = vcmask 1044480
        %v1443 = vsel %vm1441, %v1221, 0
        %1445 = vmatpush.msra.mxu0 0.0
        %1446 = vmatpush.msra.mxu0 0.0
        %1447 = vmatpush.msra.mxu0 0.0
        %1448 = vmatpush.msra.mxu0 0.0
        %1449 = vmatpush.msra.mxu0 0.0
        %1450 = vmatpush.msra.mxu0 0.0
        %1451 = vmatpush.msra.mxu0 0.0
        %1452 = vmatpush.msra.mxu0 0.0
        %1453 = vmatpush.msra.mxu0 0.0
        %1454 = vmatpush.msra.mxu0 0.0
        %1455 = vmatpush.msra.mxu0 0.0
        %1456 = vmatpush.msra.mxu0 0.0
        %1457 = vmatpush.msra.mxu0 0.0
        %1458 = vmatpush.msra.mxu0 0.0
        %1459 = vmatpush.msra.mxu0 0.0
        %1460 = vmatpush.msra.mxu0 %v1443
        %1461 = vmatmul.f32.gmra.mxu0 %v1439
        %v1462 = vpop.f32.mrf.mxu0
        %v1463 = vadd.f32 0.0, %v1462
        %1464 = vdwg.mxu0
        %v1466 = vsel %vm1437, %v1434, 0
        %v1469 = vsel %vm1441, %v1241, 0
        %1471 = vmatpush.msra.mxu0 0.0
        %1472 = vmatpush.msra.mxu0 0.0
        %1473 = vmatpush.msra.mxu0 0.0
        %1474 = vmatpush.msra.mxu0 0.0
        %1475 = vmatpush.msra.mxu0 0.0
        %1476 = vmatpush.msra.mxu0 0.0
        %1477 = vmatpush.msra.mxu0 0.0
        %1478 = vmatpush.msra.mxu0 0.0
        %1479 = vmatpush.msra.mxu0 0.0
        %1480 = vmatpush.msra.mxu0 0.0
        %1481 = vmatpush.msra.mxu0 0.0
        %1482 = vmatpush.msra.mxu0 0.0
        %1483 = vmatpush.msra.mxu0 0.0
        %1484 = vmatpush.msra.mxu0 0.0
        %1485 = vmatpush.msra.mxu0 0.0
        %1486 = vmatpush.msra.mxu0 %v1469
        %1487 = vmatmul.f32.gmra.mxu0 %v1466
        %v1488 = vpop.f32.mrf.mxu0
        %v1489 = vadd.f32 0.0, %v1488
        %1490 = vdwg.mxu0
        %v1492 = vsel %vm1437, %v1435, 0
        %v1495 = vsel %vm1441, %v1261, 0
        %1497 = vmatpush.msra.mxu0 0.0
        %1498 = vmatpush.msra.mxu0 0.0
        %1499 = vmatpush.msra.mxu0 0.0
        %1500 = vmatpush.msra.mxu0 0.0
        %1501 = vmatpush.msra.mxu0 0.0
        %1502 = vmatpush.msra.mxu0 0.0
        %1503 = vmatpush.msra.mxu0 0.0
        %1504 = vmatpush.msra.mxu0 0.0
        %1505 = vmatpush.msra.mxu0 0.0
        %1506 = vmatpush.msra.mxu0 0.0
        %1507 = vmatpush.msra.mxu0 0.0
        %1508 = vmatpush.msra.mxu0 0.0
        %1509 = vmatpush.msra.mxu0 0.0
        %1510 = vmatpush.msra.mxu0 0.0
        %1511 = vmatpush.msra.mxu0 0.0
        %1512 = vmatpush.msra.mxu0 %v1495
        %1513 = vmatmul.f32.gmra.mxu0 %v1492
        %v1514 = vpop.f32.mrf.mxu0
        %v1515 = vadd.f32 0.0, %v1514
        %1516 = vdwg.mxu0
        %v1518 = vsel %vm1437, %v1436, 0
        %v1521 = vsel %vm1441, %v1281, 0
        %1523 = vmatpush.msra.mxu0 0.0
        %1524 = vmatpush.msra.mxu0 0.0
        %1525 = vmatpush.msra.mxu0 0.0
        %1526 = vmatpush.msra.mxu0 0.0
        %1527 = vmatpush.msra.mxu0 0.0
        %1528 = vmatpush.msra.mxu0 0.0
        %1529 = vmatpush.msra.mxu0 0.0
        %1530 = vmatpush.msra.mxu0 0.0
        %1531 = vmatpush.msra.mxu0 0.0
        %1532 = vmatpush.msra.mxu0 0.0
        %1533 = vmatpush.msra.mxu0 0.0
        %1534 = vmatpush.msra.mxu0 0.0
        %1535 = vmatpush.msra.mxu0 0.0
        %1536 = vmatpush.msra.mxu0 0.0
        %1537 = vmatpush.msra.mxu0 0.0
        %1538 = vmatpush.msra.mxu0 %v1521
        %1539 = vmatmul.f32.gmra.mxu0 %v1518
        %v1540 = vpop.f32.mrf.mxu0
        %v1541 = vadd.f32 0.0, %v1540
        %1542 = vdwg.mxu0
        %v1543 = vld [vmem:[%s13] sm:$0xff]
        %v1544 = vld [vmem:[%s13 + $0x8] sm:$0xff]
        %v1545 = vld [vmem:[%s13 + $0x10] sm:$0xff]
        %v1546 = vld [vmem:[%s13 + $0x18] sm:$0xff]
        %v1548 = vsel %vm1283, %v1463, 0
        %1550 = vmatpush.msra.mxu0 0.0
        %1551 = vmatpush.msra.mxu0 0.0
        %1552 = vmatpush.msra.mxu0 0.0
        %1553 = vmatpush.msra.mxu0 0.0
        %1554 = vmatpush.msra.mxu0 0.0
        %1555 = vmatpush.msra.mxu0 0.0
        %1556 = vmatpush.msra.mxu0 0.0
        %1557 = vmatpush.msra.mxu0 0.0
        %1558 = vmatpush.msra.mxu0 0.0
        %1559 = vmatpush.msra.mxu0 0.0
        %1560 = vmatpush.msra.mxu0 0.0
        %1561 = vmatpush.msra.mxu0 0.0
        %1562 = vmatpush.msra.mxu0 0.0
        %1563 = vmatpush.msra.mxu0 0.0
        %1564 = vmatpush.msra.mxu0 0.0
        %1565 = vmatpush.msra.mxu0 %v1543
        %1566 = vmatmul.f32.gmra.mxu0 %v1548
        %v1567 = vpop.f32.mrf.mxu0
        %v1568 = vadd.f32 0.0, %v1567
        %1569 = vdwg.mxu0
        %v1571 = vsel %vm1283, %v1489, 0
        %1573 = vmatpush.msra.mxu0 0.0
        %1574 = vmatpush.msra.mxu0 0.0
        %1575 = vmatpush.msra.mxu0 0.0
        %1576 = vmatpush.msra.mxu0 0.0
        %1577 = vmatpush.msra.mxu0 0.0
        %1578 = vmatpush.msra.mxu0 0.0
        %1579 = vmatpush.msra.mxu0 0.0
        %1580 = vmatpush.msra.mxu0 0.0
        %1581 = vmatpush.msra.mxu0 0.0
        %1582 = vmatpush.msra.mxu0 0.0
        %1583 = vmatpush.msra.mxu0 0.0
        %1584 = vmatpush.msra.mxu0 0.0
        %1585 = vmatpush.msra.mxu0 0.0
        %1586 = vmatpush.msra.mxu0 0.0
        %1587 = vmatpush.msra.mxu0 0.0
        %1588 = vmatpush.msra.mxu0 %v1544
        %1589 = vmatmul.f32.gmra.mxu0 %v1571
        %v1590 = vpop.f32.mrf.mxu0
        %v1591 = vadd.f32 0.0, %v1590
        %1592 = vdwg.mxu0
        %v1594 = vsel %vm1283, %v1515, 0
        %1596 = vmatpush.msra.mxu0 0.0
        %1597 = vmatpush.msra.mxu0 0.0
        %1598 = vmatpush.msra.mxu0 0.0
        %1599 = vmatpush.msra.mxu0 0.0
        %1600 = vmatpush.msra.mxu0 0.0
        %1601 = vmatpush.msra.mxu0 0.0
        %1602 = vmatpush.msra.mxu0 0.0
        %1603 = vmatpush.msra.mxu0 0.0
        %1604 = vmatpush.msra.mxu0 0.0
        %1605 = vmatpush.msra.mxu0 0.0
        %1606 = vmatpush.msra.mxu0 0.0
        %1607 = vmatpush.msra.mxu0 0.0
        %1608 = vmatpush.msra.mxu0 0.0
        %1609 = vmatpush.msra.mxu0 0.0
        %1610 = vmatpush.msra.mxu0 0.0
        %1611 = vmatpush.msra.mxu0 %v1545
        %1612 = vmatmul.f32.gmra.mxu0 %v1594
        %v1613 = vpop.f32.mrf.mxu0
        %v1614 = vadd.f32 0.0, %v1613
        %1615 = vdwg.mxu0
        %v1617 = vsel %vm1283, %v1541, 0
        %1619 = vmatpush.msra.mxu0 0.0
        %1620 = vmatpush.msra.mxu0 0.0
        %1621 = vmatpush.msra.mxu0 0.0
        %1622 = vmatpush.msra.mxu0 0.0
        %1623 = vmatpush.msra.mxu0 0.0
        %1624 = vmatpush.msra.mxu0 0.0
        %1625 = vmatpush.msra.mxu0 0.0
        %1626 = vmatpush.msra.mxu0 0.0
        %1627 = vmatpush.msra.mxu0 0.0
        %1628 = vmatpush.msra.mxu0 0.0
        %1629 = vmatpush.msra.mxu0 0.0
        %1630 = vmatpush.msra.mxu0 0.0
        %1631 = vmatpush.msra.mxu0 0.0
        %1632 = vmatpush.msra.mxu0 0.0
        %1633 = vmatpush.msra.mxu0 0.0
        %1634 = vmatpush.msra.mxu0 %v1546
        %1635 = vmatmul.f32.gmra.mxu0 %v1617
        %v1636 = vpop.f32.mrf.mxu0
        %v1637 = vadd.f32 0.0, %v1636
        %1638 = vdwg.mxu0
        %v1639 = vsel %vm905, %v1568, 0.0
        %v1640 = vsel %vm905, %v1591, 0.0
        %v1641 = vadd.f32 %v1639, %v1640
        %v1642 = vsel %vm905, %v1614, 0.0
        %v1643 = vadd.f32 %v1641, %v1642
        %v1644 = vsel %vm905, %v1637, 0.0
        %v1645 = vadd.f32 %v1643, %v1644
        %v1646 = vld [vmem:[%s14] sm:$0x1]
        %v1648 = vperm.slane %v1646, 0
        %v1650 = vadd.f32 %v1645, %v1648
        %v1651 = vadd.f32 %v1650, %v902
        %v1652 = vld [vmem:[%s15] sm:$0x1]
        %v1653 = vld [vmem:[%s16] sm:$0x1]
        %v1654 = vsel %vm905, %v1651, 0.0
        %1655 = vadd.xlane.f32.xlu0 %v1654
        %v1656 = vpop.xlane.xlu0 %1655
        %v1657 = vmul.f32 %v1656, %v915
        %v1658 = vsub.f32 %v1651, %v1657
        %v1659 = vmul.f32 %v1658, %v1658
        %v1660 = vsel %vm905, %v1659, 0.0
        %1661 = vadd.xlane.f32.xlu0 %v1660
        %v1662 = vpop.xlane.xlu0 %1661
        %v1663 = vmul.f32 %v1662, %v915
        %v1664 = vadd.f32 %v1663, 1e-06
        %v1665 = vrsqrt.pop %v1664
        %v1666 = vmul.f32 %v1665, %v1664
        %v1667 = vmul.f32 %v1666, %v1665
        %v1668 = vmul.f32 0.5, %v1667
        %v1669 = vsub.f32 1.5, %v1668
        %v1670 = vmul.f32 %v1665, %v1669
        %vm1671 = vweird.f32 %v1664
        %vm1672 = vweird.f32 %v1665
        %vm1673 = vmor %vm1671, %vm1672
        %v1674 = vsel %vm1673, %v1665, %v1670
        %v1675 = vmul.f32 %v1658, %v1674
        %v1677 = vperm.slane %v1652, 0
        %v1679 = vmul.f32 %v1675, %v1677
        %v1681 = vperm.slane %v1653, 0
        %v1683 = vadd.f32 %v1679, %v1681
        %v1684 = vld [vmem:[%s17] sm:$0x1]
        %v1685 = vld [vmem:[%s18] sm:$0x1]
        %v1686 = vsel %vm905, %v1683, 0.0
        %1687 = vadd.xlane.f32.xlu0 %v1686
        %v1688 = vpop.xlane.xlu0 %1687
        %v1689 = vmul.f32 %v1688, %v915
        %v1690 = vsub.f32 %v1683, %v1689
        %v1691 = vmul.f32 %v1690, %v1690
        %v1692 = vsel %vm905, %v1691, 0.0
        %1693 = vadd.xlane.f32.xlu0 %v1692
        %v1694 = vpop.xlane.xlu0 %1693
        %v1695 = vmul.f32 %v1694, %v915
        %v1696 = vadd.f32 %v1695, 1e-06
        %v1697 = vrsqrt.pop %v1696
        %v1698 = vmul.f32 %v1697, %v1696
        %v1699 = vmul.f32 %v1698, %v1697
        %v1700 = vmul.f32 0.5, %v1699
        %v1701 = vsub.f32 1.5, %v1700
        %v1702 = vmul.f32 %v1697, %v1701
        %vm1703 = vweird.f32 %v1696
        %vm1704 = vweird.f32 %v1697
        %vm1705 = vmor %vm1703, %vm1704
        %v1706 = vsel %vm1705, %v1697, %v1702
        %v1707 = vmul.f32 %v1690, %v1706
        %v1709 = vperm.slane %v1684, 0
        %v1711 = vmul.f32 %v1707, %v1709
        %v1713 = vperm.slane %v1685, 0
        %v1715 = vadd.f32 %v1711, %v1713
        %v1716 = vld [vmem:[%s19] sm:$0xff]
        %v1717 = vld [vmem:[%s19 + $0x8] sm:$0xff]
        %v1718 = vld [vmem:[%s19 + $0x10] sm:$0xff]
        %v1719 = vld [vmem:[%s19 + $0x18] sm:$0xff]
        %v1720 = vld [vmem:[%s20] sm:$0x1]
        %v1722 = vperm.slane %v1720, 0
        %v1725 = vsel %vm975, %v1715, 0
        %1727 = vmatpush.msra.mxu0 0.0
        %1728 = vmatpush.msra.mxu0 0.0
        %1729 = vmatpush.msra.mxu0 0.0
        %1730 = vmatpush.msra.mxu0 0.0
        %1731 = vmatpush.msra.mxu0 0.0
        %1732 = vmatpush.msra.mxu0 0.0
        %1733 = vmatpush.msra.mxu0 0.0
        %1734 = vmatpush.msra.mxu0 0.0
        %1735 = vmatpush.msra.mxu0 0.0
        %1736 = vmatpush.msra.mxu0 0.0
        %1737 = vmatpush.msra.mxu0 0.0
        %1738 = vmatpush.msra.mxu0 0.0
        %1739 = vmatpush.msra.mxu0 %v1719
        %1740 = vmatpush.msra.mxu0 %v1718
        %1741 = vmatpush.msra.mxu0 %v1717
        %1742 = vmatpush.msra.mxu0 %v1716
        %1743 = vmatmul.f32.gmra.mxu0 %v1725
        %v1744 = vpop.f32.mrf.mxu0
        %v1745 = vadd.f32 %v1722, %v1744
        %1746 = vdwg.mxu0
        %v1747 = vmul.f32 %v1745, 0.5
        %v1748 = vmul.f32 %v1745, 0.044715
        %v1749 = vmul.f32 %v1748, %v1745
        %v1750 = vmul.f32 %v1749, %v1745
        %v1751 = vadd.f32 %v1745, %v1750
        %v1752 = vmul.f32 %v1751, 0.7978846
        %v1753 = vtanh.pop %v1752
        %v1754 = vadd.f32 %v1753, 1.0
        %v1755 = vmul.f32 %v1747, %v1754
        %v1756 = vld [vmem:[%s21] sm:$0xff]
        %v1757 = vld [vmem:[%s21 + $0x8] sm:$0xff]
        %v1758 = vld [vmem:[%s21 + $0x10] sm:$0xff]
        %v1759 = vld [vmem:[%s21 + $0x18] sm:$0xff]
        %v1760 = vld [vmem:[%s21 + $0x20] sm:$0xff]
        %v1761 = vld [vmem:[%s21 + $0x28] sm:$0xff]
        %v1762 = vld [vmem:[%s21 + $0x30] sm:$0xff]
        %v1763 = vld [vmem:[%s21 + $0x38] sm:$0xff]
        %v1764 = vld [vmem:[%s22] sm:$0x1]
        %v1766 = vperm.slane %v1764, 0
        %v1769 = vsel %vm850, %v1755, 0
        %1771 = vmatpush.msra.mxu0 0.0
        %1772 = vmatpush.msra.mxu0 0.0
        %1773 = vmatpush.msra.mxu0 0.0
        %1774 = vmatpush.msra.mxu0 0.0
        %1775 = vmatpush.msra.mxu0 0.0
        %1776 = vmatpush.msra.mxu0 0.0
        %1777 = vmatpush.msra.mxu0 0.0
        %1778 = vmatpush.msra.mxu0 0.0
        %1779 = vmatpush.msra.mxu0 %v1763
        %1780 = vmatpush.msra.mxu0 %v1762
        %1781 = vmatpush.msra.mxu0 %v1761
        %1782 = vmatpush.msra.mxu0 %v1760
        %1783 = vmatpush.msra.mxu0 %v1759
        %1784 = vmatpush.msra.mxu0 %v1758
        %1785 = vmatpush.msra.mxu0 %v1757
        %1786 = vmatpush.msra.mxu0 %v1756
        %1787 = vmatmul.f32.gmra.mxu0 %v1769
        %v1788 = vpop.f32.mrf.mxu0
        %v1789 = vadd.f32 %v1766, %v1788
        %1790 = vdwg.mxu0
        %v1791 = vadd.f32 %v1683, %v1789
        %s1792 = scalar_lea.vmem %s5, 1
        %v1793 = vld [vmem:[%s1792] sm:$0x1]
        %s1794 = scalar_lea.vmem %s6, 1
        %v1795 = vld [vmem:[%s1794] sm:$0x1]
        %v1796 = vsel %vm905, %v1791, 0.0
        %1797 = vadd.xlane.f32.xlu0 %v1796
        %v1798 = vpop.xlane.xlu0 %1797
        %v1799 = vmul.f32 %v1798, %v915
        %v1800 = vsub.f32 %v1791, %v1799
        %v1801 = vmul.f32 %v1800, %v1800
        %v1802 = vsel %vm905, %v1801, 0.0
        %1803 = vadd.xlane.f32.xlu0 %v1802
        %v1804 = vpop.xlane.xlu0 %1803
        %v1805 = vmul.f32 %v1804, %v915
        %v1806 = vadd.f32 %v1805, 1e-06
        %v1807 = vrsqrt.pop %v1806
        %v1808 = vmul.f32 %v1807, %v1806
        %v1809 = vmul.f32 %v1808, %v1807
        %v1810 = vmul.f32 0.5, %v1809
        %v1811 = vsub.f32 1.5, %v1810
        %v1812 = vmul.f32 %v1807, %v1811
        %vm1813 = vweird.f32 %v1806
        %vm1814 = vweird.f32 %v1807
        %vm1815 = vmor %vm1813, %vm1814
        %v1816 = vsel %vm1815, %v1807, %v1812
        %v1817 = vmul.f32 %v1800, %v1816
        %v1819 = vperm.slane %v1793, 0
        %v1821 = vmul.f32 %v1817, %v1819
        %v1823 = vperm.slane %v1795, 0
        %v1825 = vadd.f32 %v1821, %v1823
        %s1826 = scalar_lea.vmem %s7, 128
        %v1827 = vld [vmem:[%s1826] sm:$0xff]
        %v1828 = vld [vmem:[%s1826 + $0x8] sm:$0xff]
        %v1829 = vld [vmem:[%s1826 + $0x10] sm:$0xff]
        %v1830 = vld [vmem:[%s1826 + $0x18] sm:$0xff]
        %v1831 = vld [vmem:[%s1826 + $0x20] sm:$0xff]
        %v1832 = vld [vmem:[%s1826 + $0x28] sm:$0xff]
        %v1833 = vld [vmem:[%s1826 + $0x30] sm:$0xff]
        %v1834 = vld [vmem:[%s1826 + $0x38] sm:$0xff]
        %v1835 = vld [vmem:[%s1826 + $0x40] sm:$0xff]
        %v1836 = vld [vmem:[%s1826 + $0x48] sm:$0xff]
        %v1837 = vld [vmem:[%s1826 + $0x50] sm:$0xff]
        %v1838 = vld [vmem:[%s1826 + $0x58] sm:$0xff]
        %v1839 = vld [vmem:[%s1826 + $0x60] sm:$0xff]
        %v1840 = vld [vmem:[%s1826 + $0x68] sm:$0xff]
        %v1841 = vld [vmem:[%s1826 + $0x70] sm:$0xff]
        %v1842 = vld [vmem:[%s1826 + $0x78] sm:$0xff]
        %s1843 = scalar_lea.vmem %s8, 4
        %v1844 = vld [vmem:[%s1843] sm:$0x1]
        %v1845 = vld [vmem:[%s1843 + $0x1] sm:$0x1]
        %v1846 = vld [vmem:[%s1843 + $0x2] sm:$0x1]
        %v1847 = vld [vmem:[%s1843 + $0x3] sm:$0x1]
        %v1852 = vperm.slane %v1844, 0
        %v1853 = vperm.slane %v1845, 0
        %v1854 = vperm.slane %v1846, 0
        %v1855 = vperm.slane %v1847, 0
        %v1861 = vsel %vm975, %v1825, 0
        %1863 = vmatpush.msra.mxu0 0.0
        %1864 = vmatpush.msra.mxu0 0.0
        %1865 = vmatpush.msra.mxu0 0.0
        %1866 = vmatpush.msra.mxu0 0.0
        %1867 = vmatpush.msra.mxu0 0.0
        %1868 = vmatpush.msra.mxu0 0.0
        %1869 = vmatpush.msra.mxu0 0.0
        %1870 = vmatpush.msra.mxu0 0.0
        %1871 = vmatpush.msra.mxu0 0.0
        %1872 = vmatpush.msra.mxu0 0.0
        %1873 = vmatpush.msra.mxu0 0.0
        %1874 = vmatpush.msra.mxu0 0.0
        %1875 = vmatpush.msra.mxu0 %v1830
        %1876 = vmatpush.msra.mxu0 %v1829
        %1877 = vmatpush.msra.mxu0 %v1828
        %1878 = vmatpush.msra.mxu0 %v1827
        %1879 = vmatmul.f32.gmra.mxu0 %v1861
        %v1880 = vpop.f32.mrf.mxu0
        %v1881 = vadd.f32 %v1852, %v1880
        %1882 = vdwg.mxu0
        %1883 = vmatpush.msra.mxu0 0.0
        %1884 = vmatpush.msra.mxu0 0.0
        %1885 = vmatpush.msra.mxu0 0.0
        %1886 = vmatpush.msra.mxu0 0.0
        %1887 = vmatpush.msra.mxu0 0.0
        %1888 = vmatpush.msra.mxu0 0.0
        %1889 = vmatpush.msra.mxu0 0.0
        %1890 = vmatpush.msra.mxu0 0.0
        %1891 = vmatpush.msra.mxu0 0.0
        %1892 = vmatpush.msra.mxu0 0.0
        %1893 = vmatpush.msra.mxu0 0.0
        %1894 = vmatpush.msra.mxu0 0.0
        %1895 = vmatpush.msra.mxu0 %v1834
        %1896 = vmatpush.msra.mxu0 %v1833
        %1897 = vmatpush.msra.mxu0 %v1832
        %1898 = vmatpush.msra.mxu0 %v1831
        %1899 = vmatmul.f32.gmra.mxu0 %v1861
        %v1900 = vpop.f32.mrf.mxu0
        %v1901 = vadd.f32 %v1853, %v1900
        %1902 = vdwg.mxu0
        %1903 = vmatpush.msra.mxu0 0.0
        %1904 = vmatpush.msra.mxu0 0.0
        %1905 = vmatpush.msra.mxu0 0.0
        %1906 = vmatpush.msra.mxu0 0.0
        %1907 = vmatpush.msra.mxu0 0.0
        %1908 = vmatpush.msra.mxu0 0.0
        %1909 = vmatpush.msra.mxu0 0.0
        %1910 = vmatpush.msra.mxu0 0.0
        %1911 = vmatpush.msra.mxu0 0.0
        %1912 = vmatpush.msra.mxu0 0.0
        %1913 = vmatpush.msra.mxu0 0.0
        %1914 = vmatpush.msra.mxu0 0.0
        %1915 = vmatpush.msra.mxu0 %v1838
        %1916 = vmatpush.msra.mxu0 %v1837
        %1917 = vmatpush.msra.mxu0 %v1836
        %1918 = vmatpush.msra.mxu0 %v1835
        %1919 = vmatmul.f32.gmra.mxu0 %v1861
        %v1920 = vpop.f32.mrf.mxu0
        %v1921 = vadd.f32 %v1854, %v1920
        %1922 = vdwg.mxu0
        %1923 = vmatpush.msra.mxu0 0.0
        %1924 = vmatpush.msra.mxu0 0.0
        %1925 = vmatpush.msra.mxu0 0.0
        %1926 = vmatpush.msra.mxu0 0.0
        %1927 = vmatpush.msra.mxu0 0.0
        %1928 = vmatpush.msra.mxu0 0.0
        %1929 = vmatpush.msra.mxu0 0.0
        %1930 = vmatpush.msra.mxu0 0.0
        %1931 = vmatpush.msra.mxu0 0.0
        %1932 = vmatpush.msra.mxu0 0.0
        %1933 = vmatpush.msra.mxu0 0.0
        %1934 = vmatpush.msra.mxu0 0.0
        %1935 = vmatpush.msra.mxu0 %v1842
        %1936 = vmatpush.msra.mxu0 %v1841
        %1937 = vmatpush.msra.mxu0 %v1840
        %1938 = vmatpush.msra.mxu0 %v1839
        %1939 = vmatmul.f32.gmra.mxu0 %v1861
        %v1940 = vpop.f32.mrf.mxu0
        %v1941 = vadd.f32 %v1855, %v1940
        %1942 = vdwg.mxu0
        %s1943 = scalar_lea.vmem %s9, 128
        %v1944 = vld [vmem:[%s1943] sm:$0xff]
        %v1945 = vld [vmem:[%s1943 + $0x8] sm:$0xff]
        %v1946 = vld [vmem:[%s1943 + $0x10] sm:$0xff]
        %v1947 = vld [vmem:[%s1943 + $0x18] sm:$0xff]
        %v1948 = vld [vmem:[%s1943 + $0x20] sm:$0xff]
        %v1949 = vld [vmem:[%s1943 + $0x28] sm:$0xff]
        %v1950 = vld [vmem:[%s1943 + $0x30] sm:$0xff]
        %v1951 = vld [vmem:[%s1943 + $0x38] sm:$0xff]
        %v1952 = vld [vmem:[%s1943 + $0x40] sm:$0xff]
        %v1953 = vld [vmem:[%s1943 + $0x48] sm:$0xff]
        %v1954 = vld [vmem:[%s1943 + $0x50] sm:$0xff]
        %v1955 = vld [vmem:[%s1943 + $0x58] sm:$0xff]
        %v1956 = vld [vmem:[%s1943 + $0x60] sm:$0xff]
        %v1957 = vld [vmem:[%s1943 + $0x68] sm:$0xff]
        %v1958 = vld [vmem:[%s1943 + $0x70] sm:$0xff]
        %v1959 = vld [vmem:[%s1943 + $0x78] sm:$0xff]
        %s1960 = scalar_lea.vmem %s10, 4
        %v1961 = vld [vmem:[%s1960] sm:$0x1]
        %v1962 = vld [vmem:[%s1960 + $0x1] sm:$0x1]
        %v1963 = vld [vmem:[%s1960 + $0x2] sm:$0x1]
        %v1964 = vld [vmem:[%s1960 + $0x3] sm:$0x1]
        %v1969 = vperm.slane %v1961, 0
        %v1970 = vperm.slane %v1962, 0
        %v1971 = vperm.slane %v1963, 0
        %v1972 = vperm.slane %v1964, 0
        %1977 = vmatpush.msra.mxu0 0.0
        %1978 = vmatpush.msra.mxu0 0.0
        %1979 = vmatpush.msra.mxu0 0.0
        %1980 = vmatpush.msra.mxu0 0.0
        %1981 = vmatpush.msra.mxu0 0.0
        %1982 = vmatpush.msra.mxu0 0.0
        %1983 = vmatpush.msra.mxu0 0.0
        %1984 = vmatpush.msra.mxu0 0.0
        %1985 = vmatpush.msra.mxu0 0.0
        %1986 = vmatpush.msra.mxu0 0.0
        %1987 = vmatpush.msra.mxu0 0.0
        %1988 = vmatpush.msra.mxu0 0.0
        %1989 = vmatpush.msra.mxu0 %v1947
        %1990 = vmatpush.msra.mxu0 %v1946
        %1991 = vmatpush.msra.mxu0 %v1945
        %1992 = vmatpush.msra.mxu0 %v1944
        %1993 = vmatmul.f32.gmra.mxu0 %v1861
        %v1994 = vpop.f32.mrf.mxu0
        %v1995 = vadd.f32 %v1969, %v1994
        %1996 = vdwg.mxu0
        %1997 = vmatpush.msra.mxu0 0.0
        %1998 = vmatpush.msra.mxu0 0.0
        %1999 = vmatpush.msra.mxu0 0.0
        %2000 = vmatpush.msra.mxu0 0.0
        %2001 = vmatpush.msra.mxu0 0.0
        %2002 = vmatpush.msra.mxu0 0.0
        %2003 = vmatpush.msra.mxu0 0.0
        %2004 = vmatpush.msra.mxu0 0.0
        %2005 = vmatpush.msra.mxu0 0.0
        %2006 = vmatpush.msra.mxu0 0.0
        %2007 = vmatpush.msra.mxu0 0.0
        %2008 = vmatpush.msra.mxu0 0.0
        %2009 = vmatpush.msra.mxu0 %v1951
        %2010 = vmatpush.msra.mxu0 %v1950
        %2011 = vmatpush.msra.mxu0 %v1949
        %2012 = vmatpush.msra.mxu0 %v1948
        %2013 = vmatmul.f32.gmra.mxu0 %v1861
        %v2014 = vpop.f32.mrf.mxu0
        %v2015 = vadd.f32 %v1970, %v2014
        %2016 = vdwg.mxu0
        %2017 = vmatpush.msra.mxu0 0.0
        %2018 = vmatpush.msra.mxu0 0.0
        %2019 = vmatpush.msra.mxu0 0.0
        %2020 = vmatpush.msra.mxu0 0.0
        %2021 = vmatpush.msra.mxu0 0.0
        %2022 = vmatpush.msra.mxu0 0.0
        %2023 = vmatpush.msra.mxu0 0.0
        %2024 = vmatpush.msra.mxu0 0.0
        %2025 = vmatpush.msra.mxu0 0.0
        %2026 = vmatpush.msra.mxu0 0.0
        %2027 = vmatpush.msra.mxu0 0.0
        %2028 = vmatpush.msra.mxu0 0.0
        %2029 = vmatpush.msra.mxu0 %v1955
        %2030 = vmatpush.msra.mxu0 %v1954
        %2031 = vmatpush.msra.mxu0 %v1953
        %2032 = vmatpush.msra.mxu0 %v1952
        %2033 = vmatmul.f32.gmra.mxu0 %v1861
        %v2034 = vpop.f32.mrf.mxu0
        %v2035 = vadd.f32 %v1971, %v2034
        %2036 = vdwg.mxu0
        %2037 = vmatpush.msra.mxu0 0.0
        %2038 = vmatpush.msra.mxu0 0.0
        %2039 = vmatpush.msra.mxu0 0.0
        %2040 = vmatpush.msra.mxu0 0.0
        %2041 = vmatpush.msra.mxu0 0.0
        %2042 = vmatpush.msra.mxu0 0.0
        %2043 = vmatpush.msra.mxu0 0.0
        %2044 = vmatpush.msra.mxu0 0.0
        %2045 = vmatpush.msra.mxu0 0.0
        %2046 = vmatpush.msra.mxu0 0.0
        %2047 = vmatpush.msra.mxu0 0.0
        %2048 = vmatpush.msra.mxu0 0.0
        %2049 = vmatpush.msra.mxu0 %v1959
        %2050 = vmatpush.msra.mxu0 %v1958
        %2051 = vmatpush.msra.mxu0 %v1957
        %2052 = vmatpush.msra.mxu0 %v1956
        %2053 = vmatmul.f32.gmra.mxu0 %v1861
        %v2054 = vpop.f32.mrf.mxu0
        %v2055 = vadd.f32 %v1972, %v2054
        %2056 = vdwg.mxu0
        %s2057 = scalar_lea.vmem %s11, 128
        %v2058 = vld [vmem:[%s2057] sm:$0xff]
        %v2059 = vld [vmem:[%s2057 + $0x8] sm:$0xff]
        %v2060 = vld [vmem:[%s2057 + $0x10] sm:$0xff]
        %v2061 = vld [vmem:[%s2057 + $0x18] sm:$0xff]
        %v2062 = vld [vmem:[%s2057 + $0x20] sm:$0xff]
        %v2063 = vld [vmem:[%s2057 + $0x28] sm:$0xff]
        %v2064 = vld [vmem:[%s2057 + $0x30] sm:$0xff]
        %v2065 = vld [vmem:[%s2057 + $0x38] sm:$0xff]
        %v2066 = vld [vmem:[%s2057 + $0x40] sm:$0xff]
        %v2067 = vld [vmem:[%s2057 + $0x48] sm:$0xff]
        %v2068 = vld [vmem:[%s2057 + $0x50] sm:$0xff]
        %v2069 = vld [vmem:[%s2057 + $0x58] sm:$0xff]
        %v2070 = vld [vmem:[%s2057 + $0x60] sm:$0xff]
        %v2071 = vld [vmem:[%s2057 + $0x68] sm:$0xff]
        %v2072 = vld [vmem:[%s2057 + $0x70] sm:$0xff]
        %v2073 = vld [vmem:[%s2057 + $0x78] sm:$0xff]
        %s2074 = scalar_lea.vmem %s12, 4
        %v2075 = vld [vmem:[%s2074] sm:$0x1]
        %v2076 = vld [vmem:[%s2074 + $0x1] sm:$0x1]
        %v2077 = vld [vmem:[%s2074 + $0x2] sm:$0x1]
        %v2078 = vld [vmem:[%s2074 + $0x3] sm:$0x1]
        %v2083 = vperm.slane %v2075, 0
        %v2084 = vperm.slane %v2076, 0
        %v2085 = vperm.slane %v2077, 0
        %v2086 = vperm.slane %v2078, 0
        %2091 = vmatpush.msra.mxu0 0.0
        %2092 = vmatpush.msra.mxu0 0.0
        %2093 = vmatpush.msra.mxu0 0.0
        %2094 = vmatpush.msra.mxu0 0.0
        %2095 = vmatpush.msra.mxu0 0.0
        %2096 = vmatpush.msra.mxu0 0.0
        %2097 = vmatpush.msra.mxu0 0.0
        %2098 = vmatpush.msra.mxu0 0.0
        %2099 = vmatpush.msra.mxu0 0.0
        %2100 = vmatpush.msra.mxu0 0.0
        %2101 = vmatpush.msra.mxu0 0.0
        %2102 = vmatpush.msra.mxu0 0.0
        %2103 = vmatpush.msra.mxu0 %v2061
        %2104 = vmatpush.msra.mxu0 %v2060
        %2105 = vmatpush.msra.mxu0 %v2059
        %2106 = vmatpush.msra.mxu0 %v2058
        %2107 = vmatmul.f32.gmra.mxu0 %v1861
        %v2108 = vpop.f32.mrf.mxu0
        %v2109 = vadd.f32 %v2083, %v2108
        %2110 = vdwg.mxu0
        %2111 = vmatpush.msra.mxu0 0.0
        %2112 = vmatpush.msra.mxu0 0.0
        %2113 = vmatpush.msra.mxu0 0.0
        %2114 = vmatpush.msra.mxu0 0.0
        %2115 = vmatpush.msra.mxu0 0.0
        %2116 = vmatpush.msra.mxu0 0.0
        %2117 = vmatpush.msra.mxu0 0.0
        %2118 = vmatpush.msra.mxu0 0.0
        %2119 = vmatpush.msra.mxu0 0.0
        %2120 = vmatpush.msra.mxu0 0.0
        %2121 = vmatpush.msra.mxu0 0.0
        %2122 = vmatpush.msra.mxu0 0.0
        %2123 = vmatpush.msra.mxu0 %v2065
        %2124 = vmatpush.msra.mxu0 %v2064
        %2125 = vmatpush.msra.mxu0 %v2063
        %2126 = vmatpush.msra.mxu0 %v2062
        %2127 = vmatmul.f32.gmra.mxu0 %v1861
        %v2128 = vpop.f32.mrf.mxu0
        %v2129 = vadd.f32 %v2084, %v2128
        %2130 = vdwg.mxu0
        %2131 = vmatpush.msra.mxu0 0.0
        %2132 = vmatpush.msra.mxu0 0.0
        %2133 = vmatpush.msra.mxu0 0.0
        %2134 = vmatpush.msra.mxu0 0.0
        %2135 = vmatpush.msra.mxu0 0.0
        %2136 = vmatpush.msra.mxu0 0.0
        %2137 = vmatpush.msra.mxu0 0.0
        %2138 = vmatpush.msra.mxu0 0.0
        %2139 = vmatpush.msra.mxu0 0.0
        %2140 = vmatpush.msra.mxu0 0.0
        %2141 = vmatpush.msra.mxu0 0.0
        %2142 = vmatpush.msra.mxu0 0.0
        %2143 = vmatpush.msra.mxu0 %v2069
        %2144 = vmatpush.msra.mxu0 %v2068
        %2145 = vmatpush.msra.mxu0 %v2067
        %2146 = vmatpush.msra.mxu0 %v2066
        %2147 = vmatmul.f32.gmra.mxu0 %v1861
        %v2148 = vpop.f32.mrf.mxu0
        %v2149 = vadd.f32 %v2085, %v2148
        %2150 = vdwg.mxu0
        %2151 = vmatpush.msra.mxu0 0.0
        %2152 = vmatpush.msra.mxu0 0.0
        %2153 = vmatpush.msra.mxu0 0.0
        %2154 = vmatpush.msra.mxu0 0.0
        %2155 = vmatpush.msra.mxu0 0.0
        %2156 = vmatpush.msra.mxu0 0.0
        %2157 = vmatpush.msra.mxu0 0.0
        %2158 = vmatpush.msra.mxu0 0.0
        %2159 = vmatpush.msra.mxu0 0.0
        %2160 = vmatpush.msra.mxu0 0.0
        %2161 = vmatpush.msra.mxu0 0.0
        %2162 = vmatpush.msra.mxu0 0.0
        %2163 = vmatpush.msra.mxu0 %v2073
        %2164 = vmatpush.msra.mxu0 %v2072
        %2165 = vmatpush.msra.mxu0 %v2071
        %2166 = vmatpush.msra.mxu0 %v2070
        %2167 = vmatmul.f32.gmra.mxu0 %v1861
        %v2168 = vpop.f32.mrf.mxu0
        %v2169 = vadd.f32 %v2086, %v2168
        %2170 = vdwg.mxu0
        %v2172 = vsel %vm1283, %v1881, 0
        %v2175 = vsel %vm1283, %v1995, 0
        %2177 = vmatpush.xpose.msra.mxu0 0.0
        %2178 = vmatpush.xpose.msra.mxu0 0.0
        %2179 = vmatpush.xpose.msra.mxu0 0.0
        %2180 = vmatpush.xpose.msra.mxu0 0.0
        %2181 = vmatpush.xpose.msra.mxu0 0.0
        %2182 = vmatpush.xpose.msra.mxu0 0.0
        %2183 = vmatpush.xpose.msra.mxu0 0.0
        %2184 = vmatpush.xpose.msra.mxu0 0.0
        %2185 = vmatpush.xpose.msra.mxu0 0.0
        %2186 = vmatpush.xpose.msra.mxu0 0.0
        %2187 = vmatpush.xpose.msra.mxu0 0.0
        %2188 = vmatpush.xpose.msra.mxu0 0.0
        %2189 = vmatpush.xpose.msra.mxu0 0.0
        %2190 = vmatpush.xpose.msra.mxu0 0.0
        %2191 = vmatpush.xpose.msra.mxu0 0.0
        %2192 = vmatpush.xpose.msra.mxu0 %v2175
        %2193 = vmatmul.f32.gmra.mxu0 %v2172
        %v2194 = vpop.f32.mrf.mxu0
        %v2195 = vadd.f32 0.0, %v2194
        %2196 = vdwg.mxu0
        %v2198 = vsel %vm1283, %v1901, 0
        %v2201 = vsel %vm1283, %v2015, 0
        %2203 = vmatpush.xpose.msra.mxu0 0.0
        %2204 = vmatpush.xpose.msra.mxu0 0.0
        %2205 = vmatpush.xpose.msra.mxu0 0.0
        %2206 = vmatpush.xpose.msra.mxu0 0.0
        %2207 = vmatpush.xpose.msra.mxu0 0.0
        %2208 = vmatpush.xpose.msra.mxu0 0.0
        %2209 = vmatpush.xpose.msra.mxu0 0.0
        %2210 = vmatpush.xpose.msra.mxu0 0.0
        %2211 = vmatpush.xpose.msra.mxu0 0.0
        %2212 = vmatpush.xpose.msra.mxu0 0.0
        %2213 = vmatpush.xpose.msra.mxu0 0.0
        %2214 = vmatpush.xpose.msra.mxu0 0.0
        %2215 = vmatpush.xpose.msra.mxu0 0.0
        %2216 = vmatpush.xpose.msra.mxu0 0.0
        %2217 = vmatpush.xpose.msra.mxu0 0.0
        %2218 = vmatpush.xpose.msra.mxu0 %v2201
        %2219 = vmatmul.f32.gmra.mxu0 %v2198
        %v2220 = vpop.f32.mrf.mxu0
        %v2221 = vadd.f32 0.0, %v2220
        %2222 = vdwg.mxu0
        %v2224 = vsel %vm1283, %v1921, 0
        %v2227 = vsel %vm1283, %v2035, 0
        %2229 = vmatpush.xpose.msra.mxu0 0.0
        %2230 = vmatpush.xpose.msra.mxu0 0.0
        %2231 = vmatpush.xpose.msra.mxu0 0.0
        %2232 = vmatpush.xpose.msra.mxu0 0.0
        %2233 = vmatpush.xpose.msra.mxu0 0.0
        %2234 = vmatpush.xpose.msra.mxu0 0.0
        %2235 = vmatpush.xpose.msra.mxu0 0.0
        %2236 = vmatpush.xpose.msra.mxu0 0.0
        %2237 = vmatpush.xpose.msra.mxu0 0.0
        %2238 = vmatpush.xpose.msra.mxu0 0.0
        %2239 = vmatpush.xpose.msra.mxu0 0.0
        %2240 = vmatpush.xpose.msra.mxu0 0.0
        %2241 = vmatpush.xpose.msra.mxu0 0.0
        %2242 = vmatpush.xpose.msra.mxu0 0.0
        %2243 = vmatpush.xpose.msra.mxu0 0.0
        %2244 = vmatpush.xpose.msra.mxu0 %v2227
        %2245 = vmatmul.f32.gmra.mxu0 %v2224
        %v2246 = vpop.f32.mrf.mxu0
        %v2247 = vadd.f32 0.0, %v2246
        %2248 = vdwg.mxu0
        %v2250 = vsel %vm1283, %v1941, 0
        %v2253 = vsel %vm1283, %v2055, 0
        %2255 = vmatpush.xpose.msra.mxu0 0.0
        %2256 = vmatpush.xpose.msra.mxu0 0.0
        %2257 = vmatpush.xpose.msra.mxu0 0.0
        %2258 = vmatpush.xpose.msra.mxu0 0.0
        %2259 = vmatpush.xpose.msra.mxu0 0.0
        %2260 = vmatpush.xpose.msra.mxu0 0.0
        %2261 = vmatpush.xpose.msra.mxu0 0.0
        %2262 = vmatpush.xpose.msra.mxu0 0.0
        %2263 = vmatpush.xpose.msra.mxu0 0.0
        %2264 = vmatpush.xpose.msra.mxu0 0.0
        %2265 = vmatpush.xpose.msra.mxu0 0.0
        %2266 = vmatpush.xpose.msra.mxu0 0.0
        %2267 = vmatpush.xpose.msra.mxu0 0.0
        %2268 = vmatpush.xpose.msra.mxu0 0.0
        %2269 = vmatpush.xpose.msra.mxu0 0.0
        %2270 = vmatpush.xpose.msra.mxu0 %v2253
        %2271 = vmatmul.f32.gmra.mxu0 %v2250
        %v2272 = vpop.f32.mrf.mxu0
        %v2273 = vadd.f32 0.0, %v2272
        %2274 = vdwg.mxu0
        %v2275 = vmul.f32 %v2195, 0.35355338
        %v2276 = vmul.f32 %v2221, 0.35355338
        %v2277 = vmul.f32 %v2247, 0.35355338
        %v2278 = vmul.f32 %v2273, 0.35355338
        %v2279 = vsel %vm1392, %v2275, -inf
        %2280 = vmax.xlane.f32.xlu0 %v2279
        %v2281 = vpop.xlane.xlu0 %2280
        %v2282 = vsel %vm1392, %v2276, -inf
        %2283 = vmax.xlane.f32.xlu0 %v2282
        %v2284 = vpop.xlane.xlu0 %2283
        %v2285 = vsel %vm1392, %v2277, -inf
        %2286 = vmax.xlane.f32.xlu0 %v2285
        %v2287 = vpop.xlane.xlu0 %2286
        %v2288 = vsel %vm1392, %v2278, -inf
        %2289 = vmax.xlane.f32.xlu0 %v2288
        %v2290 = vpop.xlane.xlu0 %2289
        %v2291 = vsub.f32 %v2275, %v2281
        %v2292 = vsub.f32 %v2276, %v2284
        %v2293 = vsub.f32 %v2277, %v2287
        %v2294 = vsub.f32 %v2278, %v2290
        %v2295 = vmul.f32 %v2291, 1.442695
        %v2296 = vpow.pop %v2295
        %v2297 = vmul.f32 %v2292, 1.442695
        %v2298 = vpow.pop %v2297
        %v2299 = vmul.f32 %v2293, 1.442695
        %v2300 = vpow.pop %v2299
        %v2301 = vmul.f32 %v2294, 1.442695
        %v2302 = vpow.pop %v2301
        %v2303 = vsel %vm1392, %v2296, 0.0
        %2304 = vadd.xlane.f32.xlu0 %v2303
        %v2305 = vpop.xlane.xlu0 %2304
        %v2306 = vsel %vm1392, %v2298, 0.0
        %2307 = vadd.xlane.f32.xlu0 %v2306
        %v2308 = vpop.xlane.xlu0 %2307
        %v2309 = vsel %vm1392, %v2300, 0.0
        %2310 = vadd.xlane.f32.xlu0 %v2309
        %v2311 = vpop.xlane.xlu0 %2310
        %v2312 = vsel %vm1392, %v2302, 0.0
        %2313 = vadd.xlane.f32.xlu0 %v2312
        %v2314 = vpop.xlane.xlu0 %2313
        %v2315 = vrcp.pop %v2305
        %v2316 = vrcp.pop %v2308
        %v2317 = vrcp.pop %v2311
        %v2318 = vrcp.pop %v2314
        %v2319 = vmul.f32 %v2296, %v2315
        %v2320 = vmul.f32 %v2298, %v2316
        %v2321 = vmul.f32 %v2300, %v2317
        %v2322 = vmul.f32 %v2302, %v2318
        %v2324 = vsel %vm1437, %v2319, 0
        %v2327 = vsel %vm1441, %v2109, 0
        %2329 = vmatpush.msra.mxu0 0.0
        %2330 = vmatpush.msra.mxu0 0.0
        %2331 = vmatpush.msra.mxu0 0.0
        %2332 = vmatpush.msra.mxu0 0.0
        %2333 = vmatpush.msra.mxu0 0.0
        %2334 = vmatpush.msra.mxu0 0.0
        %2335 = vmatpush.msra.mxu0 0.0
        %2336 = vmatpush.msra.mxu0 0.0
        %2337 = vmatpush.msra.mxu0 0.0
        %2338 = vmatpush.msra.mxu0 0.0
        %2339 = vmatpush.msra.mxu0 0.0
        %2340 = vmatpush.msra.mxu0 0.0
        %2341 = vmatpush.msra.mxu0 0.0
        %2342 = vmatpush.msra.mxu0 0.0
        %2343 = vmatpush.msra.mxu0 0.0
        %2344 = vmatpush.msra.mxu0 %v2327
        %2345 = vmatmul.f32.gmra.mxu0 %v2324
        %v2346 = vpop.f32.mrf.mxu0
        %v2347 = vadd.f32 0.0, %v2346
        %2348 = vdwg.mxu0
        %v2350 = vsel %vm1437, %v2320, 0
        %v2353 = vsel %vm1441, %v2129, 0
        %2355 = vmatpush.msra.mxu0 0.0
        %2356 = vmatpush.msra.mxu0 0.0
        %2357 = vmatpush.msra.mxu0 0.0
        %2358 = vmatpush.msra.mxu0 0.0
        %2359 = vmatpush.msra.mxu0 0.0
        %2360 = vmatpush.msra.mxu0 0.0
        %2361 = vmatpush.msra.mxu0 0.0
        %2362 = vmatpush.msra.mxu0 0.0
        %2363 = vmatpush.msra.mxu0 0.0
        %2364 = vmatpush.msra.mxu0 0.0
        %2365 = vmatpush.msra.mxu0 0.0
        %2366 = vmatpush.msra.mxu0 0.0
        %2367 = vmatpush.msra.mxu0 0.0
        %2368 = vmatpush.msra.mxu0 0.0
        %2369 = vmatpush.msra.mxu0 0.0
        %2370 = vmatpush.msra.mxu0 %v2353
        %2371 = vmatmul.f32.gmra.mxu0 %v2350
        %v2372 = vpop.f32.mrf.mxu0
        %v2373 = vadd.f32 0.0, %v2372
        %2374 = vdwg.mxu0
        %v2376 = vsel %vm1437, %v2321, 0
        %v2379 = vsel %vm1441, %v2149, 0
        %2381 = vmatpush.msra.mxu0 0.0
        %2382 = vmatpush.msra.mxu0 0.0
        %2383 = vmatpush.msra.mxu0 0.0
        %2384 = vmatpush.msra.mxu0 0.0
        %2385 = vmatpush.msra.mxu0 0.0
        %2386 = vmatpush.msra.mxu0 0.0
        %2387 = vmatpush.msra.mxu0 0.0
        %2388 = vmatpush.msra.mxu0 0.0
        %2389 = vmatpush.msra.mxu0 0.0
        %2390 = vmatpush.msra.mxu0 0.0
        %2391 = vmatpush.msra.mxu0 0.0
        %2392 = vmatpush.msra.mxu0 0.0
        %2393 = vmatpush.msra.mxu0 0.0
        %2394 = vmatpush.msra.mxu0 0.0
        %2395 = vmatpush.msra.mxu0 0.0
        %2396 = vmatpush.msra.mxu0 %v2379
        %2397 = vmatmul.f32.gmra.mxu0 %v2376
        %v2398 = vpop.f32.mrf.mxu0
        %v2399 = vadd.f32 0.0, %v2398
        %2400 = vdwg.mxu0
        %v2402 = vsel %vm1437, %v2322, 0
        %v2405 = vsel %vm1441, %v2169, 0
        %2407 = vmatpush.msra.mxu0 0.0
        %2408 = vmatpush.msra.mxu0 0.0
        %2409 = vmatpush.msra.mxu0 0.0
        %2410 = vmatpush.msra.mxu0 0.0
        %2411 = vmatpush.msra.mxu0 0.0
        %2412 = vmatpush.msra.mxu0 0.0
        %2413 = vmatpush.msra.mxu0 0.0
        %2414 = vmatpush.msra.mxu0 0.0
        %2415 = vmatpush.msra.mxu0 0.0
        %2416 = vmatpush.msra.mxu0 0.0
        %2417 = vmatpush.msra.mxu0 0.0
        %2418 = vmatpush.msra.mxu0 0.0
        %2419 = vmatpush.msra.mxu0 0.0
        %2420 = vmatpush.msra.mxu0 0.0
        %2421 = vmatpush.msra.mxu0 0.0
        %2422 = vmatpush.msra.mxu0 %v2405
        %2423 = vmatmul.f32.gmra.mxu0 %v2402
        %v2424 = vpop.f32.mrf.mxu0
        %v2425 = vadd.f32 0.0, %v2424
        %2426 = vdwg.mxu0
        %s2427 = scalar_lea.vmem %s13, 32
        %v2428 = vld [vmem:[%s2427] sm:$0xff]
        %v2429 = vld [vmem:[%s2427 + $0x8] sm:$0xff]
        %v2430 = vld [vmem:[%s2427 + $0x10] sm:$0xff]
        %v2431 = vld [vmem:[%s2427 + $0x18] sm:$0xff]
        %v2433 = vsel %vm1283, %v2347, 0
        %2435 = vmatpush.msra.mxu0 0.0
        %2436 = vmatpush.msra.mxu0 0.0
        %2437 = vmatpush.msra.mxu0 0.0
        %2438 = vmatpush.msra.mxu0 0.0
        %2439 = vmatpush.msra.mxu0 0.0
        %2440 = vmatpush.msra.mxu0 0.0
        %2441 = vmatpush.msra.mxu0 0.0
        %2442 = vmatpush.msra.mxu0 0.0
        %2443 = vmatpush.msra.mxu0 0.0
        %2444 = vmatpush.msra.mxu0 0.0
        %2445 = vmatpush.msra.mxu0 0.0
        %2446 = vmatpush.msra.mxu0 0.0
        %2447 = vmatpush.msra.mxu0 0.0
        %2448 = vmatpush.msra.mxu0 0.0
        %2449 = vmatpush.msra.mxu0 0.0
        %2450 = vmatpush.msra.mxu0 %v2428
        %2451 = vmatmul.f32.gmra.mxu0 %v2433
        %v2452 = vpop.f32.mrf.mxu0
        %v2453 = vadd.f32 0.0, %v2452
        %2454 = vdwg.mxu0
        %v2456 = vsel %vm1283, %v2373, 0
        %2458 = vmatpush.msra.mxu0 0.0
        %2459 = vmatpush.msra.mxu0 0.0
        %2460 = vmatpush.msra.mxu0 0.0
        %2461 = vmatpush.msra.mxu0 0.0
        %2462 = vmatpush.msra.mxu0 0.0
        %2463 = vmatpush.msra.mxu0 0.0
        %2464 = vmatpush.msra.mxu0 0.0
        %2465 = vmatpush.msra.mxu0 0.0
        %2466 = vmatpush.msra.mxu0 0.0
        %2467 = vmatpush.msra.mxu0 0.0
        %2468 = vmatpush.msra.mxu0 0.0
        %2469 = vmatpush.msra.mxu0 0.0
        %2470 = vmatpush.msra.mxu0 0.0
        %2471 = vmatpush.msra.mxu0 0.0
        %2472 = vmatpush.msra.mxu0 0.0
        %2473 = vmatpush.msra.mxu0 %v2429
        %2474 = vmatmul.f32.gmra.mxu0 %v2456
        %v2475 = vpop.f32.mrf.mxu0
        %v2476 = vadd.f32 0.0, %v2475
        %2477 = vdwg.mxu0
        %v2479 = vsel %vm1283, %v2399, 0
        %2481 = vmatpush.msra.mxu0 0.0
        %2482 = vmatpush.msra.mxu0 0.0
        %2483 = vmatpush.msra.mxu0 0.0
        %2484 = vmatpush.msra.mxu0 0.0
        %2485 = vmatpush.msra.mxu0 0.0
        %2486 = vmatpush.msra.mxu0 0.0
        %2487 = vmatpush.msra.mxu0 0.0
        %2488 = vmatpush.msra.mxu0 0.0
        %2489 = vmatpush.msra.mxu0 0.0
        %2490 = vmatpush.msra.mxu0 0.0
        %2491 = vmatpush.msra.mxu0 0.0
        %2492 = vmatpush.msra.mxu0 0.0
        %2493 = vmatpush.msra.mxu0 0.0
        %2494 = vmatpush.msra.mxu0 0.0
        %2495 = vmatpush.msra.mxu0 0.0
        %2496 = vmatpush.msra.mxu0 %v2430
        %2497 = vmatmul.f32.gmra.mxu0 %v2479
        %v2498 = vpop.f32.mrf.mxu0
        %v2499 = vadd.f32 0.0, %v2498
        %2500 = vdwg.mxu0
        %v2502 = vsel %vm1283, %v2425, 0
        %2504 = vmatpush.msra.mxu0 0.0
        %2505 = vmatpush.msra.mxu0 0.0
        %2506 = vmatpush.msra.mxu0 0.0
        %2507 = vmatpush.msra.mxu0 0.0
        %2508 = vmatpush.msra.mxu0 0.0
        %2509 = vmatpush.msra.mxu0 0.0
        %2510 = vmatpush.msra.mxu0 0.0
        %2511 = vmatpush.msra.mxu0 0.0
        %2512 = vmatpush.msra.mxu0 0.0
        %2513 = vmatpush.msra.mxu0 0.0
        %2514 = vmatpush.msra.mxu0 0.0
        %2515 = vmatpush.msra.mxu0 0.0
        %2516 = vmatpush.msra.mxu0 0.0
        %2517 = vmatpush.msra.mxu0 0.0
        %2518 = vmatpush.msra.mxu0 0.0
        %2519 = vmatpush.msra.mxu0 %v2431
        %2520 = vmatmul.f32.gmra.mxu0 %v2502
        %v2521 = vpop.f32.mrf.mxu0
        %v2522 = vadd.f32 0.0, %v2521
        %2523 = vdwg.mxu0
        %v2524 = vsel %vm905, %v2453, 0.0
        %v2525 = vsel %vm905, %v2476, 0.0
        %v2526 = vadd.f32 %v2524, %v2525
        %v2527 = vsel %vm905, %v2499, 0.0
        %v2528 = vadd.f32 %v2526, %v2527
        %v2529 = vsel %vm905, %v2522, 0.0
        %v2530 = vadd.f32 %v2528, %v2529
        %s2531 = scalar_lea.vmem %s14, 1
        %v2532 = vld [vmem:[%s2531] sm:$0x1]
        %v2534 = vperm.slane %v2532, 0
        %v2536 = vadd.f32 %v2530, %v2534
        %v2537 = vadd.f32 %v2536, %v1791
        %s2538 = scalar_lea.vmem %s15, 1
        %v2539 = vld [vmem:[%s2538] sm:$0x1]
        %s2540 = scalar_lea.vmem %s16, 1
        %v2541 = vld [vmem:[%s2540] sm:$0x1]
        %v2542 = vsel %vm905, %v2537, 0.0
        %2543 = vadd.xlane.f32.xlu0 %v2542
        %v2544 = vpop.xlane.xlu0 %2543
        %v2545 = vmul.f32 %v2544, %v915
        %v2546 = vsub.f32 %v2537, %v2545
        %v2547 = vmul.f32 %v2546, %v2546
        %v2548 = vsel %vm905, %v2547, 0.0
        %2549 = vadd.xlane.f32.xlu0 %v2548
        %v2550 = vpop.xlane.xlu0 %2549
        %v2551 = vmul.f32 %v2550, %v915
        %v2552 = vadd.f32 %v2551, 1e-06
        %v2553 = vrsqrt.pop %v2552
        %v2554 = vmul.f32 %v2553, %v2552
        %v2555 = vmul.f32 %v2554, %v2553
        %v2556 = vmul.f32 0.5, %v2555
        %v2557 = vsub.f32 1.5, %v2556
        %v2558 = vmul.f32 %v2553, %v2557
        %vm2559 = vweird.f32 %v2552
        %vm2560 = vweird.f32 %v2553
        %vm2561 = vmor %vm2559, %vm2560
        %v2562 = vsel %vm2561, %v2553, %v2558
        %v2563 = vmul.f32 %v2546, %v2562
        %v2565 = vperm.slane %v2539, 0
        %v2567 = vmul.f32 %v2563, %v2565
        %v2569 = vperm.slane %v2541, 0
        %v2571 = vadd.f32 %v2567, %v2569
        %s2572 = scalar_lea.vmem %s17, 1
        %v2573 = vld [vmem:[%s2572] sm:$0x1]
        %s2574 = scalar_lea.vmem %s18, 1
        %v2575 = vld [vmem:[%s2574] sm:$0x1]
        %v2576 = vsel %vm905, %v2571, 0.0
        %2577 = vadd.xlane.f32.xlu0 %v2576
        %v2578 = vpop.xlane.xlu0 %2577
        %v2579 = vmul.f32 %v2578, %v915
        %v2580 = vsub.f32 %v2571, %v2579
        %v2581 = vmul.f32 %v2580, %v2580
        %v2582 = vsel %vm905, %v2581, 0.0
        %2583 = vadd.xlane.f32.xlu0 %v2582
        %v2584 = vpop.xlane.xlu0 %2583
        %v2585 = vmul.f32 %v2584, %v915
        %v2586 = vadd.f32 %v2585, 1e-06
        %v2587 = vrsqrt.pop %v2586
        %v2588 = vmul.f32 %v2587, %v2586
        %v2589 = vmul.f32 %v2588, %v2587
        %v2590 = vmul.f32 0.5, %v2589
        %v2591 = vsub.f32 1.5, %v2590
        %v2592 = vmul.f32 %v2587, %v2591
        %vm2593 = vweird.f32 %v2586
        %vm2594 = vweird.f32 %v2587
        %vm2595 = vmor %vm2593, %vm2594
        %v2596 = vsel %vm2595, %v2587, %v2592
        %v2597 = vmul.f32 %v2580, %v2596
        %v2599 = vperm.slane %v2573, 0
        %v2601 = vmul.f32 %v2597, %v2599
        %v2603 = vperm.slane %v2575, 0
        %v2605 = vadd.f32 %v2601, %v2603
        %s2606 = scalar_lea.vmem %s19, 32
        %v2607 = vld [vmem:[%s2606] sm:$0xff]
        %v2608 = vld [vmem:[%s2606 + $0x8] sm:$0xff]
        %v2609 = vld [vmem:[%s2606 + $0x10] sm:$0xff]
        %v2610 = vld [vmem:[%s2606 + $0x18] sm:$0xff]
        %s2611 = scalar_lea.vmem %s20, 1
        %v2612 = vld [vmem:[%s2611] sm:$0x1]
        %v2614 = vperm.slane %v2612, 0
        %v2617 = vsel %vm975, %v2605, 0
        %2619 = vmatpush.msra.mxu0 0.0
        %2620 = vmatpush.msra.mxu0 0.0
        %2621 = vmatpush.msra.mxu0 0.0
        %2622 = vmatpush.msra.mxu0 0.0
        %2623 = vmatpush.msra.mxu0 0.0
        %2624 = vmatpush.msra.mxu0 0.0
        %2625 = vmatpush.msra.mxu0 0.0
        %2626 = vmatpush.msra.mxu0 0.0
        %2627 = vmatpush.msra.mxu0 0.0
        %2628 = vmatpush.msra.mxu0 0.0
        %2629 = vmatpush.msra.mxu0 0.0
        %2630 = vmatpush.msra.mxu0 0.0
        %2631 = vmatpush.msra.mxu0 %v2610
        %2632 = vmatpush.msra.mxu0 %v2609
        %2633 = vmatpush.msra.mxu0 %v2608
        %2634 = vmatpush.msra.mxu0 %v2607
        %2635 = vmatmul.f32.gmra.mxu0 %v2617
        %v2636 = vpop.f32.mrf.mxu0
        %v2637 = vadd.f32 %v2614, %v2636
        %2638 = vdwg.mxu0
        %v2639 = vmul.f32 %v2637, 0.5
        %v2640 = vmul.f32 %v2637, 0.044715
        %v2641 = vmul.f32 %v2640, %v2637
        %v2642 = vmul.f32 %v2641, %v2637
        %v2643 = vadd.f32 %v2637, %v2642
        %v2644 = vmul.f32 %v2643, 0.7978846
        %v2645 = vtanh.pop %v2644
        %v2646 = vadd.f32 %v2645, 1.0
        %v2647 = vmul.f32 %v2639, %v2646
        %s2648 = scalar_lea.vmem %s21, 64
        %v2649 = vld [vmem:[%s2648] sm:$0xff]
        %v2650 = vld [vmem:[%s2648 + $0x8] sm:$0xff]
        %v2651 = vld [vmem:[%s2648 + $0x10] sm:$0xff]
        %v2652 = vld [vmem:[%s2648 + $0x18] sm:$0xff]
        %v2653 = vld [vmem:[%s2648 + $0x20] sm:$0xff]
        %v2654 = vld [vmem:[%s2648 + $0x28] sm:$0xff]
        %v2655 = vld [vmem:[%s2648 + $0x30] sm:$0xff]
        %v2656 = vld [vmem:[%s2648 + $0x38] sm:$0xff]
        %s2657 = scalar_lea.vmem %s22, 1
        %v2658 = vld [vmem:[%s2657] sm:$0x1]
        %v2660 = vperm.slane %v2658, 0
        %v2663 = vsel %vm850, %v2647, 0
        %2665 = vmatpush.msra.mxu0 0.0
        %2666 = vmatpush.msra.mxu0 0.0
        %2667 = vmatpush.msra.mxu0 0.0
        %2668 = vmatpush.msra.mxu0 0.0
        %2669 = vmatpush.msra.mxu0 0.0
        %2670 = vmatpush.msra.mxu0 0.0
        %2671 = vmatpush.msra.mxu0 0.0
        %2672 = vmatpush.msra.mxu0 0.0
        %2673 = vmatpush.msra.mxu0 %v2656
        %2674 = vmatpush.msra.mxu0 %v2655
        %2675 = vmatpush.msra.mxu0 %v2654
        %2676 = vmatpush.msra.mxu0 %v2653
        %2677 = vmatpush.msra.mxu0 %v2652
        %2678 = vmatpush.msra.mxu0 %v2651
        %2679 = vmatpush.msra.mxu0 %v2650
        %2680 = vmatpush.msra.mxu0 %v2649
        %2681 = vmatmul.f32.gmra.mxu0 %v2663
        %v2682 = vpop.f32.mrf.mxu0
        %v2683 = vadd.f32 %v2660, %v2682
        %2684 = vdwg.mxu0
        %v2685 = vadd.f32 %v2571, %v2683
        %v2686 = vld [vmem:[%s23] sm:$0x1]
        %v2687 = vld [vmem:[%s24] sm:$0x1]
        %v2688 = vsel %vm896, %v2685, 0.0
        %2689 = vadd.xlane.f32.xlu0 %v2688
        %v2690 = vpop.xlane.xlu0 %2689
        %v2691 = vmul.f32 %v2690, %v915
        %v2692 = vsub.f32 %v2685, %v2691
        %v2693 = vmul.f32 %v2692, %v2692
        %v2694 = vsel %vm896, %v2693, 0.0
        %2695 = vadd.xlane.f32.xlu0 %v2694
        %v2696 = vpop.xlane.xlu0 %2695
        %v2697 = vmul.f32 %v2696, %v915
        %v2698 = vadd.f32 %v2697, 1e-06
        %v2699 = vrsqrt.pop %v2698
        %v2700 = vmul.f32 %v2699, %v2698
        %v2701 = vmul.f32 %v2700, %v2699
        %v2702 = vmul.f32 0.5, %v2701
        %v2703 = vsub.f32 1.5, %v2702
        %v2704 = vmul.f32 %v2699, %v2703
        %vm2705 = vweird.f32 %v2698
        %vm2706 = vweird.f32 %v2699
        %vm2707 = vmor %vm2705, %vm2706
        %v2708 = vsel %vm2707, %v2699, %v2704
        %v2709 = vmul.f32 %v2692, %v2708
        %v2710 = vmul.f32 %v2709, %v2686
        %v2711 = vadd.f32 %v2710, %v2687
        %v2712 = vld [vmem:[%s25] sm:$0xff]
        %v2713 = vld [vmem:[%s25 + $0x8] sm:$0xff]
        %v2714 = vld [vmem:[%s25 + $0x10] sm:$0xff]
        %v2715 = vld [vmem:[%s25 + $0x18] sm:$0xff]
        %v2716 = vld [vmem:[%s26] sm:$0x1]
        %v2718 = vsel %vm975, %v2711, 0
        %2720 = vmatpush.msra.mxu0 0.0
        %2721 = vmatpush.msra.mxu0 0.0
        %2722 = vmatpush.msra.mxu0 0.0
        %2723 = vmatpush.msra.mxu0 0.0
        %2724 = vmatpush.msra.mxu0 0.0
        %2725 = vmatpush.msra.mxu0 0.0
        %2726 = vmatpush.msra.mxu0 0.0
        %2727 = vmatpush.msra.mxu0 0.0
        %2728 = vmatpush.msra.mxu0 0.0
        %2729 = vmatpush.msra.mxu0 0.0
        %2730 = vmatpush.msra.mxu0 0.0
        %2731 = vmatpush.msra.mxu0 0.0
        %2732 = vmatpush.msra.mxu0 %v2715
        %2733 = vmatpush.msra.mxu0 %v2714
        %2734 = vmatpush.msra.mxu0 %v2713
        %2735 = vmatpush.msra.mxu0 %v2712
        %2736 = vmatmul.f32.gmra.mxu0 %v2718
        %v2737 = vpop.f32.mrf.mxu0
        %v2738 = vadd.f32 %v2716, %v2737
        %2739 = vdwg.mxu0
        %vm2740 = vcmask 122880
        %2741 = vst.msk [vmem:[%s810] sm:$0x1] %vm2740, %v2738
        %s2742 = sand.u32 %s621, 1
        %s2743 = scalar_lea.sflag [#allocation4], %s2742
        %s2744 = sand.u32 %s621, 1
        %s2745 = scalar_lea.vmem [#allocation3], %s2744
        // Predicated region
        $region129: #{tpu_custom_call.1} parent=127 // pred_check
          %p2746 = pneg %p631
        $region130: #{tpu_custom_call.1} parent=127 // pred_check_branch
          %2748 = sbr.rel (%p2746) target = $region132
        $region131: #{tpu_custom_call.1} parent=127 // pred_region
          %2750 = vsyncadd %s2743, 0
          %s2751 = scalar_lea.hbm %s27, %s41
          %s2753 = sshll.u32 %s2745, 4
          %s2754 = int_to_ptr.vmem [resolvable:$true] %s2753
          %s2755 = sshll.u32 %s2751, 4
          %s2756 = int_to_ptr.hbm [resolvable:$true] %s2755
          %2758 = dma.vmem_to_hbm [thread:$0]  %s2754, 16, %s2756, %s2743
        $region132: #{tpu_custom_call.1} parent=127 // pred_fallthru
          _
      $region128: #{tpu_custom_call.1} parent=5 // pred_fallthru
        _
      %p2759 = scmp.le.s32.totalorder 2, %s36
      // Predicated region
      $region133: #{tpu_custom_call.1} parent=5 // pred_check
        %p2760 = pneg %p2759
      $region134: #{tpu_custom_call.1} parent=5 // pred_check_branch
        %2762 = sbr.rel (%p2760) target = $region136
      $region135: #{tpu_custom_call.1} parent=5 // pred_region
        %s2763 = ssub.s32 %s36, 2
        // Predicated region
        $region137: #{tpu_custom_call.1} parent=135 // pred_check
          %p2764 = pneg %p637
        $region138: #{tpu_custom_call.1} parent=135 // pred_check_branch
          %2766 = sbr.rel (%p2764) target = $region140
        $region139: #{tpu_custom_call.1} parent=135 // pred_region
          %s2767 = sand.u32 %s622, 1
          %s2768 = scalar_lea.sflag [#allocation4], %s2767
          %s2769 = sand.u32 %s622, 1
          %s2770 = scalar_lea.vmem [#allocation3], %s2769
          %2772 = dma.done %s2768, 16
        $region140: #{tpu_custom_call.1} parent=135 // pred_fallthru
          _
      $region136: #{tpu_custom_call.1} parent=5 // pred_fallthru
        _
    $region6: #{tpu_custom_call.1} parent=1 // loop_footer
      %s40 = sadd.s32 1, %s36
    $region7: #{tpu_custom_call.1} parent=1 // loop_footer_branch
      %35 = sbr.rel target = $region3
    $region8: #{tpu_custom_call.1} parent=1 // loop_exit
      _
    %2773 = vsyncpa [#allocation4], 1
    %s2774 = scalar_lea.sflag [#allocation4], 1
    %2775 = vsyncpa %s2774, 1

</llo_original>
